<compile_context>
chip_gen: v7x
topology: tpu7x:2x2x1
jax: 0.10.0
libtpu: 0.0.40
codegen_flags: <defaults>
</compile_context>

<pallas_src>
import functools

import jax
import jax.numpy as jnp
from jax import lax
from jax.experimental import pallas as pl
from jax.experimental.pallas import tpu as pltpu


def _round_up(x, m):
    return (x + m - 1) // m * m


# ----------------------------- Pallas kernels -------------------------------
def _conv_bias_kernel(x_ref, w_ref, b_ref, o_ref, *, relu_out):
    """out = maybe_relu(x @ w + bias); bf16 operands, f32 accumulate,
    stored in o_ref.dtype (bf16 for intermediate activations)."""
    acc = jnp.dot(x_ref[...], w_ref[...], preferred_element_type=jnp.float32)
    acc = acc + b_ref[...]
    if relu_out:
        acc = jnp.maximum(acc, 0.0)
    o_ref[...] = acc.astype(o_ref.dtype)


def _conv3_residual_stack_kernel(x_ref, b3_ref, w3c_ref, wr3_ref, wr1_ref,
                                 o_ref, *, H, W, HW, n_layers):
    """Fused conv_3 (3x3, s1, p1, +bias) + full ResidualStack + final ReLU for
    ONE image.  The activation never leaves VMEM; each 3x3 conv is 9 shifted
    (HW, C) @ (C, Cout) dots with boundary masks (in-kernel patch extraction,
    no im2col matrix in HBM)."""
    HWp = x_ref.shape[1]
    Cp = x_ref.shape[2]
    Rp = wr3_ref.shape[3]

    x = x_ref[0].astype(jnp.float32)           # (HWp, Cp) residual carry (f32)

    # Row -> (h, w) maps used to mask taps that fall outside the image.
    row = lax.broadcasted_iota(jnp.int32, (HWp, Cp), 0)
    if (W & (W - 1)) == 0:                     # power-of-two fast path
        h_idx = row >> (W.bit_length() - 1)
        w_idx = row & (W - 1)
    else:
        h_idx = row // W
        w_idx = row - (row // W) * W

    def tap(xf, dy, dx):
        """xf shifted by (dy-1, dx-1) rows/cols, zeroed outside the image."""
        off = (dy - 1) * W + (dx - 1)
        if off == 0:
            xs = xf
        elif off > 0:
            xs = jnp.concatenate(
                [xf[off:, :], jnp.zeros((off, Cp), xf.dtype)], axis=0)
        else:
            xs = jnp.concatenate(
                [jnp.zeros((-off, Cp), xf.dtype), xf[:off, :]], axis=0)
        hh = h_idx + (dy - 1)
        ww = w_idx + (dx - 1)
        valid = (hh >= 0) & (hh < H) & (ww >= 0) & (ww < W) & (row < HW)
        return jnp.where(valid, xs, 0.0).astype(jnp.bfloat16)

    # conv_3: 3x3 conv + bias, no ReLU.
    acc = jnp.zeros((HWp, Cp), jnp.float32)
    t = 0
    for dy in range(3):
        for dx in range(3):
            acc = acc + jnp.dot(tap(x, dy, dx), w3c_ref[t],
                                preferred_element_type=jnp.float32)
            t += 1
    x = acc + b3_ref[...]

    # ResidualStack: x = x + conv1x1(relu(conv3x3(relu(x)))); final ReLU fused.
    for li in range(n_layers):
        xr = jnp.maximum(x, 0.0)
        hacc = jnp.zeros((HWp, Rp), jnp.float32)
        t = 0
        for dy in range(3):
            for dx in range(3):
                hacc = hacc + jnp.dot(tap(xr, dy, dx), wr3_ref[li, t],
                                      preferred_element_type=jnp.float32)
                t += 1
        hb = jnp.maximum(hacc, 0.0).astype(jnp.bfloat16)
        x = x + jnp.dot(hb, wr1_ref[li], preferred_element_type=jnp.float32)

    o_ref[0] = jnp.maximum(x, 0.0)


# ----------------------------- pallas_call wrappers --------------------------
_TM_MAX = 1024  # rows per M-tile for the standalone convs.


def _m_tiling(M):
    # >=2 parallel grid steps whenever possible (v7x: 2 TCs), TM % 16 == 0
    # (bf16 sublane packing), capped at 1024 to amortize per-step overhead
    # while staying far under VMEM limits on all generations.
    half = -(-M // 2)
    TM = min(_TM_MAX, _round_up(max(half, 16), 16))
    Mp = _round_up(M, TM)
    return TM, Mp


def conv_mm(patches, w_mat, bias, *, relu_out, out_dtype=jnp.bfloat16):
    """maybe_relu(patches @ w_mat + bias), tiled over rows of `patches`."""
    M, K = patches.shape
    N = w_mat.shape[1]
    Kp = _round_up(K, 128)
    Np = _round_up(N, 128)
    TM, Mp = _m_tiling(M)

    x = patches.astype(jnp.bfloat16)
    if (Mp, Kp) != (M, K):
        x = jnp.pad(x, ((0, Mp - M), (0, Kp - K)))
    w = jnp.pad(w_mat, ((0, Kp - K), (0, Np - N))).astype(jnp.bfloat16)
    b = jnp.pad(bias.reshape(1, N).astype(jnp.float32), ((0, 0), (0, Np - N)))

    out = pl.pallas_call(
        functools.partial(_conv_bias_kernel, relu_out=relu_out),
        grid=(Mp // TM,),
        in_specs=[
            pl.BlockSpec((TM, Kp), lambda i: (i, 0)),
            pl.BlockSpec((Kp, Np), lambda i: (0, 0)),
            pl.BlockSpec((1, Np), lambda i: (0, 0)),
        ],
        out_specs=pl.BlockSpec((TM, Np), lambda i: (i, 0)),
        out_shape=jax.ShapeDtypeStruct((Mp, Np), out_dtype),
        compiler_params=pltpu.CompilerParams(dimension_semantics=("parallel",)),
    )(x, w, b)
    return out[:M, :N]


def fused_conv3_residual_stack(x_nhwc, w3, b3, res_params):
    """x_nhwc: (B,H,W,C) bf16 (relu'd conv_2 output) -> f32 (B,H,W,C)."""
    B, H, W, C = x_nhwc.shape
    HW = H * W
    HWp = _round_up(HW, 16)
    Cp = _round_up(C, 128)
    L = len(res_params)
    R = res_params[0][0].shape[0]
    Rp = _round_up(R, 128)

    xin = x_nhwc.reshape(B, HW, C).astype(jnp.bfloat16)
    if (HWp, Cp) != (HW, C):
        xin = jnp.pad(xin, ((0, 0), (0, HWp - HW), (0, Cp - C)))

    def per_tap(w):  # (Cout, Cin, 3, 3) -> (9, Cin, Cout)
        return jnp.stack([w[:, :, dy, dx].T
                          for dy in range(3) for dx in range(3)], axis=0)

    w3c = jnp.pad(per_tap(w3),
                  ((0, 0), (0, Cp - C), (0, Cp - C))).astype(jnp.bfloat16)
    b3p = jnp.pad(b3.reshape(1, C).astype(jnp.float32), ((0, 0), (0, Cp - C)))
    wr3 = jnp.stack([per_tap(wl3) for (wl3, _) in res_params], axis=0)       # (L,9,C,R)
    wr3 = jnp.pad(wr3, ((0, 0), (0, 0), (0, Cp - C), (0, Rp - R))).astype(jnp.bfloat16)
    wr1 = jnp.stack([wl1[:, :, 0, 0].T for (_, wl1) in res_params], axis=0)  # (L,R,C)
    wr1 = jnp.pad(wr1, ((0, 0), (0, Rp - R), (0, Cp - C))).astype(jnp.bfloat16)

    out = pl.pallas_call(
        functools.partial(_conv3_residual_stack_kernel,
                          H=H, W=W, HW=HW, n_layers=L),
        grid=(B,),
        in_specs=[
            pl.BlockSpec((1, HWp, Cp), lambda b: (b, 0, 0)),
            pl.BlockSpec((1, Cp), lambda b: (0, 0)),
            pl.BlockSpec((9, Cp, Cp), lambda b: (0, 0, 0)),
            pl.BlockSpec((L, 9, Cp, Rp), lambda b: (0, 0, 0, 0)),
            pl.BlockSpec((L, Rp, Cp), lambda b: (0, 0, 0)),
        ],
        out_specs=pl.BlockSpec((1, HWp, Cp), lambda b: (b, 0, 0)),
        out_shape=jax.ShapeDtypeStruct((B, HWp, Cp), jnp.float32),
        compiler_params=pltpu.CompilerParams(dimension_semantics=("parallel",)),
    )(xin, b3p, w3c, wr3, wr1)

    return out[:, :HW, :C].reshape(B, H, W, C)


# ----------------------------- JAX-side glue ---------------------------------
def im2col_nhwc(x, kh, kw, stride, pad):
    """x: (B,H,W,C) -> patches (B*Ho*Wo, C*kh*kw), ordering (C, kh, kw)."""
    B, H, W, C = x.shape
    xp = jnp.pad(x, ((0, 0), (pad, pad), (pad, pad), (0, 0)))
    Ho = (H + 2 * pad - kh) // stride + 1
    Wo = (W + 2 * pad - kw) // stride + 1
    cols = []
    for i in range(kh):
        for j in range(kw):
            cols.append(xp[:, i:i + stride * Ho:stride, j:j + stride * Wo:stride, :])
    col = jnp.stack(cols, axis=0).reshape(kh, kw, B, Ho, Wo, C)
    col = col.transpose(2, 3, 4, 5, 0, 1)  # (B, Ho, Wo, C, kh, kw)
    return col.reshape(B * Ho * Wo, C * kh * kw), Ho, Wo


def encoder_forward(x_nchw, params):
    """Exact semantics of Encoder.forward (NCHW in / NCHW out)."""
    B = x_nchw.shape[0]
    x = jnp.transpose(x_nchw, (0, 2, 3, 1)).astype(jnp.bfloat16)  # NHWC bf16

    def run_conv(x, w, b, k, stride, pad):
        patches, Ho, Wo = im2col_nhwc(x, k, k, stride, pad)
        Cout = w.shape[0]
        w_mat = w.reshape(Cout, -1).T  # (Cin*kh*kw, Cout), matches im2col order
        y = conv_mm(patches, w_mat, b, relu_out=True, out_dtype=jnp.bfloat16)
        return y.reshape(B, Ho, Wo, Cout)

    x = run_conv(x, params['w1'], params['b1'], 4, 2, 1)   # conv_1 + ReLU
    x = run_conv(x, params['w2'], params['b2'], 4, 2, 1)   # conv_2 + ReLU
    # conv_3 + full ResidualStack (+ final ReLU) fused in one kernel.
    y = fused_conv3_residual_stack(x, params['w3'], params['b3'], params['res'])
    return jnp.transpose(y, (0, 3, 1, 2))  # -> NCHW


# ---------------- pure-JAX reference (same bf16-operand numerics) -----------
def encoder_ref(x, params):
    def conv(x, w, b, stride, pad):
        y = jax.lax.conv_general_dilated(
            x.astype(jnp.bfloat16), w.astype(jnp.bfloat16),
            (stride, stride), ((pad, pad), (pad, pad)),
            dimension_numbers=('NCHW', 'OIHW', 'NCHW'),
            preferred_element_type=jnp.float32)
        if b is not None:
            y = y + b[None, :, None, None].astype(jnp.float32)
        return y

    x = x.astype(jnp.float32)
    x = jax.nn.relu(conv(x, params['w1'], params['b1'], 2, 1))
    x = jax.nn.relu(conv(x, params['w2'], params['b2'], 2, 1))
    x = conv(x, params['w3'], params['b3'], 1, 1)
    for (w3, w1) in params['res']:
        h = conv(jax.nn.relu(x), w3, None, 1, 1)
        h = conv(jax.nn.relu(h), w1, None, 1, 0)
        x = x + h
    return jax.nn.relu(x)


def init_params(key, in_channels, num_hiddens, num_residual_layers, num_residual_hiddens):
    keys = jax.random.split(key, 6 + 2 * num_residual_layers)
    s = 0.1
    nh2 = num_hiddens // 2
    params = {
        'w1': s * jax.random.normal(keys[0], (nh2, in_channels, 4, 4), jnp.float32),
        'b1': s * jax.random.normal(keys[1], (nh2,), jnp.float32),
        'w2': s * jax.random.normal(keys[2], (num_hiddens, nh2, 4, 4), jnp.float32),
        'b2': s * jax.random.normal(keys[3], (num_hiddens,), jnp.float32),
        'w3': s * jax.random.normal(keys[4], (num_hiddens, num_hiddens, 3, 3), jnp.float32),
        'b3': s * jax.random.normal(keys[5], (num_hiddens,), jnp.float32),
        'res': [],
    }
    for li in range(num_residual_layers):
        k3 = keys[6 + 2 * li]
        k1 = keys[7 + 2 * li]
        w3 = s * jax.random.normal(k3, (num_residual_hiddens, num_hiddens, 3, 3), jnp.float32)
        w1 = s * jax.random.normal(k1, (num_hiddens, num_residual_hiddens, 1, 1), jnp.float32)
        params['res'].append((w3, w1))
    return params


if __name__ == "__main__":
    B, C_in, HW = 2, 4, 16
    num_hiddens, num_residual_layers, num_residual_hiddens = 32, 2, 8

    key = jax.random.PRNGKey(0)
    kx, kp = jax.random.split(key)
    x = jax.random.normal(kx, (B, C_in, HW, HW), jnp.float32)
    params = init_params(kp, C_in, num_hiddens, num_residual_layers, num_residual_hiddens)

    fwd = jax.jit(encoder_forward)
    out = jax.block_until_ready(fwd(x, params))

    ref = jax.block_until_ready(encoder_ref(x, params))
    assert out.shape == (B, num_hiddens, HW // 4, HW // 4), out.shape
    assert jnp.allclose(out, ref, atol=2e-3, rtol=2e-3), float(jnp.max(jnp.abs(out - ref)))

    print("KERNEL_OK")
</pallas_src>

<mosaic_0001>
module attributes {stable_mosaic.version = 11 : i64} {
  func.func @_conv_bias_kernel(%arg0: i32, %arg1: memref<64x128xbf16, #tpu.memory_space<vmem>>, %arg2: memref<128x128xbf16, #tpu.memory_space<vmem>>, %arg3: memref<1x128xf32, #tpu.memory_space<vmem>>, %arg4: memref<64x128xbf16, #tpu.memory_space<vmem>>) attributes {dimension_semantics = [#tpu.dimension_semantics<parallel>], iteration_bounds = array<i64: 2>, scalar_prefetch = 0 : i64, scratch_operands = 0 : i64, tpu.core_type = #tpu.core_type<tc>, window_params = [{transform_indices = @transform_0, window_bounds = array<i64: 64, 128>}, {pipeline_mode = #tpu.pipeline_mode<synchronous>, transform_indices = @transform_1, window_bounds = array<i64: 128, 128>}, {pipeline_mode = #tpu.pipeline_mode<synchronous>, transform_indices = @transform_2, window_bounds = array<i64: 1, 128>}, {transform_indices = @transform_3, window_bounds = array<i64: 64, 128>}]} {
    %c0 = arith.constant 0 : index
    %c0_0 = arith.constant 0 : index
    %0 = vector.load %arg1[%c0, %c0_0] : memref<64x128xbf16, #tpu.memory_space<vmem>>, vector<64x128xbf16>
    %c0_1 = arith.constant 0 : index
    %c0_2 = arith.constant 0 : index
    %1 = vector.load %arg2[%c0_1, %c0_2] : memref<128x128xbf16, #tpu.memory_space<vmem>>, vector<128x128xbf16>
    %cst = arith.constant dense<0.000000e+00> : vector<64x128xf32>
    %2 = tpu.matmul %0, %1, %cst {dimension_numbers = #tpu.dot_dimension_numbers<[1], [0], [0], [1], [0, 0, 1, 1], [], []>} : vector<64x128xbf16>, vector<128x128xbf16>, vector<64x128xf32> -> vector<64x128xf32>
    %c0_3 = arith.constant 0 : index
    %c0_4 = arith.constant 0 : index
    %3 = vector.load %arg3[%c0_3, %c0_4] : memref<1x128xf32, #tpu.memory_space<vmem>>, vector<1x128xf32>
    %4 = vector.broadcast %3 : vector<1x128xf32> to vector<64x128xf32>
    %5 = arith.addf %2, %4 : vector<64x128xf32>
    %cst_5 = arith.constant 0.000000e+00 : f32
    %6 = vector.broadcast %cst_5 : f32 to vector<64x128xf32>
    %7 = arith.maximumf %5, %6 : vector<64x128xf32>
    %8 = arith.truncf %7 : vector<64x128xf32> to vector<64x128xbf16>
    %c0_6 = arith.constant 0 : index
    %c0_7 = arith.constant 0 : index
    %9 = vector.load %arg4[%c0_6, %c0_7] : memref<64x128xbf16, #tpu.memory_space<vmem>>, vector<64x128xbf16>
    tpu.vector_store %arg4[%c0_6, %c0_7], %8 {strides = array<i32>} : memref<64x128xbf16, #tpu.memory_space<vmem>>, vector<64x128xbf16>,
    return
  }
  func.func @transform_0(%arg0: i32) -> (i32, i32) {
    %c0_i32 = arith.constant 0 : i32
    %c0_i32_0 = arith.constant 0 : i32
    return %arg0, %c0_i32 : i32, i32
  }
  func.func @transform_1(%arg0: i32) -> (i32, i32) {
    %c0_i32 = arith.constant 0 : i32
    %c0_i32_0 = arith.constant 0 : i32
    %c0_i32_1 = arith.constant 0 : i32
    return %c0_i32, %c0_i32_0 : i32, i32
  }
  func.func @transform_2(%arg0: i32) -> (i32, i32) {
    %c0_i32 = arith.constant 0 : i32
    %c0_i32_0 = arith.constant 0 : i32
    %c0_i32_1 = arith.constant 0 : i32
    return %c0_i32, %c0_i32_0 : i32, i32
  }
  func.func @transform_3(%arg0: i32) -> (i32, i32) {
    %c0_i32 = arith.constant 0 : i32
    %c0_i32_0 = arith.constant 0 : i32
    return %arg0, %c0_i32 : i32, i32
  }
}

module attributes {stable_mosaic.version = 11 : i64} {
  func.func @_conv_bias_kernel(%arg0: i32, %arg1: memref<16x256xbf16, #tpu.memory_space<vmem>>, %arg2: memref<256x128xbf16, #tpu.memory_space<vmem>>, %arg3: memref<1x128xf32, #tpu.memory_space<vmem>>, %arg4: memref<16x128xbf16, #tpu.memory_space<vmem>>) attributes {dimension_semantics = [#tpu.dimension_semantics<parallel>], iteration_bounds = array<i64: 2>, scalar_prefetch = 0 : i64, scratch_operands = 0 : i64, tpu.core_type = #tpu.core_type<tc>, window_params = [{transform_indices = @transform_0, window_bounds = array<i64: 16, 256>}, {pipeline_mode = #tpu.pipeline_mode<synchronous>, transform_indices = @transform_1, window_bounds = array<i64: 256, 128>}, {pipeline_mode = #tpu.pipeline_mode<synchronous>, transform_indices = @transform_2, window_bounds = array<i64: 1, 128>}, {transform_indices = @transform_3, window_bounds = array<i64: 16, 128>}]} {
    %c0 = arith.constant 0 : index
    %c0_0 = arith.constant 0 : index
    %0 = vector.load %arg1[%c0, %c0_0] : memref<16x256xbf16, #tpu.memory_space<vmem>>, vector<16x256xbf16>
    %c0_1 = arith.constant 0 : index
    %c0_2 = arith.constant 0 : index
    %1 = vector.load %arg2[%c0_1, %c0_2] : memref<256x128xbf16, #tpu.memory_space<vmem>>, vector<256x128xbf16>
    %cst = arith.constant dense<0.000000e+00> : vector<16x128xf32>
    %2 = tpu.matmul %0, %1, %cst {dimension_numbers = #tpu.dot_dimension_numbers<[1], [0], [0], [1], [0, 0, 1, 1], [], []>} : vector<16x256xbf16>, vector<256x128xbf16>, vector<16x128xf32> -> vector<16x128xf32>
    %c0_3 = arith.constant 0 : index
    %c0_4 = arith.constant 0 : index
    %3 = vector.load %arg3[%c0_3, %c0_4] : memref<1x128xf32, #tpu.memory_space<vmem>>, vector<1x128xf32>
    %4 = vector.broadcast %3 : vector<1x128xf32> to vector<16x128xf32>
    %5 = arith.addf %2, %4 : vector<16x128xf32>
    %cst_5 = arith.constant 0.000000e+00 : f32
    %6 = vector.broadcast %cst_5 : f32 to vector<16x128xf32>
    %7 = arith.maximumf %5, %6 : vector<16x128xf32>
    %8 = arith.truncf %7 : vector<16x128xf32> to vector<16x128xbf16>
    %c0_6 = arith.constant 0 : index
    %c0_7 = arith.constant 0 : index
    %9 = vector.load %arg4[%c0_6, %c0_7] : memref<16x128xbf16, #tpu.memory_space<vmem>>, vector<16x128xbf16>
    tpu.vector_store %arg4[%c0_6, %c0_7], %8 {strides = array<i32>} : memref<16x128xbf16, #tpu.memory_space<vmem>>, vector<16x128xbf16>,
    return
  }
  func.func @transform_0(%arg0: i32) -> (i32, i32) {
    %c0_i32 = arith.constant 0 : i32
    %c0_i32_0 = arith.constant 0 : i32
    return %arg0, %c0_i32 : i32, i32
  }
  func.func @transform_1(%arg0: i32) -> (i32, i32) {
    %c0_i32 = arith.constant 0 : i32
    %c0_i32_0 = arith.constant 0 : i32
    %c0_i32_1 = arith.constant 0 : i32
    return %c0_i32, %c0_i32_0 : i32, i32
  }
  func.func @transform_2(%arg0: i32) -> (i32, i32) {
    %c0_i32 = arith.constant 0 : i32
    %c0_i32_0 = arith.constant 0 : i32
    %c0_i32_1 = arith.constant 0 : i32
    return %c0_i32, %c0_i32_0 : i32, i32
  }
  func.func @transform_3(%arg0: i32) -> (i32, i32) {
    %c0_i32 = arith.constant 0 : i32
    %c0_i32_0 = arith.constant 0 : i32
    return %arg0, %c0_i32 : i32, i32
  }
}

module attributes {stable_mosaic.version = 11 : i64} {
  func.func @_conv3_residual_stack_kernel(%arg0: i32, %arg1: memref<1x16x128xbf16, #tpu.memory_space<vmem>>, %arg2: memref<1x128xf32, #tpu.memory_space<vmem>>, %arg3: memref<9x128x128xbf16, #tpu.memory_space<vmem>>, %arg4: memref<2x9x128x128xbf16, #tpu.memory_space<vmem>>, %arg5: memref<2x128x128xbf16, #tpu.memory_space<vmem>>, %arg6: memref<1x16x128xf32, #tpu.memory_space<vmem>>) attributes {dimension_semantics = [#tpu.dimension_semantics<parallel>], iteration_bounds = array<i64: 2>, scalar_prefetch = 0 : i64, scratch_operands = 0 : i64, tpu.core_type = #tpu.core_type<tc>, window_params = [{transform_indices = @transform_0, window_bounds = array<i64: 1, 16, 128>}, {pipeline_mode = #tpu.pipeline_mode<synchronous>, transform_indices = @transform_1, window_bounds = array<i64: 1, 128>}, {pipeline_mode = #tpu.pipeline_mode<synchronous>, transform_indices = @transform_2, window_bounds = array<i64: 9, 128, 128>}, {pipeline_mode = #tpu.pipeline_mode<synchronous>, transform_indices = @transform_3, window_bounds = array<i64: 2, 9, 128, 128>}, {pipeline_mode = #tpu.pipeline_mode<synchronous>, transform_indices = @transform_4, window_bounds = array<i64: 2, 128, 128>}, {transform_indices = @transform_5, window_bounds = array<i64: 1, 16, 128>}]} {
    %c0 = arith.constant 0 : index
    %c0_0 = arith.constant 0 : index
    %c0_1 = arith.constant 0 : index
    %0 = vector.load %arg1[%c0, %c0_0, %c0_1] : memref<1x16x128xbf16, #tpu.memory_space<vmem>>, vector<1x16x128xbf16>
    %1 = vector.shape_cast %0 : vector<1x16x128xbf16> to vector<16x128xbf16>
    %2 = arith.extf %1 : vector<16x128xbf16> to vector<16x128xf32>
    %3 = tpu.iota {dimensions = array<i32: 0>} : vector<16x128xi32>
    %c2_i32 = arith.constant 2 : i32
    %4 = vector.broadcast %c2_i32 : i32 to vector<16x128xi32>
    %5 = arith.shrsi %3, %4 : vector<16x128xi32>
    %c3_i32 = arith.constant 3 : i32
    %6 = vector.broadcast %c3_i32 : i32 to vector<16x128xi32>
    %7 = arith.andi %3, %6 : vector<16x128xi32>
    %cst = arith.constant 0.000000e+00 : f32
    %8 = vector.broadcast %cst : f32 to vector<16x128xf32>
    %cst_2 = arith.constant 0.000000e+00 : f32
    %9 = vector.broadcast %cst_2 : f32 to vector<5x128xf32>
    %10 = vector.extract_strided_slice %2 {offsets = [0, 0], sizes = [11, 128], strides = [1, 1]} : vector<16x128xf32> to vector<11x128xf32>
    %11 = tpu.concatenate %9, %10 in 0 : vector<5x128xf32>, vector<11x128xf32> -> vector<16x128xf32>
    %c-1_i32 = arith.constant -1 : i32
    %12 = vector.broadcast %c-1_i32 : i32 to vector<16x128xi32>
    %13 = arith.addi %5, %12 : vector<16x128xi32>
    %c-1_i32_3 = arith.constant -1 : i32
    %14 = vector.broadcast %c-1_i32_3 : i32 to vector<16x128xi32>
    %15 = arith.addi %7, %14 : vector<16x128xi32>
    %c0_i32 = arith.constant 0 : i32
    %16 = vector.broadcast %c0_i32 : i32 to vector<16x128xi32>
    %17 = arith.cmpi sge, %13, %16 : vector<16x128xi32>
    %c4_i32 = arith.constant 4 : i32
    %18 = vector.broadcast %c4_i32 : i32 to vector<16x128xi32>
    %19 = arith.cmpi slt, %13, %18 : vector<16x128xi32>
    %20 = arith.andi %17, %19 : vector<16x128xi1>
    %c0_i32_4 = arith.constant 0 : i32
    %21 = vector.broadcast %c0_i32_4 : i32 to vector<16x128xi32>
    %22 = arith.cmpi sge, %15, %21 : vector<16x128xi32>
    %23 = arith.andi %20, %22 : vector<16x128xi1>
    %c4_i32_5 = arith.constant 4 : i32
    %24 = vector.broadcast %c4_i32_5 : i32 to vector<16x128xi32>
    %25 = arith.cmpi slt, %15, %24 : vector<16x128xi32>
    %26 = arith.andi %23, %25 : vector<16x128xi1>
    %c16_i32 = arith.constant 16 : i32
    %27 = vector.broadcast %c16_i32 : i32 to vector<16x128xi32>
    %28 = arith.cmpi slt, %3, %27 : vector<16x128xi32>
    %29 = arith.andi %26, %28 : vector<16x128xi1>
    %cst_6 = arith.constant 0.000000e+00 : f32
    %30 = vector.broadcast %cst_6 : f32 to vector<16x128xf32>
    %31 = arith.select %29, %11, %30 : vector<16x128xi1>, vector<16x128xf32>
    %32 = arith.truncf %31 : vector<16x128xf32> to vector<16x128xbf16>
    %c0_7 = arith.constant 0 : index
    %c0_8 = arith.constant 0 : index
    %c0_9 = arith.constant 0 : index
    %33 = vector.load %arg3[%c0_7, %c0_8, %c0_9] : memref<9x128x128xbf16, #tpu.memory_space<vmem>>, vector<1x128x128xbf16>
    %34 = vector.shape_cast %33 : vector<1x128x128xbf16> to vector<128x128xbf16>
    %cst_10 = arith.constant dense<0.000000e+00> : vector<16x128xf32>
    %35 = tpu.matmul %32, %34, %cst_10 {dimension_numbers = #tpu.dot_dimension_numbers<[1], [0], [0], [1], [0, 0, 1, 1], [], []>} : vector<16x128xbf16>, vector<128x128xbf16>, vector<16x128xf32> -> vector<16x128xf32>
    %36 = arith.addf %8, %35 : vector<16x128xf32>
    %cst_11 = arith.constant 0.000000e+00 : f32
    %37 = vector.broadcast %cst_11 : f32 to vector<4x128xf32>
    %38 = vector.extract_strided_slice %2 {offsets = [0, 0], sizes = [12, 128], strides = [1, 1]} : vector<16x128xf32> to vector<12x128xf32>
    %39 = tpu.concatenate %37, %38 in 0 : vector<4x128xf32>, vector<12x128xf32> -> vector<16x128xf32>
    %c-1_i32_12 = arith.constant -1 : i32
    %40 = vector.broadcast %c-1_i32_12 : i32 to vector<16x128xi32>
    %41 = arith.addi %5, %40 : vector<16x128xi32>
    %c0_i32_13 = arith.constant 0 : i32
    %42 = vector.broadcast %c0_i32_13 : i32 to vector<16x128xi32>
    %43 = arith.addi %7, %42 : vector<16x128xi32>
    %c0_i32_14 = arith.constant 0 : i32
    %44 = vector.broadcast %c0_i32_14 : i32 to vector<16x128xi32>
    %45 = arith.cmpi sge, %41, %44 : vector<16x128xi32>
    %c4_i32_15 = arith.constant 4 : i32
    %46 = vector.broadcast %c4_i32_15 : i32 to vector<16x128xi32>
    %47 = arith.cmpi slt, %41, %46 : vector<16x128xi32>
    %48 = arith.andi %45, %47 : vector<16x128xi1>
    %c0_i32_16 = arith.constant 0 : i32
    %49 = vector.broadcast %c0_i32_16 : i32 to vector<16x128xi32>
    %50 = arith.cmpi sge, %43, %49 : vector<16x128xi32>
    %51 = arith.andi %48, %50 : vector<16x128xi1>
    %c4_i32_17 = arith.constant 4 : i32
    %52 = vector.broadcast %c4_i32_17 : i32 to vector<16x128xi32>
    %53 = arith.cmpi slt, %43, %52 : vector<16x128xi32>
    %54 = arith.andi %51, %53 : vector<16x128xi1>
    %c16_i32_18 = arith.constant 16 : i32
    %55 = vector.broadcast %c16_i32_18 : i32 to vector<16x128xi32>
    %56 = arith.cmpi slt, %3, %55 : vector<16x128xi32>
    %57 = arith.andi %54, %56 : vector<16x128xi1>
    %cst_19 = arith.constant 0.000000e+00 : f32
    %58 = vector.broadcast %cst_19 : f32 to vector<16x128xf32>
    %59 = arith.select %57, %39, %58 : vector<16x128xi1>, vector<16x128xf32>
    %60 = arith.truncf %59 : vector<16x128xf32> to vector<16x128xbf16>
    %c1 = arith.constant 1 : index
    %c0_20 = arith.constant 0 : index
    %c0_21 = arith.constant 0 : index
    %61 = vector.load %arg3[%c1, %c0_20, %c0_21] : memref<9x128x128xbf16, #tpu.memory_space<vmem>>, vector<1x128x128xbf16>
    %62 = vector.shape_cast %61 : vector<1x128x128xbf16> to vector<128x128xbf16>
    %cst_22 = arith.constant dense<0.000000e+00> : vector<16x128xf32>
    %63 = tpu.matmul %60, %62, %cst_22 {dimension_numbers = #tpu.dot_dimension_numbers<[1], [0], [0], [1], [0, 0, 1, 1], [], []>} : vector<16x128xbf16>, vector<128x128xbf16>, vector<16x128xf32> -> vector<16x128xf32>
    %64 = arith.addf %36, %63 : vector<16x128xf32>
    %cst_23 = arith.constant 0.000000e+00 : f32
    %65 = vector.broadcast %cst_23 : f32 to vector<3x128xf32>
    %66 = vector.extract_strided_slice %2 {offsets = [0, 0], sizes = [13, 128], strides = [1, 1]} : vector<16x128xf32> to vector<13x128xf32>
    %67 = tpu.concatenate %65, %66 in 0 : vector<3x128xf32>, vector<13x128xf32> -> vector<16x128xf32>
    %c-1_i32_24 = arith.constant -1 : i32
    %68 = vector.broadcast %c-1_i32_24 : i32 to vector<16x128xi32>
    %69 = arith.addi %5, %68 : vector<16x128xi32>
    %c1_i32 = arith.constant 1 : i32
    %70 = vector.broadcast %c1_i32 : i32 to vector<16x128xi32>
    %71 = arith.addi %7, %70 : vector<16x128xi32>
    %c0_i32_25 = arith.constant 0 : i32
    %72 = vector.broadcast %c0_i32_25 : i32 to vector<16x128xi32>
    %73 = arith.cmpi sge, %69, %72 : vector<16x128xi32>
    %c4_i32_26 = arith.constant 4 : i32
    %74 = vector.broadcast %c4_i32_26 : i32 to vector<16x128xi32>
    %75 = arith.cmpi slt, %69, %74 : vector<16x128xi32>
    %76 = arith.andi %73, %75 : vector<16x128xi1>
    %c0_i32_27 = arith.constant 0 : i32
    %77 = vector.broadcast %c0_i32_27 : i32 to vector<16x128xi32>
    %78 = arith.cmpi sge, %71, %77 : vector<16x128xi32>
    %79 = arith.andi %76, %78 : vector<16x128xi1>
    %c4_i32_28 = arith.constant 4 : i32
    %80 = vector.broadcast %c4_i32_28 : i32 to vector<16x128xi32>
    %81 = arith.cmpi slt, %71, %80 : vector<16x128xi32>
    %82 = arith.andi %79, %81 : vector<16x128xi1>
    %c16_i32_29 = arith.constant 16 : i32
    %83 = vector.broadcast %c16_i32_29 : i32 to vector<16x128xi32>
    %84 = arith.cmpi slt, %3, %83 : vector<16x128xi32>
    %85 = arith.andi %82, %84 : vector<16x128xi1>
    %cst_30 = arith.constant 0.000000e+00 : f32
    %86 = vector.broadcast %cst_30 : f32 to vector<16x128xf32>
    %87 = arith.select %85, %67, %86 : vector<16x128xi1>, vector<16x128xf32>
    %88 = arith.truncf %87 : vector<16x128xf32> to vector<16x128xbf16>
    %c2 = arith.constant 2 : index
    %c0_31 = arith.constant 0 : index
    %c0_32 = arith.constant 0 : index
    %89 = vector.load %arg3[%c2, %c0_31, %c0_32] : memref<9x128x128xbf16, #tpu.memory_space<vmem>>, vector<1x128x128xbf16>
    %90 = vector.shape_cast %89 : vector<1x128x128xbf16> to vector<128x128xbf16>
    %cst_33 = arith.constant dense<0.000000e+00> : vector<16x128xf32>
    %91 = tpu.matmul %88, %90, %cst_33 {dimension_numbers = #tpu.dot_dimension_numbers<[1], [0], [0], [1], [0, 0, 1, 1], [], []>} : vector<16x128xbf16>, vector<128x128xbf16>, vector<16x128xf32> -> vector<16x128xf32>
    %92 = arith.addf %64, %91 : vector<16x128xf32>
    %cst_34 = arith.constant 0.000000e+00 : f32
    %93 = vector.broadcast %cst_34 : f32 to vector<1x128xf32>
    %94 = vector.extract_strided_slice %2 {offsets = [0, 0], sizes = [15, 128], strides = [1, 1]} : vector<16x128xf32> to vector<15x128xf32>
    %95 = tpu.concatenate %93, %94 in 0 : vector<1x128xf32>, vector<15x128xf32> -> vector<16x128xf32>
    %c0_i32_35 = arith.constant 0 : i32
    %96 = vector.broadcast %c0_i32_35 : i32 to vector<16x128xi32>
    %97 = arith.addi %5, %96 : vector<16x128xi32>
    %c-1_i32_36 = arith.constant -1 : i32
    %98 = vector.broadcast %c-1_i32_36 : i32 to vector<16x128xi32>
    %99 = arith.addi %7, %98 : vector<16x128xi32>
    %c0_i32_37 = arith.constant 0 : i32
    %100 = vector.broadcast %c0_i32_37 : i32 to vector<16x128xi32>
    %101 = arith.cmpi sge, %97, %100 : vector<16x128xi32>
    %c4_i32_38 = arith.constant 4 : i32
    %102 = vector.broadcast %c4_i32_38 : i32 to vector<16x128xi32>
    %103 = arith.cmpi slt, %97, %102 : vector<16x128xi32>
    %104 = arith.andi %101, %103 : vector<16x128xi1>
    %c0_i32_39 = arith.constant 0 : i32
    %105 = vector.broadcast %c0_i32_39 : i32 to vector<16x128xi32>
    %106 = arith.cmpi sge, %99, %105 : vector<16x128xi32>
    %107 = arith.andi %104, %106 : vector<16x128xi1>
    %c4_i32_40 = arith.constant 4 : i32
    %108 = vector.broadcast %c4_i32_40 : i32 to vector<16x128xi32>
    %109 = arith.cmpi slt, %99, %108 : vector<16x128xi32>
    %110 = arith.andi %107, %109 : vector<16x128xi1>
    %c16_i32_41 = arith.constant 16 : i32
    %111 = vector.broadcast %c16_i32_41 : i32 to vector<16x128xi32>
    %112 = arith.cmpi slt, %3, %111 : vector<16x128xi32>
    %113 = arith.andi %110, %112 : vector<16x128xi1>
    %cst_42 = arith.constant 0.000000e+00 : f32
    %114 = vector.broadcast %cst_42 : f32 to vector<16x128xf32>
    %115 = arith.select %113, %95, %114 : vector<16x128xi1>, vector<16x128xf32>
    %116 = arith.truncf %115 : vector<16x128xf32> to vector<16x128xbf16>
    %c3 = arith.constant 3 : index
    %c0_43 = arith.constant 0 : index
    %c0_44 = arith.constant 0 : index
    %117 = vector.load %arg3[%c3, %c0_43, %c0_44] : memref<9x128x128xbf16, #tpu.memory_space<vmem>>, vector<1x128x128xbf16>
    %118 = vector.shape_cast %117 : vector<1x128x128xbf16> to vector<128x128xbf16>
    %cst_45 = arith.constant dense<0.000000e+00> : vector<16x128xf32>
    %119 = tpu.matmul %116, %118, %cst_45 {dimension_numbers = #tpu.dot_dimension_numbers<[1], [0], [0], [1], [0, 0, 1, 1], [], []>} : vector<16x128xbf16>, vector<128x128xbf16>, vector<16x128xf32> -> vector<16x128xf32>
    %120 = arith.addf %92, %119 : vector<16x128xf32>
    %c0_i32_46 = arith.constant 0 : i32
    %121 = vector.broadcast %c0_i32_46 : i32 to vector<16x128xi32>
    %122 = arith.addi %5, %121 : vector<16x128xi32>
    %c0_i32_47 = arith.constant 0 : i32
    %123 = vector.broadcast %c0_i32_47 : i32 to vector<16x128xi32>
    %124 = arith.addi %7, %123 : vector<16x128xi32>
    %c0_i32_48 = arith.constant 0 : i32
    %125 = vector.broadcast %c0_i32_48 : i32 to vector<16x128xi32>
    %126 = arith.cmpi sge, %122, %125 : vector<16x128xi32>
    %c4_i32_49 = arith.constant 4 : i32
    %127 = vector.broadcast %c4_i32_49 : i32 to vector<16x128xi32>
    %128 = arith.cmpi slt, %122, %127 : vector<16x128xi32>
    %129 = arith.andi %126, %128 : vector<16x128xi1>
    %c0_i32_50 = arith.constant 0 : i32
    %130 = vector.broadcast %c0_i32_50 : i32 to vector<16x128xi32>
    %131 = arith.cmpi sge, %124, %130 : vector<16x128xi32>
    %132 = arith.andi %129, %131 : vector<16x128xi1>
    %c4_i32_51 = arith.constant 4 : i32
    %133 = vector.broadcast %c4_i32_51 : i32 to vector<16x128xi32>
    %134 = arith.cmpi slt, %124, %133 : vector<16x128xi32>
    %135 = arith.andi %132, %134 : vector<16x128xi1>
    %c16_i32_52 = arith.constant 16 : i32
    %136 = vector.broadcast %c16_i32_52 : i32 to vector<16x128xi32>
    %137 = arith.cmpi slt, %3, %136 : vector<16x128xi32>
    %138 = arith.andi %135, %137 : vector<16x128xi1>
    %cst_53 = arith.constant 0.000000e+00 : f32
    %139 = vector.broadcast %cst_53 : f32 to vector<16x128xf32>
    %140 = arith.select %138, %2, %139 : vector<16x128xi1>, vector<16x128xf32>
    %141 = arith.truncf %140 : vector<16x128xf32> to vector<16x128xbf16>
    %c4 = arith.constant 4 : index
    %c0_54 = arith.constant 0 : index
    %c0_55 = arith.constant 0 : index
    %142 = vector.load %arg3[%c4, %c0_54, %c0_55] : memref<9x128x128xbf16, #tpu.memory_space<vmem>>, vector<1x128x128xbf16>
    %143 = vector.shape_cast %142 : vector<1x128x128xbf16> to vector<128x128xbf16>
    %cst_56 = arith.constant dense<0.000000e+00> : vector<16x128xf32>
    %144 = tpu.matmul %141, %143, %cst_56 {dimension_numbers = #tpu.dot_dimension_numbers<[1], [0], [0], [1], [0, 0, 1, 1], [], []>} : vector<16x128xbf16>, vector<128x128xbf16>, vector<16x128xf32> -> vector<16x128xf32>
    %145 = arith.addf %120, %144 : vector<16x128xf32>
    %146 = vector.extract_strided_slice %2 {offsets = [1, 0], sizes = [15, 128], strides = [1, 1]} : vector<16x128xf32> to vector<15x128xf32>
    %cst_57 = arith.constant 0.000000e+00 : f32
    %147 = vector.broadcast %cst_57 : f32 to vector<1x128xf32>
    %148 = tpu.concatenate %146, %147 in 0 : vector<15x128xf32>, vector<1x128xf32> -> vector<16x128xf32>
    %c0_i32_58 = arith.constant 0 : i32
    %149 = vector.broadcast %c0_i32_58 : i32 to vector<16x128xi32>
    %150 = arith.addi %5, %149 : vector<16x128xi32>
    %c1_i32_59 = arith.constant 1 : i32
    %151 = vector.broadcast %c1_i32_59 : i32 to vector<16x128xi32>
    %152 = arith.addi %7, %151 : vector<16x128xi32>
    %c0_i32_60 = arith.constant 0 : i32
    %153 = vector.broadcast %c0_i32_60 : i32 to vector<16x128xi32>
    %154 = arith.cmpi sge, %150, %153 : vector<16x128xi32>
    %c4_i32_61 = arith.constant 4 : i32
    %155 = vector.broadcast %c4_i32_61 : i32 to vector<16x128xi32>
    %156 = arith.cmpi slt, %150, %155 : vector<16x128xi32>
    %157 = arith.andi %154, %156 : vector<16x128xi1>
    %c0_i32_62 = arith.constant 0 : i32
    %158 = vector.broadcast %c0_i32_62 : i32 to vector<16x128xi32>
    %159 = arith.cmpi sge, %152, %158 : vector<16x128xi32>
    %160 = arith.andi %157, %159 : vector<16x128xi1>
    %c4_i32_63 = arith.constant 4 : i32
    %161 = vector.broadcast %c4_i32_63 : i32 to vector<16x128xi32>
    %162 = arith.cmpi slt, %152, %161 : vector<16x128xi32>
    %163 = arith.andi %160, %162 : vector<16x128xi1>
    %c16_i32_64 = arith.constant 16 : i32
    %164 = vector.broadcast %c16_i32_64 : i32 to vector<16x128xi32>
    %165 = arith.cmpi slt, %3, %164 : vector<16x128xi32>
    %166 = arith.andi %163, %165 : vector<16x128xi1>
    %cst_65 = arith.constant 0.000000e+00 : f32
    %167 = vector.broadcast %cst_65 : f32 to vector<16x128xf32>
    %168 = arith.select %166, %148, %167 : vector<16x128xi1>, vector<16x128xf32>
    %169 = arith.truncf %168 : vector<16x128xf32> to vector<16x128xbf16>
    %c5 = arith.constant 5 : index
    %c0_66 = arith.constant 0 : index
    %c0_67 = arith.constant 0 : index
    %170 = vector.load %arg3[%c5, %c0_66, %c0_67] : memref<9x128x128xbf16, #tpu.memory_space<vmem>>, vector<1x128x128xbf16>
    %171 = vector.shape_cast %170 : vector<1x128x128xbf16> to vector<128x128xbf16>
    %cst_68 = arith.constant dense<0.000000e+00> : vector<16x128xf32>
    %172 = tpu.matmul %169, %171, %cst_68 {dimension_numbers = #tpu.dot_dimension_numbers<[1], [0], [0], [1], [0, 0, 1, 1], [], []>} : vector<16x128xbf16>, vector<128x128xbf16>, vector<16x128xf32> -> vector<16x128xf32>
    %173 = arith.addf %145, %172 : vector<16x128xf32>
    %174 = vector.extract_strided_slice %2 {offsets = [3, 0], sizes = [13, 128], strides = [1, 1]} : vector<16x128xf32> to vector<13x128xf32>
    %cst_69 = arith.constant 0.000000e+00 : f32
    %175 = vector.broadcast %cst_69 : f32 to vector<3x128xf32>
    %176 = tpu.concatenate %174, %175 in 0 : vector<13x128xf32>, vector<3x128xf32> -> vector<16x128xf32>
    %c1_i32_70 = arith.constant 1 : i32
    %177 = vector.broadcast %c1_i32_70 : i32 to vector<16x128xi32>
    %178 = arith.addi %5, %177 : vector<16x128xi32>
    %c-1_i32_71 = arith.constant -1 : i32
    %179 = vector.broadcast %c-1_i32_71 : i32 to vector<16x128xi32>
    %180 = arith.addi %7, %179 : vector<16x128xi32>
    %c0_i32_72 = arith.constant 0 : i32
    %181 = vector.broadcast %c0_i32_72 : i32 to vector<16x128xi32>
    %182 = arith.cmpi sge, %178, %181 : vector<16x128xi32>
    %c4_i32_73 = arith.constant 4 : i32
    %183 = vector.broadcast %c4_i32_73 : i32 to vector<16x128xi32>
    %184 = arith.cmpi slt, %178, %183 : vector<16x128xi32>
    %185 = arith.andi %182, %184 : vector<16x128xi1>
    %c0_i32_74 = arith.constant 0 : i32
    %186 = vector.broadcast %c0_i32_74 : i32 to vector<16x128xi32>
    %187 = arith.cmpi sge, %180, %186 : vector<16x128xi32>
    %188 = arith.andi %185, %187 : vector<16x128xi1>
    %c4_i32_75 = arith.constant 4 : i32
    %189 = vector.broadcast %c4_i32_75 : i32 to vector<16x128xi32>
    %190 = arith.cmpi slt, %180, %189 : vector<16x128xi32>
    %191 = arith.andi %188, %190 : vector<16x128xi1>
    %c16_i32_76 = arith.constant 16 : i32
    %192 = vector.broadcast %c16_i32_76 : i32 to vector<16x128xi32>
    %193 = arith.cmpi slt, %3, %192 : vector<16x128xi32>
    %194 = arith.andi %191, %193 : vector<16x128xi1>
    %cst_77 = arith.constant 0.000000e+00 : f32
    %195 = vector.broadcast %cst_77 : f32 to vector<16x128xf32>
    %196 = arith.select %194, %176, %195 : vector<16x128xi1>, vector<16x128xf32>
    %197 = arith.truncf %196 : vector<16x128xf32> to vector<16x128xbf16>
    %c6 = arith.constant 6 : index
    %c0_78 = arith.constant 0 : index
    %c0_79 = arith.constant 0 : index
    %198 = vector.load %arg3[%c6, %c0_78, %c0_79] : memref<9x128x128xbf16, #tpu.memory_space<vmem>>, vector<1x128x128xbf16>
    %199 = vector.shape_cast %198 : vector<1x128x128xbf16> to vector<128x128xbf16>
    %cst_80 = arith.constant dense<0.000000e+00> : vector<16x128xf32>
    %200 = tpu.matmul %197, %199, %cst_80 {dimension_numbers = #tpu.dot_dimension_numbers<[1], [0], [0], [1], [0, 0, 1, 1], [], []>} : vector<16x128xbf16>, vector<128x128xbf16>, vector<16x128xf32> -> vector<16x128xf32>
    %201 = arith.addf %173, %200 : vector<16x128xf32>
    %202 = vector.extract_strided_slice %2 {offsets = [4, 0], sizes = [12, 128], strides = [1, 1]} : vector<16x128xf32> to vector<12x128xf32>
    %cst_81 = arith.constant 0.000000e+00 : f32
    %203 = vector.broadcast %cst_81 : f32 to vector<4x128xf32>
    %204 = tpu.concatenate %202, %203 in 0 : vector<12x128xf32>, vector<4x128xf32> -> vector<16x128xf32>
    %c1_i32_82 = arith.constant 1 : i32
    %205 = vector.broadcast %c1_i32_82 : i32 to vector<16x128xi32>
    %206 = arith.addi %5, %205 : vector<16x128xi32>
    %c0_i32_83 = arith.constant 0 : i32
    %207 = vector.broadcast %c0_i32_83 : i32 to vector<16x128xi32>
    %208 = arith.addi %7, %207 : vector<16x128xi32>
    %c0_i32_84 = arith.constant 0 : i32
    %209 = vector.broadcast %c0_i32_84 : i32 to vector<16x128xi32>
    %210 = arith.cmpi sge, %206, %209 : vector<16x128xi32>
    %c4_i32_85 = arith.constant 4 : i32
    %211 = vector.broadcast %c4_i32_85 : i32 to vector<16x128xi32>
    %212 = arith.cmpi slt, %206, %211 : vector<16x128xi32>
    %213 = arith.andi %210, %212 : vector<16x128xi1>
    %c0_i32_86 = arith.constant 0 : i32
    %214 = vector.broadcast %c0_i32_86 : i32 to vector<16x128xi32>
    %215 = arith.cmpi sge, %208, %214 : vector<16x128xi32>
    %216 = arith.andi %213, %215 : vector<16x128xi1>
    %c4_i32_87 = arith.constant 4 : i32
    %217 = vector.broadcast %c4_i32_87 : i32 to vector<16x128xi32>
    %218 = arith.cmpi slt, %208, %217 : vector<16x128xi32>
    %219 = arith.andi %216, %218 : vector<16x128xi1>
    %c16_i32_88 = arith.constant 16 : i32
    %220 = vector.broadcast %c16_i32_88 : i32 to vector<16x128xi32>
    %221 = arith.cmpi slt, %3, %220 : vector<16x128xi32>
    %222 = arith.andi %219, %221 : vector<16x128xi1>
    %cst_89 = arith.constant 0.000000e+00 : f32
    %223 = vector.broadcast %cst_89 : f32 to vector<16x128xf32>
    %224 = arith.select %222, %204, %223 : vector<16x128xi1>, vector<16x128xf32>
    %225 = arith.truncf %224 : vector<16x128xf32> to vector<16x128xbf16>
    %c7 = arith.constant 7 : index
    %c0_90 = arith.constant 0 : index
    %c0_91 = arith.constant 0 : index
    %226 = vector.load %arg3[%c7, %c0_90, %c0_91] : memref<9x128x128xbf16, #tpu.memory_space<vmem>>, vector<1x128x128xbf16>
    %227 = vector.shape_cast %226 : vector<1x128x128xbf16> to vector<128x128xbf16>
    %cst_92 = arith.constant dense<0.000000e+00> : vector<16x128xf32>
    %228 = tpu.matmul %225, %227, %cst_92 {dimension_numbers = #tpu.dot_dimension_numbers<[1], [0], [0], [1], [0, 0, 1, 1], [], []>} : vector<16x128xbf16>, vector<128x128xbf16>, vector<16x128xf32> -> vector<16x128xf32>
    %229 = arith.addf %201, %228 : vector<16x128xf32>
    %230 = vector.extract_strided_slice %2 {offsets = [5, 0], sizes = [11, 128], strides = [1, 1]} : vector<16x128xf32> to vector<11x128xf32>
    %cst_93 = arith.constant 0.000000e+00 : f32
    %231 = vector.broadcast %cst_93 : f32 to vector<5x128xf32>
    %232 = tpu.concatenate %230, %231 in 0 : vector<11x128xf32>, vector<5x128xf32> -> vector<16x128xf32>
    %c1_i32_94 = arith.constant 1 : i32
    %233 = vector.broadcast %c1_i32_94 : i32 to vector<16x128xi32>
    %234 = arith.addi %5, %233 : vector<16x128xi32>
    %c1_i32_95 = arith.constant 1 : i32
    %235 = vector.broadcast %c1_i32_95 : i32 to vector<16x128xi32>
    %236 = arith.addi %7, %235 : vector<16x128xi32>
    %c0_i32_96 = arith.constant 0 : i32
    %237 = vector.broadcast %c0_i32_96 : i32 to vector<16x128xi32>
    %238 = arith.cmpi sge, %234, %237 : vector<16x128xi32>
    %c4_i32_97 = arith.constant 4 : i32
    %239 = vector.broadcast %c4_i32_97 : i32 to vector<16x128xi32>
    %240 = arith.cmpi slt, %234, %239 : vector<16x128xi32>
    %241 = arith.andi %238, %240 : vector<16x128xi1>
    %c0_i32_98 = arith.constant 0 : i32
    %242 = vector.broadcast %c0_i32_98 : i32 to vector<16x128xi32>
    %243 = arith.cmpi sge, %236, %242 : vector<16x128xi32>
    %244 = arith.andi %241, %243 : vector<16x128xi1>
    %c4_i32_99 = arith.constant 4 : i32
    %245 = vector.broadcast %c4_i32_99 : i32 to vector<16x128xi32>
    %246 = arith.cmpi slt, %236, %245 : vector<16x128xi32>
    %247 = arith.andi %244, %246 : vector<16x128xi1>
    %c16_i32_100 = arith.constant 16 : i32
    %248 = vector.broadcast %c16_i32_100 : i32 to vector<16x128xi32>
    %249 = arith.cmpi slt, %3, %248 : vector<16x128xi32>
    %250 = arith.andi %247, %249 : vector<16x128xi1>
    %cst_101 = arith.constant 0.000000e+00 : f32
    %251 = vector.broadcast %cst_101 : f32 to vector<16x128xf32>
    %252 = arith.select %250, %232, %251 : vector<16x128xi1>, vector<16x128xf32>
    %253 = arith.truncf %252 : vector<16x128xf32> to vector<16x128xbf16>
    %c8 = arith.constant 8 : index
    %c0_102 = arith.constant 0 : index
    %c0_103 = arith.constant 0 : index
    %254 = vector.load %arg3[%c8, %c0_102, %c0_103] : memref<9x128x128xbf16, #tpu.memory_space<vmem>>, vector<1x128x128xbf16>
    %255 = vector.shape_cast %254 : vector<1x128x128xbf16> to vector<128x128xbf16>
    %cst_104 = arith.constant dense<0.000000e+00> : vector<16x128xf32>
    %256 = tpu.matmul %253, %255, %cst_104 {dimension_numbers = #tpu.dot_dimension_numbers<[1], [0], [0], [1], [0, 0, 1, 1], [], []>} : vector<16x128xbf16>, vector<128x128xbf16>, vector<16x128xf32> -> vector<16x128xf32>
    %257 = arith.addf %229, %256 : vector<16x128xf32>
    %c0_105 = arith.constant 0 : index
    %c0_106 = arith.constant 0 : index
    %258 = vector.load %arg2[%c0_105, %c0_106] : memref<1x128xf32, #tpu.memory_space<vmem>>, vector<1x128xf32>
    %259 = vector.broadcast %258 : vector<1x128xf32> to vector<16x128xf32>
    %260 = arith.addf %257, %259 : vector<16x128xf32>
    %cst_107 = arith.constant 0.000000e+00 : f32
    %261 = vector.broadcast %cst_107 : f32 to vector<16x128xf32>
    %262 = arith.maximumf %260, %261 : vector<16x128xf32>
    %cst_108 = arith.constant 0.000000e+00 : f32
    %263 = vector.broadcast %cst_108 : f32 to vector<16x128xf32>
    %cst_109 = arith.constant 0.000000e+00 : f32
    %264 = vector.broadcast %cst_109 : f32 to vector<5x128xf32>
    %265 = vector.extract_strided_slice %262 {offsets = [0, 0], sizes = [11, 128], strides = [1, 1]} : vector<16x128xf32> to vector<11x128xf32>
    %266 = tpu.concatenate %264, %265 in 0 : vector<5x128xf32>, vector<11x128xf32> -> vector<16x128xf32>
    %c-1_i32_110 = arith.constant -1 : i32
    %267 = vector.broadcast %c-1_i32_110 : i32 to vector<16x128xi32>
    %268 = arith.addi %5, %267 : vector<16x128xi32>
    %c-1_i32_111 = arith.constant -1 : i32
    %269 = vector.broadcast %c-1_i32_111 : i32 to vector<16x128xi32>
    %270 = arith.addi %7, %269 : vector<16x128xi32>
    %c0_i32_112 = arith.constant 0 : i32
    %271 = vector.broadcast %c0_i32_112 : i32 to vector<16x128xi32>
    %272 = arith.cmpi sge, %268, %271 : vector<16x128xi32>
    %c4_i32_113 = arith.constant 4 : i32
    %273 = vector.broadcast %c4_i32_113 : i32 to vector<16x128xi32>
    %274 = arith.cmpi slt, %268, %273 : vector<16x128xi32>
    %275 = arith.andi %272, %274 : vector<16x128xi1>
    %c0_i32_114 = arith.constant 0 : i32
    %276 = vector.broadcast %c0_i32_114 : i32 to vector<16x128xi32>
    %277 = arith.cmpi sge, %270, %276 : vector<16x128xi32>
    %278 = arith.andi %275, %277 : vector<16x128xi1>
    %c4_i32_115 = arith.constant 4 : i32
    %279 = vector.broadcast %c4_i32_115 : i32 to vector<16x128xi32>
    %280 = arith.cmpi slt, %270, %279 : vector<16x128xi32>
    %281 = arith.andi %278, %280 : vector<16x128xi1>
    %c16_i32_116 = arith.constant 16 : i32
    %282 = vector.broadcast %c16_i32_116 : i32 to vector<16x128xi32>
    %283 = arith.cmpi slt, %3, %282 : vector<16x128xi32>
    %284 = arith.andi %281, %283 : vector<16x128xi1>
    %cst_117 = arith.constant 0.000000e+00 : f32
    %285 = vector.broadcast %cst_117 : f32 to vector<16x128xf32>
    %286 = arith.select %284, %266, %285 : vector<16x128xi1>, vector<16x128xf32>
    %287 = arith.truncf %286 : vector<16x128xf32> to vector<16x128xbf16>
    %c0_118 = arith.constant 0 : index
    %c0_119 = arith.constant 0 : index
    %c0_120 = arith.constant 0 : index
    %c0_121 = arith.constant 0 : index
    %288 = vector.load %arg4[%c0_118, %c0_119, %c0_120, %c0_121] : memref<2x9x128x128xbf16, #tpu.memory_space<vmem>>, vector<1x1x128x128xbf16>
    %289 = vector.shape_cast %288 : vector<1x1x128x128xbf16> to vector<128x128xbf16>
    %cst_122 = arith.constant dense<0.000000e+00> : vector<16x128xf32>
    %290 = tpu.matmul %287, %289, %cst_122 {dimension_numbers = #tpu.dot_dimension_numbers<[1], [0], [0], [1], [0, 0, 1, 1], [], []>} : vector<16x128xbf16>, vector<128x128xbf16>, vector<16x128xf32> -> vector<16x128xf32>
    %291 = arith.addf %263, %290 : vector<16x128xf32>
    %cst_123 = arith.constant 0.000000e+00 : f32
    %292 = vector.broadcast %cst_123 : f32 to vector<4x128xf32>
    %293 = vector.extract_strided_slice %262 {offsets = [0, 0], sizes = [12, 128], strides = [1, 1]} : vector<16x128xf32> to vector<12x128xf32>
    %294 = tpu.concatenate %292, %293 in 0 : vector<4x128xf32>, vector<12x128xf32> -> vector<16x128xf32>
    %c-1_i32_124 = arith.constant -1 : i32
    %295 = vector.broadcast %c-1_i32_124 : i32 to vector<16x128xi32>
    %296 = arith.addi %5, %295 : vector<16x128xi32>
    %c0_i32_125 = arith.constant 0 : i32
    %297 = vector.broadcast %c0_i32_125 : i32 to vector<16x128xi32>
    %298 = arith.addi %7, %297 : vector<16x128xi32>
    %c0_i32_126 = arith.constant 0 : i32
    %299 = vector.broadcast %c0_i32_126 : i32 to vector<16x128xi32>
    %300 = arith.cmpi sge, %296, %299 : vector<16x128xi32>
    %c4_i32_127 = arith.constant 4 : i32
    %301 = vector.broadcast %c4_i32_127 : i32 to vector<16x128xi32>
    %302 = arith.cmpi slt, %296, %301 : vector<16x128xi32>
    %303 = arith.andi %300, %302 : vector<16x128xi1>
    %c0_i32_128 = arith.constant 0 : i32
    %304 = vector.broadcast %c0_i32_128 : i32 to vector<16x128xi32>
    %305 = arith.cmpi sge, %298, %304 : vector<16x128xi32>
    %306 = arith.andi %303, %305 : vector<16x128xi1>
    %c4_i32_129 = arith.constant 4 : i32
    %307 = vector.broadcast %c4_i32_129 : i32 to vector<16x128xi32>
    %308 = arith.cmpi slt, %298, %307 : vector<16x128xi32>
    %309 = arith.andi %306, %308 : vector<16x128xi1>
    %c16_i32_130 = arith.constant 16 : i32
    %310 = vector.broadcast %c16_i32_130 : i32 to vector<16x128xi32>
    %311 = arith.cmpi slt, %3, %310 : vector<16x128xi32>
    %312 = arith.andi %309, %311 : vector<16x128xi1>
    %cst_131 = arith.constant 0.000000e+00 : f32
    %313 = vector.broadcast %cst_131 : f32 to vector<16x128xf32>
    %314 = arith.select %312, %294, %313 : vector<16x128xi1>, vector<16x128xf32>
    %315 = arith.truncf %314 : vector<16x128xf32> to vector<16x128xbf16>
    %c0_132 = arith.constant 0 : index
    %c1_133 = arith.constant 1 : index
    %c0_134 = arith.constant 0 : index
    %c0_135 = arith.constant 0 : index
    %316 = vector.load %arg4[%c0_132, %c1_133, %c0_134, %c0_135] : memref<2x9x128x128xbf16, #tpu.memory_space<vmem>>, vector<1x1x128x128xbf16>
    %317 = vector.shape_cast %316 : vector<1x1x128x128xbf16> to vector<128x128xbf16>
    %cst_136 = arith.constant dense<0.000000e+00> : vector<16x128xf32>
    %318 = tpu.matmul %315, %317, %cst_136 {dimension_numbers = #tpu.dot_dimension_numbers<[1], [0], [0], [1], [0, 0, 1, 1], [], []>} : vector<16x128xbf16>, vector<128x128xbf16>, vector<16x128xf32> -> vector<16x128xf32>
    %319 = arith.addf %291, %318 : vector<16x128xf32>
    %cst_137 = arith.constant 0.000000e+00 : f32
    %320 = vector.broadcast %cst_137 : f32 to vector<3x128xf32>
    %321 = vector.extract_strided_slice %262 {offsets = [0, 0], sizes = [13, 128], strides = [1, 1]} : vector<16x128xf32> to vector<13x128xf32>
    %322 = tpu.concatenate %320, %321 in 0 : vector<3x128xf32>, vector<13x128xf32> -> vector<16x128xf32>
    %c-1_i32_138 = arith.constant -1 : i32
    %323 = vector.broadcast %c-1_i32_138 : i32 to vector<16x128xi32>
    %324 = arith.addi %5, %323 : vector<16x128xi32>
    %c1_i32_139 = arith.constant 1 : i32
    %325 = vector.broadcast %c1_i32_139 : i32 to vector<16x128xi32>
    %326 = arith.addi %7, %325 : vector<16x128xi32>
    %c0_i32_140 = arith.constant 0 : i32
    %327 = vector.broadcast %c0_i32_140 : i32 to vector<16x128xi32>
    %328 = arith.cmpi sge, %324, %327 : vector<16x128xi32>
    %c4_i32_141 = arith.constant 4 : i32
    %329 = vector.broadcast %c4_i32_141 : i32 to vector<16x128xi32>
    %330 = arith.cmpi slt, %324, %329 : vector<16x128xi32>
    %331 = arith.andi %328, %330 : vector<16x128xi1>
    %c0_i32_142 = arith.constant 0 : i32
    %332 = vector.broadcast %c0_i32_142 : i32 to vector<16x128xi32>
    %333 = arith.cmpi sge, %326, %332 : vector<16x128xi32>
    %334 = arith.andi %331, %333 : vector<16x128xi1>
    %c4_i32_143 = arith.constant 4 : i32
    %335 = vector.broadcast %c4_i32_143 : i32 to vector<16x128xi32>
    %336 = arith.cmpi slt, %326, %335 : vector<16x128xi32>
    %337 = arith.andi %334, %336 : vector<16x128xi1>
    %c16_i32_144 = arith.constant 16 : i32
    %338 = vector.broadcast %c16_i32_144 : i32 to vector<16x128xi32>
    %339 = arith.cmpi slt, %3, %338 : vector<16x128xi32>
    %340 = arith.andi %337, %339 : vector<16x128xi1>
    %cst_145 = arith.constant 0.000000e+00 : f32
    %341 = vector.broadcast %cst_145 : f32 to vector<16x128xf32>
    %342 = arith.select %340, %322, %341 : vector<16x128xi1>, vector<16x128xf32>
    %343 = arith.truncf %342 : vector<16x128xf32> to vector<16x128xbf16>
    %c0_146 = arith.constant 0 : index
    %c2_147 = arith.constant 2 : index
    %c0_148 = arith.constant 0 : index
    %c0_149 = arith.constant 0 : index
    %344 = vector.load %arg4[%c0_146, %c2_147, %c0_148, %c0_149] : memref<2x9x128x128xbf16, #tpu.memory_space<vmem>>, vector<1x1x128x128xbf16>
    %345 = vector.shape_cast %344 : vector<1x1x128x128xbf16> to vector<128x128xbf16>
    %cst_150 = arith.constant dense<0.000000e+00> : vector<16x128xf32>
    %346 = tpu.matmul %343, %345, %cst_150 {dimension_numbers = #tpu.dot_dimension_numbers<[1], [0], [0], [1], [0, 0, 1, 1], [], []>} : vector<16x128xbf16>, vector<128x128xbf16>, vector<16x128xf32> -> vector<16x128xf32>
    %347 = arith.addf %319, %346 : vector<16x128xf32>
    %cst_151 = arith.constant 0.000000e+00 : f32
    %348 = vector.broadcast %cst_151 : f32 to vector<1x128xf32>
    %349 = vector.extract_strided_slice %262 {offsets = [0, 0], sizes = [15, 128], strides = [1, 1]} : vector<16x128xf32> to vector<15x128xf32>
    %350 = tpu.concatenate %348, %349 in 0 : vector<1x128xf32>, vector<15x128xf32> -> vector<16x128xf32>
    %c0_i32_152 = arith.constant 0 : i32
    %351 = vector.broadcast %c0_i32_152 : i32 to vector<16x128xi32>
    %352 = arith.addi %5, %351 : vector<16x128xi32>
    %c-1_i32_153 = arith.constant -1 : i32
    %353 = vector.broadcast %c-1_i32_153 : i32 to vector<16x128xi32>
    %354 = arith.addi %7, %353 : vector<16x128xi32>
    %c0_i32_154 = arith.constant 0 : i32
    %355 = vector.broadcast %c0_i32_154 : i32 to vector<16x128xi32>
    %356 = arith.cmpi sge, %352, %355 : vector<16x128xi32>
    %c4_i32_155 = arith.constant 4 : i32
    %357 = vector.broadcast %c4_i32_155 : i32 to vector<16x128xi32>
    %358 = arith.cmpi slt, %352, %357 : vector<16x128xi32>
    %359 = arith.andi %356, %358 : vector<16x128xi1>
    %c0_i32_156 = arith.constant 0 : i32
    %360 = vector.broadcast %c0_i32_156 : i32 to vector<16x128xi32>
    %361 = arith.cmpi sge, %354, %360 : vector<16x128xi32>
    %362 = arith.andi %359, %361 : vector<16x128xi1>
    %c4_i32_157 = arith.constant 4 : i32
    %363 = vector.broadcast %c4_i32_157 : i32 to vector<16x128xi32>
    %364 = arith.cmpi slt, %354, %363 : vector<16x128xi32>
    %365 = arith.andi %362, %364 : vector<16x128xi1>
    %c16_i32_158 = arith.constant 16 : i32
    %366 = vector.broadcast %c16_i32_158 : i32 to vector<16x128xi32>
    %367 = arith.cmpi slt, %3, %366 : vector<16x128xi32>
    %368 = arith.andi %365, %367 : vector<16x128xi1>
    %cst_159 = arith.constant 0.000000e+00 : f32
    %369 = vector.broadcast %cst_159 : f32 to vector<16x128xf32>
    %370 = arith.select %368, %350, %369 : vector<16x128xi1>, vector<16x128xf32>
    %371 = arith.truncf %370 : vector<16x128xf32> to vector<16x128xbf16>
    %c0_160 = arith.constant 0 : index
    %c3_161 = arith.constant 3 : index
    %c0_162 = arith.constant 0 : index
    %c0_163 = arith.constant 0 : index
    %372 = vector.load %arg4[%c0_160, %c3_161, %c0_162, %c0_163] : memref<2x9x128x128xbf16, #tpu.memory_space<vmem>>, vector<1x1x128x128xbf16>
    %373 = vector.shape_cast %372 : vector<1x1x128x128xbf16> to vector<128x128xbf16>
    %cst_164 = arith.constant dense<0.000000e+00> : vector<16x128xf32>
    %374 = tpu.matmul %371, %373, %cst_164 {dimension_numbers = #tpu.dot_dimension_numbers<[1], [0], [0], [1], [0, 0, 1, 1], [], []>} : vector<16x128xbf16>, vector<128x128xbf16>, vector<16x128xf32> -> vector<16x128xf32>
    %375 = arith.addf %347, %374 : vector<16x128xf32>
    %c0_i32_165 = arith.constant 0 : i32
    %376 = vector.broadcast %c0_i32_165 : i32 to vector<16x128xi32>
    %377 = arith.addi %5, %376 : vector<16x128xi32>
    %c0_i32_166 = arith.constant 0 : i32
    %378 = vector.broadcast %c0_i32_166 : i32 to vector<16x128xi32>
    %379 = arith.addi %7, %378 : vector<16x128xi32>
    %c0_i32_167 = arith.constant 0 : i32
    %380 = vector.broadcast %c0_i32_167 : i32 to vector<16x128xi32>
    %381 = arith.cmpi sge, %377, %380 : vector<16x128xi32>
    %c4_i32_168 = arith.constant 4 : i32
    %382 = vector.broadcast %c4_i32_168 : i32 to vector<16x128xi32>
    %383 = arith.cmpi slt, %377, %382 : vector<16x128xi32>
    %384 = arith.andi %381, %383 : vector<16x128xi1>
    %c0_i32_169 = arith.constant 0 : i32
    %385 = vector.broadcast %c0_i32_169 : i32 to vector<16x128xi32>
    %386 = arith.cmpi sge, %379, %385 : vector<16x128xi32>
    %387 = arith.andi %384, %386 : vector<16x128xi1>
    %c4_i32_170 = arith.constant 4 : i32
    %388 = vector.broadcast %c4_i32_170 : i32 to vector<16x128xi32>
    %389 = arith.cmpi slt, %379, %388 : vector<16x128xi32>
    %390 = arith.andi %387, %389 : vector<16x128xi1>
    %c16_i32_171 = arith.constant 16 : i32
    %391 = vector.broadcast %c16_i32_171 : i32 to vector<16x128xi32>
    %392 = arith.cmpi slt, %3, %391 : vector<16x128xi32>
    %393 = arith.andi %390, %392 : vector<16x128xi1>
    %cst_172 = arith.constant 0.000000e+00 : f32
    %394 = vector.broadcast %cst_172 : f32 to vector<16x128xf32>
    %395 = arith.select %393, %262, %394 : vector<16x128xi1>, vector<16x128xf32>
    %396 = arith.truncf %395 : vector<16x128xf32> to vector<16x128xbf16>
    %c0_173 = arith.constant 0 : index
    %c4_174 = arith.constant 4 : index
    %c0_175 = arith.constant 0 : index
    %c0_176 = arith.constant 0 : index
    %397 = vector.load %arg4[%c0_173, %c4_174, %c0_175, %c0_176] : memref<2x9x128x128xbf16, #tpu.memory_space<vmem>>, vector<1x1x128x128xbf16>
    %398 = vector.shape_cast %397 : vector<1x1x128x128xbf16> to vector<128x128xbf16>
    %cst_177 = arith.constant dense<0.000000e+00> : vector<16x128xf32>
    %399 = tpu.matmul %396, %398, %cst_177 {dimension_numbers = #tpu.dot_dimension_numbers<[1], [0], [0], [1], [0, 0, 1, 1], [], []>} : vector<16x128xbf16>, vector<128x128xbf16>, vector<16x128xf32> -> vector<16x128xf32>
    %400 = arith.addf %375, %399 : vector<16x128xf32>
    %401 = vector.extract_strided_slice %262 {offsets = [1, 0], sizes = [15, 128], strides = [1, 1]} : vector<16x128xf32> to vector<15x128xf32>
    %cst_178 = arith.constant 0.000000e+00 : f32
    %402 = vector.broadcast %cst_178 : f32 to vector<1x128xf32>
    %403 = tpu.concatenate %401, %402 in 0 : vector<15x128xf32>, vector<1x128xf32> -> vector<16x128xf32>
    %c0_i32_179 = arith.constant 0 : i32
    %404 = vector.broadcast %c0_i32_179 : i32 to vector<16x128xi32>
    %405 = arith.addi %5, %404 : vector<16x128xi32>
    %c1_i32_180 = arith.constant 1 : i32
    %406 = vector.broadcast %c1_i32_180 : i32 to vector<16x128xi32>
    %407 = arith.addi %7, %406 : vector<16x128xi32>
    %c0_i32_181 = arith.constant 0 : i32
    %408 = vector.broadcast %c0_i32_181 : i32 to vector<16x128xi32>
    %409 = arith.cmpi sge, %405, %408 : vector<16x128xi32>
    %c4_i32_182 = arith.constant 4 : i32
    %410 = vector.broadcast %c4_i32_182 : i32 to vector<16x128xi32>
    %411 = arith.cmpi slt, %405, %410 : vector<16x128xi32>
    %412 = arith.andi %409, %411 : vector<16x128xi1>
    %c0_i32_183 = arith.constant 0 : i32
    %413 = vector.broadcast %c0_i32_183 : i32 to vector<16x128xi32>
    %414 = arith.cmpi sge, %407, %413 : vector<16x128xi32>
    %415 = arith.andi %412, %414 : vector<16x128xi1>
    %c4_i32_184 = arith.constant 4 : i32
    %416 = vector.broadcast %c4_i32_184 : i32 to vector<16x128xi32>
    %417 = arith.cmpi slt, %407, %416 : vector<16x128xi32>
    %418 = arith.andi %415, %417 : vector<16x128xi1>
    %c16_i32_185 = arith.constant 16 : i32
    %419 = vector.broadcast %c16_i32_185 : i32 to vector<16x128xi32>
    %420 = arith.cmpi slt, %3, %419 : vector<16x128xi32>
    %421 = arith.andi %418, %420 : vector<16x128xi1>
    %cst_186 = arith.constant 0.000000e+00 : f32
    %422 = vector.broadcast %cst_186 : f32 to vector<16x128xf32>
    %423 = arith.select %421, %403, %422 : vector<16x128xi1>, vector<16x128xf32>
    %424 = arith.truncf %423 : vector<16x128xf32> to vector<16x128xbf16>
    %c0_187 = arith.constant 0 : index
    %c5_188 = arith.constant 5 : index
    %c0_189 = arith.constant 0 : index
    %c0_190 = arith.constant 0 : index
    %425 = vector.load %arg4[%c0_187, %c5_188, %c0_189, %c0_190] : memref<2x9x128x128xbf16, #tpu.memory_space<vmem>>, vector<1x1x128x128xbf16>
    %426 = vector.shape_cast %425 : vector<1x1x128x128xbf16> to vector<128x128xbf16>
    %cst_191 = arith.constant dense<0.000000e+00> : vector<16x128xf32>
    %427 = tpu.matmul %424, %426, %cst_191 {dimension_numbers = #tpu.dot_dimension_numbers<[1], [0], [0], [1], [0, 0, 1, 1], [], []>} : vector<16x128xbf16>, vector<128x128xbf16>, vector<16x128xf32> -> vector<16x128xf32>
    %428 = arith.addf %400, %427 : vector<16x128xf32>
    %429 = vector.extract_strided_slice %262 {offsets = [3, 0], sizes = [13, 128], strides = [1, 1]} : vector<16x128xf32> to vector<13x128xf32>
    %cst_192 = arith.constant 0.000000e+00 : f32
    %430 = vector.broadcast %cst_192 : f32 to vector<3x128xf32>
    %431 = tpu.concatenate %429, %430 in 0 : vector<13x128xf32>, vector<3x128xf32> -> vector<16x128xf32>
    %c1_i32_193 = arith.constant 1 : i32
    %432 = vector.broadcast %c1_i32_193 : i32 to vector<16x128xi32>
    %433 = arith.addi %5, %432 : vector<16x128xi32>
    %c-1_i32_194 = arith.constant -1 : i32
    %434 = vector.broadcast %c-1_i32_194 : i32 to vector<16x128xi32>
    %435 = arith.addi %7, %434 : vector<16x128xi32>
    %c0_i32_195 = arith.constant 0 : i32
    %436 = vector.broadcast %c0_i32_195 : i32 to vector<16x128xi32>
    %437 = arith.cmpi sge, %433, %436 : vector<16x128xi32>
    %c4_i32_196 = arith.constant 4 : i32
    %438 = vector.broadcast %c4_i32_196 : i32 to vector<16x128xi32>
    %439 = arith.cmpi slt, %433, %438 : vector<16x128xi32>
    %440 = arith.andi %437, %439 : vector<16x128xi1>
    %c0_i32_197 = arith.constant 0 : i32
    %441 = vector.broadcast %c0_i32_197 : i32 to vector<16x128xi32>
    %442 = arith.cmpi sge, %435, %441 : vector<16x128xi32>
    %443 = arith.andi %440, %442 : vector<16x128xi1>
    %c4_i32_198 = arith.constant 4 : i32
    %444 = vector.broadcast %c4_i32_198 : i32 to vector<16x128xi32>
    %445 = arith.cmpi slt, %435, %444 : vector<16x128xi32>
    %446 = arith.andi %443, %445 : vector<16x128xi1>
    %c16_i32_199 = arith.constant 16 : i32
    %447 = vector.broadcast %c16_i32_199 : i32 to vector<16x128xi32>
    %448 = arith.cmpi slt, %3, %447 : vector<16x128xi32>
    %449 = arith.andi %446, %448 : vector<16x128xi1>
    %cst_200 = arith.constant 0.000000e+00 : f32
    %450 = vector.broadcast %cst_200 : f32 to vector<16x128xf32>
    %451 = arith.select %449, %431, %450 : vector<16x128xi1>, vector<16x128xf32>
    %452 = arith.truncf %451 : vector<16x128xf32> to vector<16x128xbf16>
    %c0_201 = arith.constant 0 : index
    %c6_202 = arith.constant 6 : index
    %c0_203 = arith.constant 0 : index
    %c0_204 = arith.constant 0 : index
    %453 = vector.load %arg4[%c0_201, %c6_202, %c0_203, %c0_204] : memref<2x9x128x128xbf16, #tpu.memory_space<vmem>>, vector<1x1x128x128xbf16>
    %454 = vector.shape_cast %453 : vector<1x1x128x128xbf16> to vector<128x128xbf16>
    %cst_205 = arith.constant dense<0.000000e+00> : vector<16x128xf32>
    %455 = tpu.matmul %452, %454, %cst_205 {dimension_numbers = #tpu.dot_dimension_numbers<[1], [0], [0], [1], [0, 0, 1, 1], [], []>} : vector<16x128xbf16>, vector<128x128xbf16>, vector<16x128xf32> -> vector<16x128xf32>
    %456 = arith.addf %428, %455 : vector<16x128xf32>
    %457 = vector.extract_strided_slice %262 {offsets = [4, 0], sizes = [12, 128], strides = [1, 1]} : vector<16x128xf32> to vector<12x128xf32>
    %cst_206 = arith.constant 0.000000e+00 : f32
    %458 = vector.broadcast %cst_206 : f32 to vector<4x128xf32>
    %459 = tpu.concatenate %457, %458 in 0 : vector<12x128xf32>, vector<4x128xf32> -> vector<16x128xf32>
    %c1_i32_207 = arith.constant 1 : i32
    %460 = vector.broadcast %c1_i32_207 : i32 to vector<16x128xi32>
    %461 = arith.addi %5, %460 : vector<16x128xi32>
    %c0_i32_208 = arith.constant 0 : i32
    %462 = vector.broadcast %c0_i32_208 : i32 to vector<16x128xi32>
    %463 = arith.addi %7, %462 : vector<16x128xi32>
    %c0_i32_209 = arith.constant 0 : i32
    %464 = vector.broadcast %c0_i32_209 : i32 to vector<16x128xi32>
    %465 = arith.cmpi sge, %461, %464 : vector<16x128xi32>
    %c4_i32_210 = arith.constant 4 : i32
    %466 = vector.broadcast %c4_i32_210 : i32 to vector<16x128xi32>
    %467 = arith.cmpi slt, %461, %466 : vector<16x128xi32>
    %468 = arith.andi %465, %467 : vector<16x128xi1>
    %c0_i32_211 = arith.constant 0 : i32
    %469 = vector.broadcast %c0_i32_211 : i32 to vector<16x128xi32>
    %470 = arith.cmpi sge, %463, %469 : vector<16x128xi32>
    %471 = arith.andi %468, %470 : vector<16x128xi1>
    %c4_i32_212 = arith.constant 4 : i32
    %472 = vector.broadcast %c4_i32_212 : i32 to vector<16x128xi32>
    %473 = arith.cmpi slt, %463, %472 : vector<16x128xi32>
    %474 = arith.andi %471, %473 : vector<16x128xi1>
    %c16_i32_213 = arith.constant 16 : i32
    %475 = vector.broadcast %c16_i32_213 : i32 to vector<16x128xi32>
    %476 = arith.cmpi slt, %3, %475 : vector<16x128xi32>
    %477 = arith.andi %474, %476 : vector<16x128xi1>
    %cst_214 = arith.constant 0.000000e+00 : f32
    %478 = vector.broadcast %cst_214 : f32 to vector<16x128xf32>
    %479 = arith.select %477, %459, %478 : vector<16x128xi1>, vector<16x128xf32>
    %480 = arith.truncf %479 : vector<16x128xf32> to vector<16x128xbf16>
    %c0_215 = arith.constant 0 : index
    %c7_216 = arith.constant 7 : index
    %c0_217 = arith.constant 0 : index
    %c0_218 = arith.constant 0 : index
    %481 = vector.load %arg4[%c0_215, %c7_216, %c0_217, %c0_218] : memref<2x9x128x128xbf16, #tpu.memory_space<vmem>>, vector<1x1x128x128xbf16>
    %482 = vector.shape_cast %481 : vector<1x1x128x128xbf16> to vector<128x128xbf16>
    %cst_219 = arith.constant dense<0.000000e+00> : vector<16x128xf32>
    %483 = tpu.matmul %480, %482, %cst_219 {dimension_numbers = #tpu.dot_dimension_numbers<[1], [0], [0], [1], [0, 0, 1, 1], [], []>} : vector<16x128xbf16>, vector<128x128xbf16>, vector<16x128xf32> -> vector<16x128xf32>
    %484 = arith.addf %456, %483 : vector<16x128xf32>
    %485 = vector.extract_strided_slice %262 {offsets = [5, 0], sizes = [11, 128], strides = [1, 1]} : vector<16x128xf32> to vector<11x128xf32>
    %cst_220 = arith.constant 0.000000e+00 : f32
    %486 = vector.broadcast %cst_220 : f32 to vector<5x128xf32>
    %487 = tpu.concatenate %485, %486 in 0 : vector<11x128xf32>, vector<5x128xf32> -> vector<16x128xf32>
    %c1_i32_221 = arith.constant 1 : i32
    %488 = vector.broadcast %c1_i32_221 : i32 to vector<16x128xi32>
    %489 = arith.addi %5, %488 : vector<16x128xi32>
    %c1_i32_222 = arith.constant 1 : i32
    %490 = vector.broadcast %c1_i32_222 : i32 to vector<16x128xi32>
    %491 = arith.addi %7, %490 : vector<16x128xi32>
    %c0_i32_223 = arith.constant 0 : i32
    %492 = vector.broadcast %c0_i32_223 : i32 to vector<16x128xi32>
    %493 = arith.cmpi sge, %489, %492 : vector<16x128xi32>
    %c4_i32_224 = arith.constant 4 : i32
    %494 = vector.broadcast %c4_i32_224 : i32 to vector<16x128xi32>
    %495 = arith.cmpi slt, %489, %494 : vector<16x128xi32>
    %496 = arith.andi %493, %495 : vector<16x128xi1>
    %c0_i32_225 = arith.constant 0 : i32
    %497 = vector.broadcast %c0_i32_225 : i32 to vector<16x128xi32>
    %498 = arith.cmpi sge, %491, %497 : vector<16x128xi32>
    %499 = arith.andi %496, %498 : vector<16x128xi1>
    %c4_i32_226 = arith.constant 4 : i32
    %500 = vector.broadcast %c4_i32_226 : i32 to vector<16x128xi32>
    %501 = arith.cmpi slt, %491, %500 : vector<16x128xi32>
    %502 = arith.andi %499, %501 : vector<16x128xi1>
    %c16_i32_227 = arith.constant 16 : i32
    %503 = vector.broadcast %c16_i32_227 : i32 to vector<16x128xi32>
    %504 = arith.cmpi slt, %3, %503 : vector<16x128xi32>
    %505 = arith.andi %502, %504 : vector<16x128xi1>
    %cst_228 = arith.constant 0.000000e+00 : f32
    %506 = vector.broadcast %cst_228 : f32 to vector<16x128xf32>
    %507 = arith.select %505, %487, %506 : vector<16x128xi1>, vector<16x128xf32>
    %508 = arith.truncf %507 : vector<16x128xf32> to vector<16x128xbf16>
    %c0_229 = arith.constant 0 : index
    %c8_230 = arith.constant 8 : index
    %c0_231 = arith.constant 0 : index
    %c0_232 = arith.constant 0 : index
    %509 = vector.load %arg4[%c0_229, %c8_230, %c0_231, %c0_232] : memref<2x9x128x128xbf16, #tpu.memory_space<vmem>>, vector<1x1x128x128xbf16>
    %510 = vector.shape_cast %509 : vector<1x1x128x128xbf16> to vector<128x128xbf16>
    %cst_233 = arith.constant dense<0.000000e+00> : vector<16x128xf32>
    %511 = tpu.matmul %508, %510, %cst_233 {dimension_numbers = #tpu.dot_dimension_numbers<[1], [0], [0], [1], [0, 0, 1, 1], [], []>} : vector<16x128xbf16>, vector<128x128xbf16>, vector<16x128xf32> -> vector<16x128xf32>
    %512 = arith.addf %484, %511 : vector<16x128xf32>
    %cst_234 = arith.constant 0.000000e+00 : f32
    %513 = vector.broadcast %cst_234 : f32 to vector<16x128xf32>
    %514 = arith.maximumf %512, %513 : vector<16x128xf32>
    %515 = arith.truncf %514 : vector<16x128xf32> to vector<16x128xbf16>
    %c0_235 = arith.constant 0 : index
    %c0_236 = arith.constant 0 : index
    %c0_237 = arith.constant 0 : index
    %516 = vector.load %arg5[%c0_235, %c0_236, %c0_237] : memref<2x128x128xbf16, #tpu.memory_space<vmem>>, vector<1x128x128xbf16>
    %517 = vector.shape_cast %516 : vector<1x128x128xbf16> to vector<128x128xbf16>
    %cst_238 = arith.constant dense<0.000000e+00> : vector<16x128xf32>
    %518 = tpu.matmul %515, %517, %cst_238 {dimension_numbers = #tpu.dot_dimension_numbers<[1], [0], [0], [1], [0, 0, 1, 1], [], []>} : vector<16x128xbf16>, vector<128x128xbf16>, vector<16x128xf32> -> vector<16x128xf32>
    %519 = arith.addf %260, %518 : vector<16x128xf32>
    %cst_239 = arith.constant 0.000000e+00 : f32
    %520 = vector.broadcast %cst_239 : f32 to vector<16x128xf32>
    %521 = arith.maximumf %519, %520 : vector<16x128xf32>
    %cst_240 = arith.constant 0.000000e+00 : f32
    %522 = vector.broadcast %cst_240 : f32 to vector<16x128xf32>
    %cst_241 = arith.constant 0.000000e+00 : f32
    %523 = vector.broadcast %cst_241 : f32 to vector<5x128xf32>
    %524 = vector.extract_strided_slice %521 {offsets = [0, 0], sizes = [11, 128], strides = [1, 1]} : vector<16x128xf32> to vector<11x128xf32>
    %525 = tpu.concatenate %523, %524 in 0 : vector<5x128xf32>, vector<11x128xf32> -> vector<16x128xf32>
    %c-1_i32_242 = arith.constant -1 : i32
    %526 = vector.broadcast %c-1_i32_242 : i32 to vector<16x128xi32>
    %527 = arith.addi %5, %526 : vector<16x128xi32>
    %c-1_i32_243 = arith.constant -1 : i32
    %528 = vector.broadcast %c-1_i32_243 : i32 to vector<16x128xi32>
    %529 = arith.addi %7, %528 : vector<16x128xi32>
    %c0_i32_244 = arith.constant 0 : i32
    %530 = vector.broadcast %c0_i32_244 : i32 to vector<16x128xi32>
    %531 = arith.cmpi sge, %527, %530 : vector<16x128xi32>
    %c4_i32_245 = arith.constant 4 : i32
    %532 = vector.broadcast %c4_i32_245 : i32 to vector<16x128xi32>
    %533 = arith.cmpi slt, %527, %532 : vector<16x128xi32>
    %534 = arith.andi %531, %533 : vector<16x128xi1>
    %c0_i32_246 = arith.constant 0 : i32
    %535 = vector.broadcast %c0_i32_246 : i32 to vector<16x128xi32>
    %536 = arith.cmpi sge, %529, %535 : vector<16x128xi32>
    %537 = arith.andi %534, %536 : vector<16x128xi1>
    %c4_i32_247 = arith.constant 4 : i32
    %538 = vector.broadcast %c4_i32_247 : i32 to vector<16x128xi32>
    %539 = arith.cmpi slt, %529, %538 : vector<16x128xi32>
    %540 = arith.andi %537, %539 : vector<16x128xi1>
    %c16_i32_248 = arith.constant 16 : i32
    %541 = vector.broadcast %c16_i32_248 : i32 to vector<16x128xi32>
    %542 = arith.cmpi slt, %3, %541 : vector<16x128xi32>
    %543 = arith.andi %540, %542 : vector<16x128xi1>
    %cst_249 = arith.constant 0.000000e+00 : f32
    %544 = vector.broadcast %cst_249 : f32 to vector<16x128xf32>
    %545 = arith.select %543, %525, %544 : vector<16x128xi1>, vector<16x128xf32>
    %546 = arith.truncf %545 : vector<16x128xf32> to vector<16x128xbf16>
    %c1_250 = arith.constant 1 : index
    %c0_251 = arith.constant 0 : index
    %c0_252 = arith.constant 0 : index
    %c0_253 = arith.constant 0 : index
    %547 = vector.load %arg4[%c1_250, %c0_251, %c0_252, %c0_253] : memref<2x9x128x128xbf16, #tpu.memory_space<vmem>>, vector<1x1x128x128xbf16>
    %548 = vector.shape_cast %547 : vector<1x1x128x128xbf16> to vector<128x128xbf16>
    %cst_254 = arith.constant dense<0.000000e+00> : vector<16x128xf32>
    %549 = tpu.matmul %546, %548, %cst_254 {dimension_numbers = #tpu.dot_dimension_numbers<[1], [0], [0], [1], [0, 0, 1, 1], [], []>} : vector<16x128xbf16>, vector<128x128xbf16>, vector<16x128xf32> -> vector<16x128xf32>
    %550 = arith.addf %522, %549 : vector<16x128xf32>
    %cst_255 = arith.constant 0.000000e+00 : f32
    %551 = vector.broadcast %cst_255 : f32 to vector<4x128xf32>
    %552 = vector.extract_strided_slice %521 {offsets = [0, 0], sizes = [12, 128], strides = [1, 1]} : vector<16x128xf32> to vector<12x128xf32>
    %553 = tpu.concatenate %551, %552 in 0 : vector<4x128xf32>, vector<12x128xf32> -> vector<16x128xf32>
    %c-1_i32_256 = arith.constant -1 : i32
    %554 = vector.broadcast %c-1_i32_256 : i32 to vector<16x128xi32>
    %555 = arith.addi %5, %554 : vector<16x128xi32>
    %c0_i32_257 = arith.constant 0 : i32
    %556 = vector.broadcast %c0_i32_257 : i32 to vector<16x128xi32>
    %557 = arith.addi %7, %556 : vector<16x128xi32>
    %c0_i32_258 = arith.constant 0 : i32
    %558 = vector.broadcast %c0_i32_258 : i32 to vector<16x128xi32>
    %559 = arith.cmpi sge, %555, %558 : vector<16x128xi32>
    %c4_i32_259 = arith.constant 4 : i32
    %560 = vector.broadcast %c4_i32_259 : i32 to vector<16x128xi32>
    %561 = arith.cmpi slt, %555, %560 : vector<16x128xi32>
    %562 = arith.andi %559, %561 : vector<16x128xi1>
    %c0_i32_260 = arith.constant 0 : i32
    %563 = vector.broadcast %c0_i32_260 : i32 to vector<16x128xi32>
    %564 = arith.cmpi sge, %557, %563 : vector<16x128xi32>
    %565 = arith.andi %562, %564 : vector<16x128xi1>
    %c4_i32_261 = arith.constant 4 : i32
    %566 = vector.broadcast %c4_i32_261 : i32 to vector<16x128xi32>
    %567 = arith.cmpi slt, %557, %566 : vector<16x128xi32>
    %568 = arith.andi %565, %567 : vector<16x128xi1>
    %c16_i32_262 = arith.constant 16 : i32
    %569 = vector.broadcast %c16_i32_262 : i32 to vector<16x128xi32>
    %570 = arith.cmpi slt, %3, %569 : vector<16x128xi32>
    %571 = arith.andi %568, %570 : vector<16x128xi1>
    %cst_263 = arith.constant 0.000000e+00 : f32
    %572 = vector.broadcast %cst_263 : f32 to vector<16x128xf32>
    %573 = arith.select %571, %553, %572 : vector<16x128xi1>, vector<16x128xf32>
    %574 = arith.truncf %573 : vector<16x128xf32> to vector<16x128xbf16>
    %c1_264 = arith.constant 1 : index
    %c1_265 = arith.constant 1 : index
    %c0_266 = arith.constant 0 : index
    %c0_267 = arith.constant 0 : index
    %575 = vector.load %arg4[%c1_264, %c1_265, %c0_266, %c0_267] : memref<2x9x128x128xbf16, #tpu.memory_space<vmem>>, vector<1x1x128x128xbf16>
    %576 = vector.shape_cast %575 : vector<1x1x128x128xbf16> to vector<128x128xbf16>
    %cst_268 = arith.constant dense<0.000000e+00> : vector<16x128xf32>
    %577 = tpu.matmul %574, %576, %cst_268 {dimension_numbers = #tpu.dot_dimension_numbers<[1], [0], [0], [1], [0, 0, 1, 1], [], []>} : vector<16x128xbf16>, vector<128x128xbf16>, vector<16x128xf32> -> vector<16x128xf32>
    %578 = arith.addf %550, %577 : vector<16x128xf32>
    %cst_269 = arith.constant 0.000000e+00 : f32
    %579 = vector.broadcast %cst_269 : f32 to vector<3x128xf32>
    %580 = vector.extract_strided_slice %521 {offsets = [0, 0], sizes = [13, 128], strides = [1, 1]} : vector<16x128xf32> to vector<13x128xf32>
    %581 = tpu.concatenate %579, %580 in 0 : vector<3x128xf32>, vector<13x128xf32> -> vector<16x128xf32>
    %c-1_i32_270 = arith.constant -1 : i32
    %582 = vector.broadcast %c-1_i32_270 : i32 to vector<16x128xi32>
    %583 = arith.addi %5, %582 : vector<16x128xi32>
    %c1_i32_271 = arith.constant 1 : i32
    %584 = vector.broadcast %c1_i32_271 : i32 to vector<16x128xi32>
    %585 = arith.addi %7, %584 : vector<16x128xi32>
    %c0_i32_272 = arith.constant 0 : i32
    %586 = vector.broadcast %c0_i32_272 : i32 to vector<16x128xi32>
    %587 = arith.cmpi sge, %583, %586 : vector<16x128xi32>
    %c4_i32_273 = arith.constant 4 : i32
    %588 = vector.broadcast %c4_i32_273 : i32 to vector<16x128xi32>
    %589 = arith.cmpi slt, %583, %588 : vector<16x128xi32>
    %590 = arith.andi %587, %589 : vector<16x128xi1>
    %c0_i32_274 = arith.constant 0 : i32
    %591 = vector.broadcast %c0_i32_274 : i32 to vector<16x128xi32>
    %592 = arith.cmpi sge, %585, %591 : vector<16x128xi32>
    %593 = arith.andi %590, %592 : vector<16x128xi1>
    %c4_i32_275 = arith.constant 4 : i32
    %594 = vector.broadcast %c4_i32_275 : i32 to vector<16x128xi32>
    %595 = arith.cmpi slt, %585, %594 : vector<16x128xi32>
    %596 = arith.andi %593, %595 : vector<16x128xi1>
    %c16_i32_276 = arith.constant 16 : i32
    %597 = vector.broadcast %c16_i32_276 : i32 to vector<16x128xi32>
    %598 = arith.cmpi slt, %3, %597 : vector<16x128xi32>
    %599 = arith.andi %596, %598 : vector<16x128xi1>
    %cst_277 = arith.constant 0.000000e+00 : f32
    %600 = vector.broadcast %cst_277 : f32 to vector<16x128xf32>
    %601 = arith.select %599, %581, %600 : vector<16x128xi1>, vector<16x128xf32>
    %602 = arith.truncf %601 : vector<16x128xf32> to vector<16x128xbf16>
    %c1_278 = arith.constant 1 : index
    %c2_279 = arith.constant 2 : index
    %c0_280 = arith.constant 0 : index
    %c0_281 = arith.constant 0 : index
    %603 = vector.load %arg4[%c1_278, %c2_279, %c0_280, %c0_281] : memref<2x9x128x128xbf16, #tpu.memory_space<vmem>>, vector<1x1x128x128xbf16>
    %604 = vector.shape_cast %603 : vector<1x1x128x128xbf16> to vector<128x128xbf16>
    %cst_282 = arith.constant dense<0.000000e+00> : vector<16x128xf32>
    %605 = tpu.matmul %602, %604, %cst_282 {dimension_numbers = #tpu.dot_dimension_numbers<[1], [0], [0], [1], [0, 0, 1, 1], [], []>} : vector<16x128xbf16>, vector<128x128xbf16>, vector<16x128xf32> -> vector<16x128xf32>
    %606 = arith.addf %578, %605 : vector<16x128xf32>
    %cst_283 = arith.constant 0.000000e+00 : f32
    %607 = vector.broadcast %cst_283 : f32 to vector<1x128xf32>
    %608 = vector.extract_strided_slice %521 {offsets = [0, 0], sizes = [15, 128], strides = [1, 1]} : vector<16x128xf32> to vector<15x128xf32>
    %609 = tpu.concatenate %607, %608 in 0 : vector<1x128xf32>, vector<15x128xf32> -> vector<16x128xf32>
    %c0_i32_284 = arith.constant 0 : i32
    %610 = vector.broadcast %c0_i32_284 : i32 to vector<16x128xi32>
    %611 = arith.addi %5, %610 : vector<16x128xi32>
    %c-1_i32_285 = arith.constant -1 : i32
    %612 = vector.broadcast %c-1_i32_285 : i32 to vector<16x128xi32>
    %613 = arith.addi %7, %612 : vector<16x128xi32>
    %c0_i32_286 = arith.constant 0 : i32
    %614 = vector.broadcast %c0_i32_286 : i32 to vector<16x128xi32>
    %615 = arith.cmpi sge, %611, %614 : vector<16x128xi32>
    %c4_i32_287 = arith.constant 4 : i32
    %616 = vector.broadcast %c4_i32_287 : i32 to vector<16x128xi32>
    %617 = arith.cmpi slt, %611, %616 : vector<16x128xi32>
    %618 = arith.andi %615, %617 : vector<16x128xi1>
    %c0_i32_288 = arith.constant 0 : i32
    %619 = vector.broadcast %c0_i32_288 : i32 to vector<16x128xi32>
    %620 = arith.cmpi sge, %613, %619 : vector<16x128xi32>
    %621 = arith.andi %618, %620 : vector<16x128xi1>
    %c4_i32_289 = arith.constant 4 : i32
    %622 = vector.broadcast %c4_i32_289 : i32 to vector<16x128xi32>
    %623 = arith.cmpi slt, %613, %622 : vector<16x128xi32>
    %624 = arith.andi %621, %623 : vector<16x128xi1>
    %c16_i32_290 = arith.constant 16 : i32
    %625 = vector.broadcast %c16_i32_290 : i32 to vector<16x128xi32>
    %626 = arith.cmpi slt, %3, %625 : vector<16x128xi32>
    %627 = arith.andi %624, %626 : vector<16x128xi1>
    %cst_291 = arith.constant 0.000000e+00 : f32
    %628 = vector.broadcast %cst_291 : f32 to vector<16x128xf32>
    %629 = arith.select %627, %609, %628 : vector<16x128xi1>, vector<16x128xf32>
    %630 = arith.truncf %629 : vector<16x128xf32> to vector<16x128xbf16>
    %c1_292 = arith.constant 1 : index
    %c3_293 = arith.constant 3 : index
    %c0_294 = arith.constant 0 : index
    %c0_295 = arith.constant 0 : index
    %631 = vector.load %arg4[%c1_292, %c3_293, %c0_294, %c0_295] : memref<2x9x128x128xbf16, #tpu.memory_space<vmem>>, vector<1x1x128x128xbf16>
    %632 = vector.shape_cast %631 : vector<1x1x128x128xbf16> to vector<128x128xbf16>
    %cst_296 = arith.constant dense<0.000000e+00> : vector<16x128xf32>
    %633 = tpu.matmul %630, %632, %cst_296 {dimension_numbers = #tpu.dot_dimension_numbers<[1], [0], [0], [1], [0, 0, 1, 1], [], []>} : vector<16x128xbf16>, vector<128x128xbf16>, vector<16x128xf32> -> vector<16x128xf32>
    %634 = arith.addf %606, %633 : vector<16x128xf32>
    %c0_i32_297 = arith.constant 0 : i32
    %635 = vector.broadcast %c0_i32_297 : i32 to vector<16x128xi32>
    %636 = arith.addi %5, %635 : vector<16x128xi32>
    %c0_i32_298 = arith.constant 0 : i32
    %637 = vector.broadcast %c0_i32_298 : i32 to vector<16x128xi32>
    %638 = arith.addi %7, %637 : vector<16x128xi32>
    %c0_i32_299 = arith.constant 0 : i32
    %639 = vector.broadcast %c0_i32_299 : i32 to vector<16x128xi32>
    %640 = arith.cmpi sge, %636, %639 : vector<16x128xi32>
    %c4_i32_300 = arith.constant 4 : i32
    %641 = vector.broadcast %c4_i32_300 : i32 to vector<16x128xi32>
    %642 = arith.cmpi slt, %636, %641 : vector<16x128xi32>
    %643 = arith.andi %640, %642 : vector<16x128xi1>
    %c0_i32_301 = arith.constant 0 : i32
    %644 = vector.broadcast %c0_i32_301 : i32 to vector<16x128xi32>
    %645 = arith.cmpi sge, %638, %644 : vector<16x128xi32>
    %646 = arith.andi %643, %645 : vector<16x128xi1>
    %c4_i32_302 = arith.constant 4 : i32
    %647 = vector.broadcast %c4_i32_302 : i32 to vector<16x128xi32>
    %648 = arith.cmpi slt, %638, %647 : vector<16x128xi32>
    %649 = arith.andi %646, %648 : vector<16x128xi1>
    %c16_i32_303 = arith.constant 16 : i32
    %650 = vector.broadcast %c16_i32_303 : i32 to vector<16x128xi32>
    %651 = arith.cmpi slt, %3, %650 : vector<16x128xi32>
    %652 = arith.andi %649, %651 : vector<16x128xi1>
    %cst_304 = arith.constant 0.000000e+00 : f32
    %653 = vector.broadcast %cst_304 : f32 to vector<16x128xf32>
    %654 = arith.select %652, %521, %653 : vector<16x128xi1>, vector<16x128xf32>
    %655 = arith.truncf %654 : vector<16x128xf32> to vector<16x128xbf16>
    %c1_305 = arith.constant 1 : index
    %c4_306 = arith.constant 4 : index
    %c0_307 = arith.constant 0 : index
    %c0_308 = arith.constant 0 : index
    %656 = vector.load %arg4[%c1_305, %c4_306, %c0_307, %c0_308] : memref<2x9x128x128xbf16, #tpu.memory_space<vmem>>, vector<1x1x128x128xbf16>
    %657 = vector.shape_cast %656 : vector<1x1x128x128xbf16> to vector<128x128xbf16>
    %cst_309 = arith.constant dense<0.000000e+00> : vector<16x128xf32>
    %658 = tpu.matmul %655, %657, %cst_309 {dimension_numbers = #tpu.dot_dimension_numbers<[1], [0], [0], [1], [0, 0, 1, 1], [], []>} : vector<16x128xbf16>, vector<128x128xbf16>, vector<16x128xf32> -> vector<16x128xf32>
    %659 = arith.addf %634, %658 : vector<16x128xf32>
    %660 = vector.extract_strided_slice %521 {offsets = [1, 0], sizes = [15, 128], strides = [1, 1]} : vector<16x128xf32> to vector<15x128xf32>
    %cst_310 = arith.constant 0.000000e+00 : f32
    %661 = vector.broadcast %cst_310 : f32 to vector<1x128xf32>
    %662 = tpu.concatenate %660, %661 in 0 : vector<15x128xf32>, vector<1x128xf32> -> vector<16x128xf32>
    %c0_i32_311 = arith.constant 0 : i32
    %663 = vector.broadcast %c0_i32_311 : i32 to vector<16x128xi32>
    %664 = arith.addi %5, %663 : vector<16x128xi32>
    %c1_i32_312 = arith.constant 1 : i32
    %665 = vector.broadcast %c1_i32_312 : i32 to vector<16x128xi32>
    %666 = arith.addi %7, %665 : vector<16x128xi32>
    %c0_i32_313 = arith.constant 0 : i32
    %667 = vector.broadcast %c0_i32_313 : i32 to vector<16x128xi32>
    %668 = arith.cmpi sge, %664, %667 : vector<16x128xi32>
    %c4_i32_314 = arith.constant 4 : i32
    %669 = vector.broadcast %c4_i32_314 : i32 to vector<16x128xi32>
    %670 = arith.cmpi slt, %664, %669 : vector<16x128xi32>
    %671 = arith.andi %668, %670 : vector<16x128xi1>
    %c0_i32_315 = arith.constant 0 : i32
    %672 = vector.broadcast %c0_i32_315 : i32 to vector<16x128xi32>
    %673 = arith.cmpi sge, %666, %672 : vector<16x128xi32>
    %674 = arith.andi %671, %673 : vector<16x128xi1>
    %c4_i32_316 = arith.constant 4 : i32
    %675 = vector.broadcast %c4_i32_316 : i32 to vector<16x128xi32>
    %676 = arith.cmpi slt, %666, %675 : vector<16x128xi32>
    %677 = arith.andi %674, %676 : vector<16x128xi1>
    %c16_i32_317 = arith.constant 16 : i32
    %678 = vector.broadcast %c16_i32_317 : i32 to vector<16x128xi32>
    %679 = arith.cmpi slt, %3, %678 : vector<16x128xi32>
    %680 = arith.andi %677, %679 : vector<16x128xi1>
    %cst_318 = arith.constant 0.000000e+00 : f32
    %681 = vector.broadcast %cst_318 : f32 to vector<16x128xf32>
    %682 = arith.select %680, %662, %681 : vector<16x128xi1>, vector<16x128xf32>
    %683 = arith.truncf %682 : vector<16x128xf32> to vector<16x128xbf16>
    %c1_319 = arith.constant 1 : index
    %c5_320 = arith.constant 5 : index
    %c0_321 = arith.constant 0 : index
    %c0_322 = arith.constant 0 : index
    %684 = vector.load %arg4[%c1_319, %c5_320, %c0_321, %c0_322] : memref<2x9x128x128xbf16, #tpu.memory_space<vmem>>, vector<1x1x128x128xbf16>
    %685 = vector.shape_cast %684 : vector<1x1x128x128xbf16> to vector<128x128xbf16>
    %cst_323 = arith.constant dense<0.000000e+00> : vector<16x128xf32>
    %686 = tpu.matmul %683, %685, %cst_323 {dimension_numbers = #tpu.dot_dimension_numbers<[1], [0], [0], [1], [0, 0, 1, 1], [], []>} : vector<16x128xbf16>, vector<128x128xbf16>, vector<16x128xf32> -> vector<16x128xf32>
    %687 = arith.addf %659, %686 : vector<16x128xf32>
    %688 = vector.extract_strided_slice %521 {offsets = [3, 0], sizes = [13, 128], strides = [1, 1]} : vector<16x128xf32> to vector<13x128xf32>
    %cst_324 = arith.constant 0.000000e+00 : f32
    %689 = vector.broadcast %cst_324 : f32 to vector<3x128xf32>
    %690 = tpu.concatenate %688, %689 in 0 : vector<13x128xf32>, vector<3x128xf32> -> vector<16x128xf32>
    %c1_i32_325 = arith.constant 1 : i32
    %691 = vector.broadcast %c1_i32_325 : i32 to vector<16x128xi32>
    %692 = arith.addi %5, %691 : vector<16x128xi32>
    %c-1_i32_326 = arith.constant -1 : i32
    %693 = vector.broadcast %c-1_i32_326 : i32 to vector<16x128xi32>
    %694 = arith.addi %7, %693 : vector<16x128xi32>
    %c0_i32_327 = arith.constant 0 : i32
    %695 = vector.broadcast %c0_i32_327 : i32 to vector<16x128xi32>
    %696 = arith.cmpi sge, %692, %695 : vector<16x128xi32>
    %c4_i32_328 = arith.constant 4 : i32
    %697 = vector.broadcast %c4_i32_328 : i32 to vector<16x128xi32>
    %698 = arith.cmpi slt, %692, %697 : vector<16x128xi32>
    %699 = arith.andi %696, %698 : vector<16x128xi1>
    %c0_i32_329 = arith.constant 0 : i32
    %700 = vector.broadcast %c0_i32_329 : i32 to vector<16x128xi32>
    %701 = arith.cmpi sge, %694, %700 : vector<16x128xi32>
    %702 = arith.andi %699, %701 : vector<16x128xi1>
    %c4_i32_330 = arith.constant 4 : i32
    %703 = vector.broadcast %c4_i32_330 : i32 to vector<16x128xi32>
    %704 = arith.cmpi slt, %694, %703 : vector<16x128xi32>
    %705 = arith.andi %702, %704 : vector<16x128xi1>
    %c16_i32_331 = arith.constant 16 : i32
    %706 = vector.broadcast %c16_i32_331 : i32 to vector<16x128xi32>
    %707 = arith.cmpi slt, %3, %706 : vector<16x128xi32>
    %708 = arith.andi %705, %707 : vector<16x128xi1>
    %cst_332 = arith.constant 0.000000e+00 : f32
    %709 = vector.broadcast %cst_332 : f32 to vector<16x128xf32>
    %710 = arith.select %708, %690, %709 : vector<16x128xi1>, vector<16x128xf32>
    %711 = arith.truncf %710 : vector<16x128xf32> to vector<16x128xbf16>
    %c1_333 = arith.constant 1 : index
    %c6_334 = arith.constant 6 : index
    %c0_335 = arith.constant 0 : index
    %c0_336 = arith.constant 0 : index
    %712 = vector.load %arg4[%c1_333, %c6_334, %c0_335, %c0_336] : memref<2x9x128x128xbf16, #tpu.memory_space<vmem>>, vector<1x1x128x128xbf16>
    %713 = vector.shape_cast %712 : vector<1x1x128x128xbf16> to vector<128x128xbf16>
    %cst_337 = arith.constant dense<0.000000e+00> : vector<16x128xf32>
    %714 = tpu.matmul %711, %713, %cst_337 {dimension_numbers = #tpu.dot_dimension_numbers<[1], [0], [0], [1], [0, 0, 1, 1], [], []>} : vector<16x128xbf16>, vector<128x128xbf16>, vector<16x128xf32> -> vector<16x128xf32>
    %715 = arith.addf %687, %714 : vector<16x128xf32>
    %716 = vector.extract_strided_slice %521 {offsets = [4, 0], sizes = [12, 128], strides = [1, 1]} : vector<16x128xf32> to vector<12x128xf32>
    %cst_338 = arith.constant 0.000000e+00 : f32
    %717 = vector.broadcast %cst_338 : f32 to vector<4x128xf32>
    %718 = tpu.concatenate %716, %717 in 0 : vector<12x128xf32>, vector<4x128xf32> -> vector<16x128xf32>
    %c1_i32_339 = arith.constant 1 : i32
    %719 = vector.broadcast %c1_i32_339 : i32 to vector<16x128xi32>
    %720 = arith.addi %5, %719 : vector<16x128xi32>
    %c0_i32_340 = arith.constant 0 : i32
    %721 = vector.broadcast %c0_i32_340 : i32 to vector<16x128xi32>
    %722 = arith.addi %7, %721 : vector<16x128xi32>
    %c0_i32_341 = arith.constant 0 : i32
    %723 = vector.broadcast %c0_i32_341 : i32 to vector<16x128xi32>
    %724 = arith.cmpi sge, %720, %723 : vector<16x128xi32>
    %c4_i32_342 = arith.constant 4 : i32
    %725 = vector.broadcast %c4_i32_342 : i32 to vector<16x128xi32>
    %726 = arith.cmpi slt, %720, %725 : vector<16x128xi32>
    %727 = arith.andi %724, %726 : vector<16x128xi1>
    %c0_i32_343 = arith.constant 0 : i32
    %728 = vector.broadcast %c0_i32_343 : i32 to vector<16x128xi32>
    %729 = arith.cmpi sge, %722, %728 : vector<16x128xi32>
    %730 = arith.andi %727, %729 : vector<16x128xi1>
    %c4_i32_344 = arith.constant 4 : i32
    %731 = vector.broadcast %c4_i32_344 : i32 to vector<16x128xi32>
    %732 = arith.cmpi slt, %722, %731 : vector<16x128xi32>
    %733 = arith.andi %730, %732 : vector<16x128xi1>
    %c16_i32_345 = arith.constant 16 : i32
    %734 = vector.broadcast %c16_i32_345 : i32 to vector<16x128xi32>
    %735 = arith.cmpi slt, %3, %734 : vector<16x128xi32>
    %736 = arith.andi %733, %735 : vector<16x128xi1>
    %cst_346 = arith.constant 0.000000e+00 : f32
    %737 = vector.broadcast %cst_346 : f32 to vector<16x128xf32>
    %738 = arith.select %736, %718, %737 : vector<16x128xi1>, vector<16x128xf32>
    %739 = arith.truncf %738 : vector<16x128xf32> to vector<16x128xbf16>
    %c1_347 = arith.constant 1 : index
    %c7_348 = arith.constant 7 : index
    %c0_349 = arith.constant 0 : index
    %c0_350 = arith.constant 0 : index
    %740 = vector.load %arg4[%c1_347, %c7_348, %c0_349, %c0_350] : memref<2x9x128x128xbf16, #tpu.memory_space<vmem>>, vector<1x1x128x128xbf16>
    %741 = vector.shape_cast %740 : vector<1x1x128x128xbf16> to vector<128x128xbf16>
    %cst_351 = arith.constant dense<0.000000e+00> : vector<16x128xf32>
    %742 = tpu.matmul %739, %741, %cst_351 {dimension_numbers = #tpu.dot_dimension_numbers<[1], [0], [0], [1], [0, 0, 1, 1], [], []>} : vector<16x128xbf16>, vector<128x128xbf16>, vector<16x128xf32> -> vector<16x128xf32>
    %743 = arith.addf %715, %742 : vector<16x128xf32>
    %744 = vector.extract_strided_slice %521 {offsets = [5, 0], sizes = [11, 128], strides = [1, 1]} : vector<16x128xf32> to vector<11x128xf32>
    %cst_352 = arith.constant 0.000000e+00 : f32
    %745 = vector.broadcast %cst_352 : f32 to vector<5x128xf32>
    %746 = tpu.concatenate %744, %745 in 0 : vector<11x128xf32>, vector<5x128xf32> -> vector<16x128xf32>
    %c1_i32_353 = arith.constant 1 : i32
    %747 = vector.broadcast %c1_i32_353 : i32 to vector<16x128xi32>
    %748 = arith.addi %5, %747 : vector<16x128xi32>
    %c1_i32_354 = arith.constant 1 : i32
    %749 = vector.broadcast %c1_i32_354 : i32 to vector<16x128xi32>
    %750 = arith.addi %7, %749 : vector<16x128xi32>
    %c0_i32_355 = arith.constant 0 : i32
    %751 = vector.broadcast %c0_i32_355 : i32 to vector<16x128xi32>
    %752 = arith.cmpi sge, %748, %751 : vector<16x128xi32>
    %c4_i32_356 = arith.constant 4 : i32
    %753 = vector.broadcast %c4_i32_356 : i32 to vector<16x128xi32>
    %754 = arith.cmpi slt, %748, %753 : vector<16x128xi32>
    %755 = arith.andi %752, %754 : vector<16x128xi1>
    %c0_i32_357 = arith.constant 0 : i32
    %756 = vector.broadcast %c0_i32_357 : i32 to vector<16x128xi32>
    %757 = arith.cmpi sge, %750, %756 : vector<16x128xi32>
    %758 = arith.andi %755, %757 : vector<16x128xi1>
    %c4_i32_358 = arith.constant 4 : i32
    %759 = vector.broadcast %c4_i32_358 : i32 to vector<16x128xi32>
    %760 = arith.cmpi slt, %750, %759 : vector<16x128xi32>
    %761 = arith.andi %758, %760 : vector<16x128xi1>
    %c16_i32_359 = arith.constant 16 : i32
    %762 = vector.broadcast %c16_i32_359 : i32 to vector<16x128xi32>
    %763 = arith.cmpi slt, %3, %762 : vector<16x128xi32>
    %764 = arith.andi %761, %763 : vector<16x128xi1>
    %cst_360 = arith.constant 0.000000e+00 : f32
    %765 = vector.broadcast %cst_360 : f32 to vector<16x128xf32>
    %766 = arith.select %764, %746, %765 : vector<16x128xi1>, vector<16x128xf32>
    %767 = arith.truncf %766 : vector<16x128xf32> to vector<16x128xbf16>
    %c1_361 = arith.constant 1 : index
    %c8_362 = arith.constant 8 : index
    %c0_363 = arith.constant 0 : index
    %c0_364 = arith.constant 0 : index
    %768 = vector.load %arg4[%c1_361, %c8_362, %c0_363, %c0_364] : memref<2x9x128x128xbf16, #tpu.memory_space<vmem>>, vector<1x1x128x128xbf16>
    %769 = vector.shape_cast %768 : vector<1x1x128x128xbf16> to vector<128x128xbf16>
    %cst_365 = arith.constant dense<0.000000e+00> : vector<16x128xf32>
    %770 = tpu.matmul %767, %769, %cst_365 {dimension_numbers = #tpu.dot_dimension_numbers<[1], [0], [0], [1], [0, 0, 1, 1], [], []>} : vector<16x128xbf16>, vector<128x128xbf16>, vector<16x128xf32> -> vector<16x128xf32>
    %771 = arith.addf %743, %770 : vector<16x128xf32>
    %cst_366 = arith.constant 0.000000e+00 : f32
    %772 = vector.broadcast %cst_366 : f32 to vector<16x128xf32>
    %773 = arith.maximumf %771, %772 : vector<16x128xf32>
    %774 = arith.truncf %773 : vector<16x128xf32> to vector<16x128xbf16>
    %c1_367 = arith.constant 1 : index
    %c0_368 = arith.constant 0 : index
    %c0_369 = arith.constant 0 : index
    %775 = vector.load %arg5[%c1_367, %c0_368, %c0_369] : memref<2x128x128xbf16, #tpu.memory_space<vmem>>, vector<1x128x128xbf16>
    %776 = vector.shape_cast %775 : vector<1x128x128xbf16> to vector<128x128xbf16>
    %cst_370 = arith.constant dense<0.000000e+00> : vector<16x128xf32>
    %777 = tpu.matmul %774, %776, %cst_370 {dimension_numbers = #tpu.dot_dimension_numbers<[1], [0], [0], [1], [0, 0, 1, 1], [], []>} : vector<16x128xbf16>, vector<128x128xbf16>, vector<16x128xf32> -> vector<16x128xf32>
    %778 = arith.addf %519, %777 : vector<16x128xf32>
    %cst_371 = arith.constant 0.000000e+00 : f32
    %779 = vector.broadcast %cst_371 : f32 to vector<16x128xf32>
    %780 = arith.maximumf %778, %779 : vector<16x128xf32>
    %c0_372 = arith.constant 0 : index
    %c0_373 = arith.constant 0 : index
    %c0_374 = arith.constant 0 : index
    %781 = vector.load %arg6[%c0_372, %c0_373, %c0_374] : memref<1x16x128xf32, #tpu.memory_space<vmem>>, vector<1x16x128xf32>
    %782 = vector.shape_cast %781 : vector<1x16x128xf32> to vector<16x128xf32>
    %783 = vector.shape_cast %780 : vector<16x128xf32> to vector<1x16x128xf32>
    tpu.vector_store %arg6[%c0_372, %c0_373, %c0_374], %783 {strides = array<i32>} : memref<1x16x128xf32, #tpu.memory_space<vmem>>, vector<1x16x128xf32>,
    return
  }
  func.func @transform_0(%arg0: i32) -> (i32, i32, i32) {
    %c0_i32 = arith.constant 0 : i32
    %c0_i32_0 = arith.constant 0 : i32
    %c0_i32_1 = arith.constant 0 : i32
    return %arg0, %c0_i32, %c0_i32_0 : i32, i32, i32
  }
  func.func @transform_1(%arg0: i32) -> (i32, i32) {
    %c0_i32 = arith.constant 0 : i32
    %c0_i32_0 = arith.constant 0 : i32
    %c0_i32_1 = arith.constant 0 : i32
    return %c0_i32, %c0_i32_0 : i32, i32
  }
  func.func @transform_2(%arg0: i32) -> (i32, i32, i32) {
    %c0_i32 = arith.constant 0 : i32
    %c0_i32_0 = arith.constant 0 : i32
    %c0_i32_1 = arith.constant 0 : i32
    %c0_i32_2 = arith.constant 0 : i32
    return %c0_i32, %c0_i32_0, %c0_i32_1 : i32, i32, i32
  }
  func.func @transform_3(%arg0: i32) -> (i32, i32, i32, i32) {
    %c0_i32 = arith.constant 0 : i32
    %c0_i32_0 = arith.constant 0 : i32
    %c0_i32_1 = arith.constant 0 : i32
    %c0_i32_2 = arith.constant 0 : i32
    %c0_i32_3 = arith.constant 0 : i32
    return %c0_i32, %c0_i32_0, %c0_i32_1, %c0_i32_2 : i32, i32, i32, i32
  }
  func.func @transform_4(%arg0: i32) -> (i32, i32, i32) {
    %c0_i32 = arith.constant 0 : i32
    %c0_i32_0 = arith.constant 0 : i32
    %c0_i32_1 = arith.constant 0 : i32
    %c0_i32_2 = arith.constant 0 : i32
    return %c0_i32, %c0_i32_0, %c0_i32_1 : i32, i32, i32
  }
  func.func @transform_5(%arg0: i32) -> (i32, i32, i32) {
    %c0_i32 = arith.constant 0 : i32
    %c0_i32_0 = arith.constant 0 : i32
    %c0_i32_1 = arith.constant 0 : i32
    return %arg0, %c0_i32, %c0_i32_0 : i32, i32, i32
  }
}

</mosaic_0001>

<llo_original>
// kernel: encoder_forward.3
$region0: #{encoder_forward.3}
  #allocation0 [shape = 'u32[]', space=smem, size = 0x4, offset = 0x4, fixed_abs, tag = 'smem constant byte address 0x4 - core index']
  #allocation1 [shape = 'u32[144,128]{1,0:T(1,128)}', space=vmem, size = 0x12000, scoped, tag = 'internal scratch']
  %s0 = inlined_call_operand.vmem [shape: bf16[128,128], index: 0, kind: input, shape index: {}]
  %s1 = inlined_call_operand.vmem [shape: bf16[128,128], index: 1, kind: input, shape index: {}]
  %s2 = inlined_call_operand.vmem [shape: f32[1,128], index: 2, kind: input, shape index: {}]
  %s3 = inlined_call_operand.vmem [shape: bf16[128,128], index: 3, kind: output, shape index: {}]
  %s4 = sld [smem:[#allocation0]]
  $region45: #{encoder_forward.3} parent=0
    _
  %s6 = ssub.s32 1, %s4
  %s7 = scalar_select 0, %s6, %s4
  loop: start=0, step=1, limit=4
  $region2: #{encoder_forward.3} parent=0 // loop_pre_header
    _
  $region3: #{encoder_forward.3} parent=0 // loop_header
    %s9 = sphi 0, %s13
    %p10 = scmp.ge.s32.totalorder %s9, 4
    %s19 = sphi 0, %s21
    %s22 = sphi 0, %s19
    %s23 = sphi 0, %s22
    %s39 = sphi 0, %s23
    %s43 = sphi 0, %s43
    %s45 = sphi 0, %s43
    %s46 = sphi 0, %s45
    %s60 = sphi 0, %s46
    %s64 = sphi 0, %s64
    %s66 = sphi 0, %s64
    %s67 = sphi 0, %s66
    %s81 = sphi 0, %s67
    %s87 = sphi 0, %s89
    %s90 = sphi 0, %s87
    %s91 = sphi 0, %s90
    %s107 = sphi 0, %s91
  $region4: #{encoder_forward.3} parent=0 // loop_header_branch
    %12 = sbr.rel (%p10) target = $region8
  $region5: #{encoder_forward.3} parent=0 // loop_body
    %s14 = ssub.s32 %s9, 1
    %s15 = ssub.s32 %s9, 2
    %s16 = sadd.s32 %s9, 1
    %s17 = ssub.s32 %s9, %s16
    %p18 = scmp.eq.s32.totalorder %s17, 0
    %s20 = sadd.s32 %s19, 1
    %s21 = scalar_select %p18, %s19, %s20
    %p24 = pneg %p18
    %p25 = scmp.eq.s32.totalorder %s9, 1
    %p26 = por %p24, %p25
    %p27 = scmp.ne.s32.totalorder %s19, %s22
    %p28 = scmp.eq.s32.totalorder %s9, 0
    %p29 = por %p27, %p28
    %p30 = scmp.ne.s32.totalorder %s19, %s22
    %p31 = scmp.eq.s32.totalorder %s14, 1
    %p32 = por %p30, %p31
    %p33 = scmp.ne.s32.totalorder %s22, %s23
    %p34 = scmp.eq.s32.totalorder %s14, 0
    %p35 = por %p33, %p34
    %p36 = scmp.ne.s32.totalorder %s22, %s23
    %p37 = scmp.eq.s32.totalorder %s15, 1
    %p38 = por %p36, %p37
    %p40 = scmp.ne.s32.totalorder %s23, %s39
    %p41 = scmp.eq.s32.totalorder %s15, 0
    %p42 = por %p40, %p41
    %s44 = sadd.s32 %s43, 1
    %p47 = scmp.eq.s32.totalorder %s9, 1
    %p48 = scmp.ne.s32.totalorder %s43, %s45
    %p49 = scmp.eq.s32.totalorder %s9, 0
    %p50 = por %p48, %p49
    %p51 = scmp.ne.s32.totalorder %s43, %s45
    %p52 = scmp.eq.s32.totalorder %s14, 1
    %p53 = por %p51, %p52
    %p54 = scmp.ne.s32.totalorder %s45, %s46
    %p55 = scmp.eq.s32.totalorder %s14, 0
    %p56 = por %p54, %p55
    %p57 = scmp.ne.s32.totalorder %s45, %s46
    %p58 = scmp.eq.s32.totalorder %s15, 1
    %p59 = por %p57, %p58
    %p61 = scmp.ne.s32.totalorder %s46, %s60
    %p62 = scmp.eq.s32.totalorder %s15, 0
    %p63 = por %p61, %p62
    %s65 = sadd.s32 %s64, 1
    %p68 = scmp.eq.s32.totalorder %s9, 1
    %p69 = scmp.ne.s32.totalorder %s64, %s66
    %p70 = scmp.eq.s32.totalorder %s9, 0
    %p71 = por %p69, %p70
    %p72 = scmp.ne.s32.totalorder %s64, %s66
    %p73 = scmp.eq.s32.totalorder %s14, 1
    %p74 = por %p72, %p73
    %p75 = scmp.ne.s32.totalorder %s66, %s67
    %p76 = scmp.eq.s32.totalorder %s14, 0
    %p77 = por %p75, %p76
    %p78 = scmp.ne.s32.totalorder %s66, %s67
    %p79 = scmp.eq.s32.totalorder %s15, 1
    %p80 = por %p78, %p79
    %p82 = scmp.ne.s32.totalorder %s67, %s81
    %p83 = scmp.eq.s32.totalorder %s15, 0
    %p84 = por %p82, %p83
    %s85 = ssub.s32 %s9, %s16
    %p86 = scmp.eq.s32.totalorder %s85, 0
    %s88 = sadd.s32 %s87, 1
    %s89 = scalar_select %p86, %s87, %s88
    %p92 = pneg %p86
    %p93 = scmp.eq.s32.totalorder %s9, 1
    %p94 = por %p92, %p93
    %p95 = scmp.ne.s32.totalorder %s87, %s90
    %p96 = scmp.eq.s32.totalorder %s9, 0
    %p97 = por %p95, %p96
    %p98 = scmp.ne.s32.totalorder %s87, %s90
    %p99 = scmp.eq.s32.totalorder %s14, 1
    %p100 = por %p98, %p99
    %p101 = scmp.ne.s32.totalorder %s90, %s91
    %p102 = scmp.eq.s32.totalorder %s14, 0
    %p103 = por %p101, %p102
    %p104 = scmp.ne.s32.totalorder %s90, %s91
    %p105 = scmp.eq.s32.totalorder %s15, 1
    %p106 = por %p104, %p105
    %p108 = scmp.ne.s32.totalorder %s91, %s107
    %p109 = scmp.eq.s32.totalorder %s15, 0
    %p110 = por %p108, %p109
    %p111 = scmp.le.s32.totalorder 1, %s9
    %p112 = scmp.lt.s32.totalorder %s9, 3
    %p113 = pnand %p111, %p112
    %p114 = pneg %p113
    // Predicated region
    $region9: #{encoder_forward.3} parent=5 // pred_check
      _
    $region10: #{encoder_forward.3} parent=5 // pred_check_branch
      %116 = sbr.rel (%p113) target = $region12
    $region11: #{encoder_forward.3} parent=5 // pred_region
      %s117 = ssub.s32 %s9, 1
      // Predicated region
      $region13: #{encoder_forward.3} parent=11 // pred_check
        %p118 = pneg %p56
      $region14: #{encoder_forward.3} parent=11 // pred_check_branch
        %120 = sbr.rel (%p118) target = $region16
      $region15: #{encoder_forward.3} parent=11 // pred_region
        _
      $region16: #{encoder_forward.3} parent=11 // pred_fallthru
        _
      // Predicated region
      $region17: #{encoder_forward.3} parent=11 // pred_check
        %p121 = pneg %p77
      $region18: #{encoder_forward.3} parent=11 // pred_check_branch
        %123 = sbr.rel (%p121) target = $region20
      $region19: #{encoder_forward.3} parent=11 // pred_region
        _
      $region20: #{encoder_forward.3} parent=11 // pred_fallthru
        _
    $region12: #{encoder_forward.3} parent=5 // pred_fallthru
      _
    %p124 = scmp.lt.s32.totalorder %s9, 2
    // Predicated region
    $region21: #{encoder_forward.3} parent=5 // pred_check
      %p125 = pneg %p124
    $region22: #{encoder_forward.3} parent=5 // pred_check_branch
      %127 = sbr.rel (%p125) target = $region24
    $region23: #{encoder_forward.3} parent=5 // pred_region
      // Predicated region
      $region25: #{encoder_forward.3} parent=23 // pred_check
        %p128 = pneg %p29
      $region26: #{encoder_forward.3} parent=23 // pred_check_branch
        %130 = sbr.rel (%p128) target = $region28
      $region27: #{encoder_forward.3} parent=23 // pred_region
        %s131 = smul.u32 8, %s9
        %p132 = scmp.lt.s32.totalorder %s131, 15
        %s133 = scalar_select %p132, %s131, 15
        %s134 = smul.addr %s133, 4
        %s135 = scalar_lea.vmem %s0, %s134
        %s136 = smul.u32 8, %s9
      $region28: #{encoder_forward.3} parent=23 // pred_fallthru
        _
    $region24: #{encoder_forward.3} parent=5 // pred_fallthru
      _
    %p137 = scmp.le.s32.totalorder 1, %s9
    %p138 = scmp.lt.s32.totalorder %s9, 3
    %p139 = pnand %p137, %p138
    %p140 = pneg %p139
    // Predicated region
    $region29: #{encoder_forward.3} parent=5 // pred_check
      _
    $region30: #{encoder_forward.3} parent=5 // pred_check_branch
      %142 = sbr.rel (%p139) target = $region32
    $region31: #{encoder_forward.3} parent=5 // pred_region
      %s143 = ssub.s32 %s9, 1
      %s144 = smul.u32 8, %s14
      %p145 = scmp.lt.s32.totalorder %s144, 15
      %s146 = scalar_select %p145, %s144, 15
      %s147 = smul.addr %s146, 4
      %s148 = scalar_lea.vmem %s0, %s147
      %p149 = pneg %p35
      %p150 = pneg %p32
      %p151 = pneg %p56
      %p152 = pneg %p53
      %p153 = pneg %p77
      %p154 = pneg %p74
      %p155 = pneg %p103
      %p156 = pneg %p100
      %s157 = smul.u32 8, %s14
      %p158 = scmp.lt.s32.totalorder %s157, 15
      %s159 = scalar_select %p158, %s157, 15
      %s160 = smul.addr %s159, 4
      %s161 = scalar_lea.vmem %s3, %s160
      %s162 = smul.u32 8, %s14
      %p163 = scmp.lt.s32.totalorder %s162, 15
      %s164 = scalar_select %p163, %s162, 15
      %s165 = smul.addr %s164, 4
      %s166 = scalar_lea.vmem %s0, %s165
      %s167 = smul.u32 8, %s14
      %s168 = smul.u32 8, %s14
      %p169 = scmp.lt.s32.totalorder %s168, 15
      %s170 = scalar_select %p169, %s168, 15
      %s171 = smul.addr %s170, 4
      %s172 = scalar_lea.vmem %s3, %s171
      %s173 = smul.u32 8, %s14
      %v175 = vld [vmem:[%s166] sm:$0xf]
      %v176 = vld [vmem:[%s166 + $0x4] sm:$0xf]
      %v177 = vld [vmem:[%s166 + $0x8] sm:$0xf]
      %v178 = vld [vmem:[%s166 + $0xc] sm:$0xf]
      %v179 = vld [vmem:[%s166 + $0x10] sm:$0xf]
      %v180 = vld [vmem:[%s166 + $0x14] sm:$0xf]
      %v181 = vld [vmem:[%s166 + $0x18] sm:$0xf]
      %v182 = vld [vmem:[%s166 + $0x1c] sm:$0xf]
      %v183 = vld [vmem:[%s1] sm:$0xf]
      %v184 = vld [vmem:[%s1 + $0x4] sm:$0xf]
      %v185 = vld [vmem:[%s1 + $0x8] sm:$0xf]
      %v186 = vld [vmem:[%s1 + $0xc] sm:$0xf]
      %v187 = vld [vmem:[%s1 + $0x10] sm:$0xf]
      %v188 = vld [vmem:[%s1 + $0x14] sm:$0xf]
      %v189 = vld [vmem:[%s1 + $0x18] sm:$0xf]
      %v190 = vld [vmem:[%s1 + $0x1c] sm:$0xf]
      %v191 = vld [vmem:[%s1 + $0x20] sm:$0xf]
      %v192 = vld [vmem:[%s1 + $0x24] sm:$0xf]
      %v193 = vld [vmem:[%s1 + $0x28] sm:$0xf]
      %v194 = vld [vmem:[%s1 + $0x2c] sm:$0xf]
      %v195 = vld [vmem:[%s1 + $0x30] sm:$0xf]
      %v196 = vld [vmem:[%s1 + $0x34] sm:$0xf]
      %v197 = vld [vmem:[%s1 + $0x38] sm:$0xf]
      %v198 = vld [vmem:[%s1 + $0x3c] sm:$0xf]
      %v199 = vld [vmem:[%s2] sm:$0x1]
      %v201 = vlaneseq
      %v202 = vshrl.u32 %v201, 7
      %v203 = vsub.s32 0, %v202
      %v204 = vrot.slane %v199, %v203
      %v214 = vunpack.c.l.b16 %v175
      %v215 = vunpack.c.l.b16 %v176
      %v216 = vunpack.c.l.b16 %v177
      %v217 = vunpack.c.l.b16 %v178
      %v218 = vunpack.c.l.b16 %v179
      %v219 = vunpack.c.l.b16 %v180
      %v220 = vunpack.c.l.b16 %v181
      %v221 = vunpack.c.l.b16 %v182
      %v222 = vpack.c.b16 %v215, %v214
      %v223 = vpack.c.b16 %v217, %v216
      %v224 = vpack.c.b16 %v219, %v218
      %v225 = vpack.c.b16 %v221, %v220
      %v246 = vunpack.c.l.b16 %v183
      %v247 = vunpack.c.l.b16 %v184
      %v248 = vunpack.c.l.b16 %v185
      %v249 = vunpack.c.l.b16 %v186
      %v250 = vunpack.c.l.b16 %v187
      %v251 = vunpack.c.l.b16 %v188
      %v252 = vunpack.c.l.b16 %v189
      %v253 = vunpack.c.l.b16 %v190
      %v254 = vunpack.c.l.b16 %v191
      %v255 = vunpack.c.l.b16 %v192
      %v256 = vunpack.c.l.b16 %v193
      %v257 = vunpack.c.l.b16 %v194
      %v258 = vunpack.c.l.b16 %v195
      %v259 = vunpack.c.l.b16 %v196
      %v260 = vunpack.c.l.b16 %v197
      %v261 = vunpack.c.l.b16 %v198
      %v262 = vpack.c.b16 %v247, %v246
      %v263 = vpack.c.b16 %v249, %v248
      %v264 = vpack.c.b16 %v251, %v250
      %v265 = vpack.c.b16 %v253, %v252
      %v266 = vpack.c.b16 %v255, %v254
      %v267 = vpack.c.b16 %v257, %v256
      %v268 = vpack.c.b16 %v259, %v258
      %v269 = vpack.c.b16 %v261, %v260
      %278 = vmatprep.subr.bf16.mxu0 0
      %279 = vmatpush1.bf16.msra.mxu0 %v262
      %280 = vmatprep.subr.bf16.mxu0 0
      %281 = vmatpush1.bf16.msra.mxu0 %v263
      %282 = vmatprep.subr.bf16.mxu0 0
      %283 = vmatpush1.bf16.msra.mxu0 %v264
      %284 = vmatprep.subr.bf16.mxu0 0
      %285 = vmatpush1.bf16.msra.mxu0 %v265
      %286 = vmatprep.subr.bf16.mxu0 0
      %287 = vmatpush1.bf16.msra.mxu0 %v266
      %288 = vmatprep.subr.bf16.mxu0 0
      %289 = vmatpush1.bf16.msra.mxu0 %v267
      %290 = vmatprep.subr.bf16.mxu0 0
      %291 = vmatpush1.bf16.msra.mxu0 %v268
      %292 = vmatprep.subr.bf16.mxu0 0
      %293 = vmatpush1.bf16.msra.mxu0 %v269
      %294 = vmatprep.subr.bf16.mxu0 0
      %295 = vmatpush1.bf16.msra.mxu0 0
      %296 = vmatprep.subr.bf16.mxu0 0
      %297 = vmatpush1.bf16.msra.mxu0 0
      %298 = vmatprep.subr.bf16.mxu0 0
      %299 = vmatpush1.bf16.msra.mxu0 0
      %300 = vmatprep.subr.bf16.mxu0 0
      %301 = vmatpush1.bf16.msra.mxu0 0
      %302 = vmatprep.subr.bf16.mxu0 0
      %303 = vmatpush1.bf16.msra.mxu0 0
      %304 = vmatprep.subr.bf16.mxu0 0
      %305 = vmatpush1.bf16.msra.mxu0 0
      %306 = vmatprep.subr.bf16.mxu0 0
      %307 = vmatpush1.bf16.msra.mxu0 0
      %308 = vmatprep.subr.bf16.mxu0 0
      %309 = vmatpush1.bf16.msra.mxu0 0
      %310 = vmatprep.mubr.bf16.mxu0 0
      %311 = vmatmul.mubr.bf16.gmra.mrb[0].mxu0 %v222
      %v312 = vpop.f32.mrb[0].mxu0
      %v313 = vadd.f32 %v204, %v312
      %v314 = vpop.f32.mrb[0].mxu0
      %v315 = vpop.f32.mrb[0].mxu0
      %v316 = vadd.f32 %v204, %v315
      %v317 = vpop.f32.mrb[0].mxu0
      %318 = vmatprep.mubr.bf16.mxu0 0
      %319 = vmatmul.mubr.bf16.gmra.mrb[0].mxu0 %v223
      %v320 = vpop.f32.mrb[0].mxu0
      %v321 = vadd.f32 %v204, %v320
      %v322 = vpop.f32.mrb[0].mxu0
      %v323 = vpop.f32.mrb[0].mxu0
      %v324 = vadd.f32 %v204, %v323
      %v325 = vpop.f32.mrb[0].mxu0
      %326 = vmatprep.mubr.bf16.mxu0 0
      %327 = vmatmul.mubr.bf16.gmra.mrb[0].mxu0 %v224
      %v328 = vpop.f32.mrb[0].mxu0
      %v329 = vadd.f32 %v204, %v328
      %v330 = vpop.f32.mrb[0].mxu0
      %v331 = vpop.f32.mrb[0].mxu0
      %v332 = vadd.f32 %v204, %v331
      %v333 = vpop.f32.mrb[0].mxu0
      %334 = vmatprep.mubr.bf16.mxu0 0
      %335 = vmatmul.mubr.bf16.gmra.mrb[0].mxu0 %v225
      %v336 = vpop.f32.mrb[0].mxu0
      %v337 = vadd.f32 %v204, %v336
      %v338 = vpop.f32.mrb[0].mxu0
      %v339 = vpop.f32.mrb[0].mxu0
      %v340 = vadd.f32 %v204, %v339
      %v341 = vpop.f32.mrb[0].mxu0
      %342 = vdwg.mxu0
      %v343 = vmax.f32 %v313, 0.0
      %v344 = vmax.f32 %v316, 0.0
      %v345 = vmax.f32 %v321, 0.0
      %v346 = vmax.f32 %v324, 0.0
      %v347 = vmax.f32 %v329, 0.0
      %v348 = vmax.f32 %v332, 0.0
      %v349 = vmax.f32 %v337, 0.0
      %v350 = vmax.f32 %v340, 0.0
      %v351 = vpack.c.bf16 %v344, %v343
      %v352 = vpack.c.bf16 %v346, %v345
      %v353 = vpack.c.bf16 %v348, %v347
      %v354 = vpack.c.bf16 %v350, %v349
      %v359 = vunpack.c.l.b16 %v351
      %v360 = vunpack.c.h.b16 %v351
      %v361 = vunpack.c.l.b16 %v352
      %v362 = vunpack.c.h.b16 %v352
      %v363 = vunpack.c.l.b16 %v353
      %v364 = vunpack.c.h.b16 %v353
      %v365 = vunpack.c.l.b16 %v354
      %v366 = vunpack.c.h.b16 %v354
      %v367 = vpack.c.b16 %v359, %v359
      %v368 = vpack.c.b16 %v360, %v360
      %v369 = vpack.c.b16 %v361, %v361
      %v370 = vpack.c.b16 %v362, %v362
      %v371 = vpack.c.b16 %v363, %v363
      %v372 = vpack.c.b16 %v364, %v364
      %v373 = vpack.c.b16 %v365, %v365
      %v374 = vpack.c.b16 %v366, %v366
      %383 = vst [vmem:[%s172] sm:$0xf] %v367
      %384 = vst [vmem:[%s172 + $0x4] sm:$0xf] %v368
      %385 = vst [vmem:[%s172 + $0x8] sm:$0xf] %v369
      %386 = vst [vmem:[%s172 + $0xc] sm:$0xf] %v370
      %387 = vst [vmem:[%s172 + $0x10] sm:$0xf] %v371
      %388 = vst [vmem:[%s172 + $0x14] sm:$0xf] %v372
      %389 = vst [vmem:[%s172 + $0x18] sm:$0xf] %v373
      %390 = vst [vmem:[%s172 + $0x1c] sm:$0xf] %v374
      %s391 = smul.u32 8, %s14
      %p392 = scmp.lt.s32.totalorder %s391, 15
      %s393 = scalar_select %p392, %s391, 15
      %s394 = smul.addr %s393, 4
      %s395 = scalar_lea.vmem %s3, %s394
      // Predicated region
      $region33: #{encoder_forward.3} parent=31 // pred_check
        %p396 = pneg %p100
      $region34: #{encoder_forward.3} parent=31 // pred_check_branch
        %398 = sbr.rel (%p396) target = $region36
      $region35: #{encoder_forward.3} parent=31 // pred_region
        %s399 = smul.u32 8, %s14
      $region36: #{encoder_forward.3} parent=31 // pred_fallthru
        _
    $region32: #{encoder_forward.3} parent=5 // pred_fallthru
      _
    %p400 = scmp.le.s32.totalorder 2, %s9
    // Predicated region
    $region37: #{encoder_forward.3} parent=5 // pred_check
      %p401 = pneg %p400
    $region38: #{encoder_forward.3} parent=5 // pred_check_branch
      %403 = sbr.rel (%p401) target = $region40
    $region39: #{encoder_forward.3} parent=5 // pred_region
      %s404 = ssub.s32 %s9, 2
      // Predicated region
      $region41: #{encoder_forward.3} parent=39 // pred_check
        %p405 = pneg %p106
      $region42: #{encoder_forward.3} parent=39 // pred_check_branch
        %407 = sbr.rel (%p405) target = $region44
      $region43: #{encoder_forward.3} parent=39 // pred_region
        %s408 = smul.u32 8, %s15
        %p409 = scmp.lt.s32.totalorder %s408, 15
        %s410 = scalar_select %p409, %s408, 15
        %s411 = smul.addr %s410, 4
        %s412 = scalar_lea.vmem %s3, %s411
      $region44: #{encoder_forward.3} parent=39 // pred_fallthru
        _
    $region40: #{encoder_forward.3} parent=5 // pred_fallthru
      _
  $region6: #{encoder_forward.3} parent=0 // loop_footer
    %s13 = sadd.s32 1, %s9
  $region7: #{encoder_forward.3} parent=0 // loop_footer_branch
    %8 = sbr.rel target = $region3
  $region8: #{encoder_forward.3} parent=0 // loop_exit
    _

// kernel: encoder_forward.4
$region0: #{encoder_forward.4}
  #allocation0 [shape = 'u32[]', space=smem, size = 0x4, offset = 0x4, fixed_abs, tag = 'smem constant byte address 0x4 - core index']
  #allocation1 [shape = 'u32[144,128]{1,0:T(1,128)}', space=vmem, size = 0x12000, scoped, tag = 'internal scratch']
  %s0 = inlined_call_operand.vmem [shape: bf16[32,256], index: 0, kind: input, shape index: {}]
  %s1 = inlined_call_operand.vmem [shape: bf16[256,128], index: 1, kind: input, shape index: {}]
  %s2 = inlined_call_operand.vmem [shape: f32[1,128], index: 2, kind: input, shape index: {}]
  %s3 = inlined_call_operand.vmem [shape: bf16[32,128], index: 3, kind: output, shape index: {}]
  %s4 = sld [smem:[#allocation0]]
  $region45: #{encoder_forward.4} parent=0
    _
  %s6 = ssub.s32 1, %s4
  %s7 = scalar_select 0, %s6, %s4
  loop: start=0, step=1, limit=4
  $region2: #{encoder_forward.4} parent=0 // loop_pre_header
    _
  $region3: #{encoder_forward.4} parent=0 // loop_header
    %s9 = sphi 0, %s13
    %p10 = scmp.ge.s32.totalorder %s9, 4
    %s19 = sphi 0, %s21
    %s22 = sphi 0, %s19
    %s23 = sphi 0, %s22
    %s39 = sphi 0, %s23
    %s43 = sphi 0, %s43
    %s45 = sphi 0, %s43
    %s46 = sphi 0, %s45
    %s60 = sphi 0, %s46
    %s64 = sphi 0, %s64
    %s66 = sphi 0, %s64
    %s67 = sphi 0, %s66
    %s81 = sphi 0, %s67
    %s87 = sphi 0, %s89
    %s90 = sphi 0, %s87
    %s91 = sphi 0, %s90
    %s107 = sphi 0, %s91
  $region4: #{encoder_forward.4} parent=0 // loop_header_branch
    %12 = sbr.rel (%p10) target = $region8
  $region5: #{encoder_forward.4} parent=0 // loop_body
    %s14 = ssub.s32 %s9, 1
    %s15 = ssub.s32 %s9, 2
    %s16 = sadd.s32 %s9, 1
    %s17 = ssub.s32 %s9, %s16
    %p18 = scmp.eq.s32.totalorder %s17, 0
    %s20 = sadd.s32 %s19, 1
    %s21 = scalar_select %p18, %s19, %s20
    %p24 = pneg %p18
    %p25 = scmp.eq.s32.totalorder %s9, 1
    %p26 = por %p24, %p25
    %p27 = scmp.ne.s32.totalorder %s19, %s22
    %p28 = scmp.eq.s32.totalorder %s9, 0
    %p29 = por %p27, %p28
    %p30 = scmp.ne.s32.totalorder %s19, %s22
    %p31 = scmp.eq.s32.totalorder %s14, 1
    %p32 = por %p30, %p31
    %p33 = scmp.ne.s32.totalorder %s22, %s23
    %p34 = scmp.eq.s32.totalorder %s14, 0
    %p35 = por %p33, %p34
    %p36 = scmp.ne.s32.totalorder %s22, %s23
    %p37 = scmp.eq.s32.totalorder %s15, 1
    %p38 = por %p36, %p37
    %p40 = scmp.ne.s32.totalorder %s23, %s39
    %p41 = scmp.eq.s32.totalorder %s15, 0
    %p42 = por %p40, %p41
    %s44 = sadd.s32 %s43, 1
    %p47 = scmp.eq.s32.totalorder %s9, 1
    %p48 = scmp.ne.s32.totalorder %s43, %s45
    %p49 = scmp.eq.s32.totalorder %s9, 0
    %p50 = por %p48, %p49
    %p51 = scmp.ne.s32.totalorder %s43, %s45
    %p52 = scmp.eq.s32.totalorder %s14, 1
    %p53 = por %p51, %p52
    %p54 = scmp.ne.s32.totalorder %s45, %s46
    %p55 = scmp.eq.s32.totalorder %s14, 0
    %p56 = por %p54, %p55
    %p57 = scmp.ne.s32.totalorder %s45, %s46
    %p58 = scmp.eq.s32.totalorder %s15, 1
    %p59 = por %p57, %p58
    %p61 = scmp.ne.s32.totalorder %s46, %s60
    %p62 = scmp.eq.s32.totalorder %s15, 0
    %p63 = por %p61, %p62
    %s65 = sadd.s32 %s64, 1
    %p68 = scmp.eq.s32.totalorder %s9, 1
    %p69 = scmp.ne.s32.totalorder %s64, %s66
    %p70 = scmp.eq.s32.totalorder %s9, 0
    %p71 = por %p69, %p70
    %p72 = scmp.ne.s32.totalorder %s64, %s66
    %p73 = scmp.eq.s32.totalorder %s14, 1
    %p74 = por %p72, %p73
    %p75 = scmp.ne.s32.totalorder %s66, %s67
    %p76 = scmp.eq.s32.totalorder %s14, 0
    %p77 = por %p75, %p76
    %p78 = scmp.ne.s32.totalorder %s66, %s67
    %p79 = scmp.eq.s32.totalorder %s15, 1
    %p80 = por %p78, %p79
    %p82 = scmp.ne.s32.totalorder %s67, %s81
    %p83 = scmp.eq.s32.totalorder %s15, 0
    %p84 = por %p82, %p83
    %s85 = ssub.s32 %s9, %s16
    %p86 = scmp.eq.s32.totalorder %s85, 0
    %s88 = sadd.s32 %s87, 1
    %s89 = scalar_select %p86, %s87, %s88
    %p92 = pneg %p86
    %p93 = scmp.eq.s32.totalorder %s9, 1
    %p94 = por %p92, %p93
    %p95 = scmp.ne.s32.totalorder %s87, %s90
    %p96 = scmp.eq.s32.totalorder %s9, 0
    %p97 = por %p95, %p96
    %p98 = scmp.ne.s32.totalorder %s87, %s90
    %p99 = scmp.eq.s32.totalorder %s14, 1
    %p100 = por %p98, %p99
    %p101 = scmp.ne.s32.totalorder %s90, %s91
    %p102 = scmp.eq.s32.totalorder %s14, 0
    %p103 = por %p101, %p102
    %p104 = scmp.ne.s32.totalorder %s90, %s91
    %p105 = scmp.eq.s32.totalorder %s15, 1
    %p106 = por %p104, %p105
    %p108 = scmp.ne.s32.totalorder %s91, %s107
    %p109 = scmp.eq.s32.totalorder %s15, 0
    %p110 = por %p108, %p109
    %p111 = scmp.le.s32.totalorder 1, %s9
    %p112 = scmp.lt.s32.totalorder %s9, 3
    %p113 = pnand %p111, %p112
    %p114 = pneg %p113
    // Predicated region
    $region9: #{encoder_forward.4} parent=5 // pred_check
      _
    $region10: #{encoder_forward.4} parent=5 // pred_check_branch
      %116 = sbr.rel (%p113) target = $region12
    $region11: #{encoder_forward.4} parent=5 // pred_region
      %s117 = ssub.s32 %s9, 1
      // Predicated region
      $region13: #{encoder_forward.4} parent=11 // pred_check
        %p118 = pneg %p56
      $region14: #{encoder_forward.4} parent=11 // pred_check_branch
        %120 = sbr.rel (%p118) target = $region16
      $region15: #{encoder_forward.4} parent=11 // pred_region
        _
      $region16: #{encoder_forward.4} parent=11 // pred_fallthru
        _
      // Predicated region
      $region17: #{encoder_forward.4} parent=11 // pred_check
        %p121 = pneg %p77
      $region18: #{encoder_forward.4} parent=11 // pred_check_branch
        %123 = sbr.rel (%p121) target = $region20
      $region19: #{encoder_forward.4} parent=11 // pred_region
        _
      $region20: #{encoder_forward.4} parent=11 // pred_fallthru
        _
    $region12: #{encoder_forward.4} parent=5 // pred_fallthru
      _
    %p124 = scmp.lt.s32.totalorder %s9, 2
    // Predicated region
    $region21: #{encoder_forward.4} parent=5 // pred_check
      %p125 = pneg %p124
    $region22: #{encoder_forward.4} parent=5 // pred_check_branch
      %127 = sbr.rel (%p125) target = $region24
    $region23: #{encoder_forward.4} parent=5 // pred_region
      // Predicated region
      $region25: #{encoder_forward.4} parent=23 // pred_check
        %p128 = pneg %p29
      $region26: #{encoder_forward.4} parent=23 // pred_check_branch
        %130 = sbr.rel (%p128) target = $region28
      $region27: #{encoder_forward.4} parent=23 // pred_region
        %s131 = smul.u32 2, %s9
        %p132 = scmp.lt.s32.totalorder %s131, 3
        %s133 = scalar_select %p132, %s131, 3
        %s134 = smul.addr %s133, 2
        %s135 = smul.addr %s134, 4
        %s136 = scalar_lea.vmem %s0, %s135
        %s137 = smul.u32 2, %s9
      $region28: #{encoder_forward.4} parent=23 // pred_fallthru
        _
    $region24: #{encoder_forward.4} parent=5 // pred_fallthru
      _
    %p138 = scmp.le.s32.totalorder 1, %s9
    %p139 = scmp.lt.s32.totalorder %s9, 3
    %p140 = pnand %p138, %p139
    %p141 = pneg %p140
    // Predicated region
    $region29: #{encoder_forward.4} parent=5 // pred_check
      _
    $region30: #{encoder_forward.4} parent=5 // pred_check_branch
      %143 = sbr.rel (%p140) target = $region32
    $region31: #{encoder_forward.4} parent=5 // pred_region
      %s144 = ssub.s32 %s9, 1
      %s145 = smul.u32 2, %s14
      %p146 = scmp.lt.s32.totalorder %s145, 3
      %s147 = scalar_select %p146, %s145, 3
      %s148 = smul.addr %s147, 2
      %s149 = smul.addr %s148, 4
      %s150 = scalar_lea.vmem %s0, %s149
      %p151 = pneg %p35
      %p152 = pneg %p32
      %p153 = pneg %p56
      %p154 = pneg %p53
      %p155 = pneg %p77
      %p156 = pneg %p74
      %p157 = pneg %p103
      %p158 = pneg %p100
      %s159 = smul.u32 2, %s14
      %p160 = scmp.lt.s32.totalorder %s159, 3
      %s161 = scalar_select %p160, %s159, 3
      %s162 = smul.addr %s161, 4
      %s163 = scalar_lea.vmem %s3, %s162
      %s164 = smul.u32 2, %s14
      %p165 = scmp.lt.s32.totalorder %s164, 3
      %s166 = scalar_select %p165, %s164, 3
      %s167 = smul.addr %s166, 2
      %s168 = smul.addr %s167, 4
      %s169 = scalar_lea.vmem %s0, %s168
      %s170 = smul.u32 2, %s14
      %s171 = smul.u32 2, %s14
      %p172 = scmp.lt.s32.totalorder %s171, 3
      %s173 = scalar_select %p172, %s171, 3
      %s174 = smul.addr %s173, 4
      %s175 = scalar_lea.vmem %s3, %s174
      %s176 = smul.u32 2, %s14
      %v178 = vld [vmem:[%s169] sm:$0xff]
      %v179 = vld [vmem:[%s169 + $0x8] sm:$0xff]
      %v180 = vld [vmem:[%s1] sm:$0xf]
      %v181 = vld [vmem:[%s1 + $0x4] sm:$0xf]
      %v182 = vld [vmem:[%s1 + $0x8] sm:$0xf]
      %v183 = vld [vmem:[%s1 + $0xc] sm:$0xf]
      %v184 = vld [vmem:[%s1 + $0x10] sm:$0xf]
      %v185 = vld [vmem:[%s1 + $0x14] sm:$0xf]
      %v186 = vld [vmem:[%s1 + $0x18] sm:$0xf]
      %v187 = vld [vmem:[%s1 + $0x1c] sm:$0xf]
      %v188 = vld [vmem:[%s1 + $0x20] sm:$0xf]
      %v189 = vld [vmem:[%s1 + $0x24] sm:$0xf]
      %v190 = vld [vmem:[%s1 + $0x28] sm:$0xf]
      %v191 = vld [vmem:[%s1 + $0x2c] sm:$0xf]
      %v192 = vld [vmem:[%s1 + $0x30] sm:$0xf]
      %v193 = vld [vmem:[%s1 + $0x34] sm:$0xf]
      %v194 = vld [vmem:[%s1 + $0x38] sm:$0xf]
      %v195 = vld [vmem:[%s1 + $0x3c] sm:$0xf]
      %v196 = vld [vmem:[%s1 + $0x40] sm:$0xf]
      %v197 = vld [vmem:[%s1 + $0x44] sm:$0xf]
      %v198 = vld [vmem:[%s1 + $0x48] sm:$0xf]
      %v199 = vld [vmem:[%s1 + $0x4c] sm:$0xf]
      %v200 = vld [vmem:[%s1 + $0x50] sm:$0xf]
      %v201 = vld [vmem:[%s1 + $0x54] sm:$0xf]
      %v202 = vld [vmem:[%s1 + $0x58] sm:$0xf]
      %v203 = vld [vmem:[%s1 + $0x5c] sm:$0xf]
      %v204 = vld [vmem:[%s1 + $0x60] sm:$0xf]
      %v205 = vld [vmem:[%s1 + $0x64] sm:$0xf]
      %v206 = vld [vmem:[%s1 + $0x68] sm:$0xf]
      %v207 = vld [vmem:[%s1 + $0x6c] sm:$0xf]
      %v208 = vld [vmem:[%s1 + $0x70] sm:$0xf]
      %v209 = vld [vmem:[%s1 + $0x74] sm:$0xf]
      %v210 = vld [vmem:[%s1 + $0x78] sm:$0xf]
      %v211 = vld [vmem:[%s1 + $0x7c] sm:$0xf]
      %v212 = vld [vmem:[%s2] sm:$0x1]
      %v214 = vlaneseq
      %v215 = vshrl.u32 %v214, 7
      %v216 = vsub.s32 0, %v215
      %v217 = vrot.slane %v212, %v216
      %v221 = vunpack.c.l.b16 %v178
      %v222 = vunpack.c.h.b16 %v178
      %v223 = vunpack.c.l.b16 %v179
      %v224 = vunpack.c.h.b16 %v179
      %v225 = vpack.c.b16 %v223, %v221
      %v226 = vpack.c.b16 %v224, %v222
      %v261 = vunpack.c.l.b16 %v180
      %v262 = vunpack.c.l.b16 %v181
      %v263 = vunpack.c.l.b16 %v182
      %v264 = vunpack.c.l.b16 %v183
      %v265 = vunpack.c.l.b16 %v184
      %v266 = vunpack.c.l.b16 %v185
      %v267 = vunpack.c.l.b16 %v186
      %v268 = vunpack.c.l.b16 %v187
      %v269 = vunpack.c.l.b16 %v188
      %v270 = vunpack.c.l.b16 %v189
      %v271 = vunpack.c.l.b16 %v190
      %v272 = vunpack.c.l.b16 %v191
      %v273 = vunpack.c.l.b16 %v192
      %v274 = vunpack.c.l.b16 %v193
      %v275 = vunpack.c.l.b16 %v194
      %v276 = vunpack.c.l.b16 %v195
      %v277 = vunpack.c.l.b16 %v196
      %v278 = vunpack.c.l.b16 %v197
      %v279 = vunpack.c.l.b16 %v198
      %v280 = vunpack.c.l.b16 %v199
      %v281 = vunpack.c.l.b16 %v200
      %v282 = vunpack.c.l.b16 %v201
      %v283 = vunpack.c.l.b16 %v202
      %v284 = vunpack.c.l.b16 %v203
      %v285 = vunpack.c.l.b16 %v204
      %v286 = vunpack.c.l.b16 %v205
      %v287 = vunpack.c.l.b16 %v206
      %v288 = vunpack.c.l.b16 %v207
      %v289 = vunpack.c.l.b16 %v208
      %v290 = vunpack.c.l.b16 %v209
      %v291 = vunpack.c.l.b16 %v210
      %v292 = vunpack.c.l.b16 %v211
      %v293 = vpack.c.b16 %v262, %v261
      %v294 = vpack.c.b16 %v264, %v263
      %v295 = vpack.c.b16 %v266, %v265
      %v296 = vpack.c.b16 %v268, %v267
      %v297 = vpack.c.b16 %v270, %v269
      %v298 = vpack.c.b16 %v272, %v271
      %v299 = vpack.c.b16 %v274, %v273
      %v300 = vpack.c.b16 %v276, %v275
      %v301 = vpack.c.b16 %v278, %v277
      %v302 = vpack.c.b16 %v280, %v279
      %v303 = vpack.c.b16 %v282, %v281
      %v304 = vpack.c.b16 %v284, %v283
      %v305 = vpack.c.b16 %v286, %v285
      %v306 = vpack.c.b16 %v288, %v287
      %v307 = vpack.c.b16 %v290, %v289
      %v308 = vpack.c.b16 %v292, %v291
      %325 = vmatprep.subr.bf16.mxu0 0
      %326 = vmatpush1.bf16.msra.mxu0 %v293
      %327 = vmatprep.subr.bf16.mxu0 0
      %328 = vmatpush1.bf16.msra.mxu0 %v294
      %329 = vmatprep.subr.bf16.mxu0 0
      %330 = vmatpush1.bf16.msra.mxu0 %v295
      %331 = vmatprep.subr.bf16.mxu0 0
      %332 = vmatpush1.bf16.msra.mxu0 %v296
      %333 = vmatprep.subr.bf16.mxu0 0
      %334 = vmatpush1.bf16.msra.mxu0 %v297
      %335 = vmatprep.subr.bf16.mxu0 0
      %336 = vmatpush1.bf16.msra.mxu0 %v298
      %337 = vmatprep.subr.bf16.mxu0 0
      %338 = vmatpush1.bf16.msra.mxu0 %v299
      %339 = vmatprep.subr.bf16.mxu0 0
      %340 = vmatpush1.bf16.msra.mxu0 %v300
      %341 = vmatprep.subr.bf16.mxu0 0
      %342 = vmatpush1.bf16.msra.mxu0 %v301
      %343 = vmatprep.subr.bf16.mxu0 0
      %344 = vmatpush1.bf16.msra.mxu0 %v302
      %345 = vmatprep.subr.bf16.mxu0 0
      %346 = vmatpush1.bf16.msra.mxu0 %v303
      %347 = vmatprep.subr.bf16.mxu0 0
      %348 = vmatpush1.bf16.msra.mxu0 %v304
      %349 = vmatprep.subr.bf16.mxu0 0
      %350 = vmatpush1.bf16.msra.mxu0 %v305
      %351 = vmatprep.subr.bf16.mxu0 0
      %352 = vmatpush1.bf16.msra.mxu0 %v306
      %353 = vmatprep.subr.bf16.mxu0 0
      %354 = vmatpush1.bf16.msra.mxu0 %v307
      %355 = vmatprep.subr.bf16.mxu0 0
      %356 = vmatpush1.bf16.msra.mxu0 %v308
      %357 = vmatprep.mubr.bf16.mxu0 %v226
      %358 = vmatmul.mubr.bf16.gmra.mrb[0].mxu0 %v225
      %v359 = vpop.f32.mrb[0].mxu0
      %v360 = vadd.f32 %v217, %v359
      %v361 = vpop.f32.mrb[0].mxu0
      %v362 = vpop.f32.mrb[0].mxu0
      %v363 = vadd.f32 %v217, %v362
      %v364 = vpop.f32.mrb[0].mxu0
      %365 = vdwg.mxu0
      %v366 = vmax.f32 %v360, 0.0
      %v367 = vmax.f32 %v363, 0.0
      %v368 = vpack.c.bf16 %v367, %v366
      %v370 = vunpack.c.l.b16 %v368
      %v371 = vunpack.c.h.b16 %v368
      %v372 = vpack.c.b16 %v370, %v370
      %v373 = vpack.c.b16 %v371, %v371
      %376 = vst [vmem:[%s175] sm:$0xf] %v372
      %377 = vst [vmem:[%s175 + $0x4] sm:$0xf] %v373
      %s378 = smul.u32 2, %s14
      %p379 = scmp.lt.s32.totalorder %s378, 3
      %s380 = scalar_select %p379, %s378, 3
      %s381 = smul.addr %s380, 4
      %s382 = scalar_lea.vmem %s3, %s381
      // Predicated region
      $region33: #{encoder_forward.4} parent=31 // pred_check
        %p383 = pneg %p100
      $region34: #{encoder_forward.4} parent=31 // pred_check_branch
        %385 = sbr.rel (%p383) target = $region36
      $region35: #{encoder_forward.4} parent=31 // pred_region
        %s386 = smul.u32 2, %s14
      $region36: #{encoder_forward.4} parent=31 // pred_fallthru
        _
    $region32: #{encoder_forward.4} parent=5 // pred_fallthru
      _
    %p387 = scmp.le.s32.totalorder 2, %s9
    // Predicated region
    $region37: #{encoder_forward.4} parent=5 // pred_check
      %p388 = pneg %p387
    $region38: #{encoder_forward.4} parent=5 // pred_check_branch
      %390 = sbr.rel (%p388) target = $region40
    $region39: #{encoder_forward.4} parent=5 // pred_region
      %s391 = ssub.s32 %s9, 2
      // Predicated region
      $region41: #{encoder_forward.4} parent=39 // pred_check
        %p392 = pneg %p106
      $region42: #{encoder_forward.4} parent=39 // pred_check_branch
        %394 = sbr.rel (%p392) target = $region44
      $region43: #{encoder_forward.4} parent=39 // pred_region
        %s395 = smul.u32 2, %s15
        %p396 = scmp.lt.s32.totalorder %s395, 3
        %s397 = scalar_select %p396, %s395, 3
        %s398 = smul.addr %s397, 4
        %s399 = scalar_lea.vmem %s3, %s398
      $region44: #{encoder_forward.4} parent=39 // pred_fallthru
        _
    $region40: #{encoder_forward.4} parent=5 // pred_fallthru
      _
  $region6: #{encoder_forward.4} parent=0 // loop_footer
    %s13 = sadd.s32 1, %s9
  $region7: #{encoder_forward.4} parent=0 // loop_footer_branch
    %8 = sbr.rel target = $region3
  $region8: #{encoder_forward.4} parent=0 // loop_exit
    _

// kernel: encoder_forward.5
$region0: #{encoder_forward.5}
  #allocation0 [shape = 'u32[]', space=smem, size = 0x4, offset = 0x4, fixed_abs, tag = 'smem constant byte address 0x4 - core index']
  #allocation1 [shape = 'u32[144,128]{1,0:T(1,128)}', space=vmem, size = 0x12000, scoped, tag = 'internal scratch']
  %s0 = inlined_call_operand.vmem [shape: bf16[2,16,128], index: 0, kind: input, shape index: {}]
  %s1 = inlined_call_operand.vmem [shape: f32[1,128], index: 1, kind: input, shape index: {}]
  %s2 = inlined_call_operand.vmem [shape: bf16[9,128,128], index: 2, kind: input, shape index: {}]
  %s3 = inlined_call_operand.vmem [shape: bf16[2,9,128,128], index: 3, kind: input, shape index: {}]
  %s4 = inlined_call_operand.vmem [shape: bf16[2,128,128], index: 4, kind: input, shape index: {}]
  %s5 = inlined_call_operand.hbm [shape: f32[2,16,128], index: 5, kind: output, shape index: {}]
  %s6 = sld [smem:[#allocation0]]
  $region53: #{encoder_forward.5} parent=0
    _
  %s8 = ssub.s32 1, %s6
  %s9 = scalar_select 0, %s8, %s6
  $region1: #{encoder_forward.5} parent=0
    #allocation2 [shape = 'u8[16384]{0}', space=vmem, size = 0x4000, scoped, tag = 'output window, operand 0']
    #allocation3 [shape = 's32[2]{0}', space=sflag, size = 0x8, scoped, tag = 'scoped memory for encoder_forward.5']
    %10 = vsyncpa [#allocation3], 0
    %s11 = scalar_lea.sflag [#allocation3], 1
    %12 = vsyncpa %s11, 0
    loop: start=0, step=1, limit=4
    $region2: #{encoder_forward.5} parent=1 // loop_pre_header
      _
    $region3: #{encoder_forward.5} parent=1 // loop_header
      %s14 = sphi 0, %s18
      %p15 = scmp.ge.s32.totalorder %s14, 4
      %s24 = sphi 0, %s26
      %s27 = sphi 0, %s24
      %s28 = sphi 0, %s27
      %s44 = sphi 0, %s28
      %s48 = sphi 0, %s48
      %s50 = sphi 0, %s48
      %s51 = sphi 0, %s50
      %s65 = sphi 0, %s51
      %s69 = sphi 0, %s69
      %s71 = sphi 0, %s69
      %s72 = sphi 0, %s71
      %s86 = sphi 0, %s72
      %s90 = sphi 0, %s90
      %s92 = sphi 0, %s90
      %s93 = sphi 0, %s92
      %s107 = sphi 0, %s93
      %s111 = sphi 0, %s111
      %s113 = sphi 0, %s111
      %s114 = sphi 0, %s113
      %s128 = sphi 0, %s114
      %s134 = sphi 0, %s136
      %s137 = sphi 0, %s134
      %s138 = sphi 0, %s137
      %s154 = sphi 0, %s138
    $region4: #{encoder_forward.5} parent=1 // loop_header_branch
      %17 = sbr.rel (%p15) target = $region8
    $region5: #{encoder_forward.5} parent=1 // loop_body
      %s19 = ssub.s32 %s14, 1
      %s20 = ssub.s32 %s14, 2
      %s21 = sadd.s32 %s14, 1
      %s22 = ssub.s32 %s14, %s21
      %p23 = scmp.eq.s32.totalorder %s22, 0
      %s25 = sadd.s32 %s24, 1
      %s26 = scalar_select %p23, %s24, %s25
      %p29 = pneg %p23
      %p30 = scmp.eq.s32.totalorder %s14, 1
      %p31 = por %p29, %p30
      %p32 = scmp.ne.s32.totalorder %s24, %s27
      %p33 = scmp.eq.s32.totalorder %s14, 0
      %p34 = por %p32, %p33
      %p35 = scmp.ne.s32.totalorder %s24, %s27
      %p36 = scmp.eq.s32.totalorder %s19, 1
      %p37 = por %p35, %p36
      %p38 = scmp.ne.s32.totalorder %s27, %s28
      %p39 = scmp.eq.s32.totalorder %s19, 0
      %p40 = por %p38, %p39
      %p41 = scmp.ne.s32.totalorder %s27, %s28
      %p42 = scmp.eq.s32.totalorder %s20, 1
      %p43 = por %p41, %p42
      %p45 = scmp.ne.s32.totalorder %s28, %s44
      %p46 = scmp.eq.s32.totalorder %s20, 0
      %p47 = por %p45, %p46
      %s49 = sadd.s32 %s48, 1
      %p52 = scmp.eq.s32.totalorder %s14, 1
      %p53 = scmp.ne.s32.totalorder %s48, %s50
      %p54 = scmp.eq.s32.totalorder %s14, 0
      %p55 = por %p53, %p54
      %p56 = scmp.ne.s32.totalorder %s48, %s50
      %p57 = scmp.eq.s32.totalorder %s19, 1
      %p58 = por %p56, %p57
      %p59 = scmp.ne.s32.totalorder %s50, %s51
      %p60 = scmp.eq.s32.totalorder %s19, 0
      %p61 = por %p59, %p60
      %p62 = scmp.ne.s32.totalorder %s50, %s51
      %p63 = scmp.eq.s32.totalorder %s20, 1
      %p64 = por %p62, %p63
      %p66 = scmp.ne.s32.totalorder %s51, %s65
      %p67 = scmp.eq.s32.totalorder %s20, 0
      %p68 = por %p66, %p67
      %s70 = sadd.s32 %s69, 1
      %p73 = scmp.eq.s32.totalorder %s14, 1
      %p74 = scmp.ne.s32.totalorder %s69, %s71
      %p75 = scmp.eq.s32.totalorder %s14, 0
      %p76 = por %p74, %p75
      %p77 = scmp.ne.s32.totalorder %s69, %s71
      %p78 = scmp.eq.s32.totalorder %s19, 1
      %p79 = por %p77, %p78
      %p80 = scmp.ne.s32.totalorder %s71, %s72
      %p81 = scmp.eq.s32.totalorder %s19, 0
      %p82 = por %p80, %p81
      %p83 = scmp.ne.s32.totalorder %s71, %s72
      %p84 = scmp.eq.s32.totalorder %s20, 1
      %p85 = por %p83, %p84
      %p87 = scmp.ne.s32.totalorder %s72, %s86
      %p88 = scmp.eq.s32.totalorder %s20, 0
      %p89 = por %p87, %p88
      %s91 = sadd.s32 %s90, 1
      %p94 = scmp.eq.s32.totalorder %s14, 1
      %p95 = scmp.ne.s32.totalorder %s90, %s92
      %p96 = scmp.eq.s32.totalorder %s14, 0
      %p97 = por %p95, %p96
      %p98 = scmp.ne.s32.totalorder %s90, %s92
      %p99 = scmp.eq.s32.totalorder %s19, 1
      %p100 = por %p98, %p99
      %p101 = scmp.ne.s32.totalorder %s92, %s93
      %p102 = scmp.eq.s32.totalorder %s19, 0
      %p103 = por %p101, %p102
      %p104 = scmp.ne.s32.totalorder %s92, %s93
      %p105 = scmp.eq.s32.totalorder %s20, 1
      %p106 = por %p104, %p105
      %p108 = scmp.ne.s32.totalorder %s93, %s107
      %p109 = scmp.eq.s32.totalorder %s20, 0
      %p110 = por %p108, %p109
      %s112 = sadd.s32 %s111, 1
      %p115 = scmp.eq.s32.totalorder %s14, 1
      %p116 = scmp.ne.s32.totalorder %s111, %s113
      %p117 = scmp.eq.s32.totalorder %s14, 0
      %p118 = por %p116, %p117
      %p119 = scmp.ne.s32.totalorder %s111, %s113
      %p120 = scmp.eq.s32.totalorder %s19, 1
      %p121 = por %p119, %p120
      %p122 = scmp.ne.s32.totalorder %s113, %s114
      %p123 = scmp.eq.s32.totalorder %s19, 0
      %p124 = por %p122, %p123
      %p125 = scmp.ne.s32.totalorder %s113, %s114
      %p126 = scmp.eq.s32.totalorder %s20, 1
      %p127 = por %p125, %p126
      %p129 = scmp.ne.s32.totalorder %s114, %s128
      %p130 = scmp.eq.s32.totalorder %s20, 0
      %p131 = por %p129, %p130
      %s132 = ssub.s32 %s14, %s21
      %p133 = scmp.eq.s32.totalorder %s132, 0
      %s135 = sadd.s32 %s134, 1
      %s136 = scalar_select %p133, %s134, %s135
      %p139 = pneg %p133
      %p140 = scmp.eq.s32.totalorder %s14, 1
      %p141 = por %p139, %p140
      %p142 = scmp.ne.s32.totalorder %s134, %s137
      %p143 = scmp.eq.s32.totalorder %s14, 0
      %p144 = por %p142, %p143
      %p145 = scmp.ne.s32.totalorder %s134, %s137
      %p146 = scmp.eq.s32.totalorder %s19, 1
      %p147 = por %p145, %p146
      %p148 = scmp.ne.s32.totalorder %s137, %s138
      %p149 = scmp.eq.s32.totalorder %s19, 0
      %p150 = por %p148, %p149
      %p151 = scmp.ne.s32.totalorder %s137, %s138
      %p152 = scmp.eq.s32.totalorder %s20, 1
      %p153 = por %p151, %p152
      %p155 = scmp.ne.s32.totalorder %s138, %s154
      %p156 = scmp.eq.s32.totalorder %s20, 0
      %p157 = por %p155, %p156
      %p158 = scmp.le.s32.totalorder 1, %s14
      %p159 = scmp.lt.s32.totalorder %s14, 3
      %p160 = pnand %p158, %p159
      %p161 = pneg %p160
      // Predicated region
      $region9: #{encoder_forward.5} parent=5 // pred_check
        _
      $region10: #{encoder_forward.5} parent=5 // pred_check_branch
        %163 = sbr.rel (%p160) target = $region12
      $region11: #{encoder_forward.5} parent=5 // pred_region
        %s164 = ssub.s32 %s14, 1
        // Predicated region
        $region13: #{encoder_forward.5} parent=11 // pred_check
          %p165 = pneg %p61
        $region14: #{encoder_forward.5} parent=11 // pred_check_branch
          %167 = sbr.rel (%p165) target = $region16
        $region15: #{encoder_forward.5} parent=11 // pred_region
          _
        $region16: #{encoder_forward.5} parent=11 // pred_fallthru
          _
        // Predicated region
        $region17: #{encoder_forward.5} parent=11 // pred_check
          %p168 = pneg %p82
        $region18: #{encoder_forward.5} parent=11 // pred_check_branch
          %170 = sbr.rel (%p168) target = $region20
        $region19: #{encoder_forward.5} parent=11 // pred_region
          _
        $region20: #{encoder_forward.5} parent=11 // pred_fallthru
          _
        // Predicated region
        $region21: #{encoder_forward.5} parent=11 // pred_check
          %p171 = pneg %p103
        $region22: #{encoder_forward.5} parent=11 // pred_check_branch
          %173 = sbr.rel (%p171) target = $region24
        $region23: #{encoder_forward.5} parent=11 // pred_region
          _
        $region24: #{encoder_forward.5} parent=11 // pred_fallthru
          _
        // Predicated region
        $region25: #{encoder_forward.5} parent=11 // pred_check
          %p174 = pneg %p124
        $region26: #{encoder_forward.5} parent=11 // pred_check_branch
          %176 = sbr.rel (%p174) target = $region28
        $region27: #{encoder_forward.5} parent=11 // pred_region
          _
        $region28: #{encoder_forward.5} parent=11 // pred_fallthru
          _
      $region12: #{encoder_forward.5} parent=5 // pred_fallthru
        _
      %p177 = scmp.lt.s32.totalorder %s14, 2
      // Predicated region
      $region29: #{encoder_forward.5} parent=5 // pred_check
        %p178 = pneg %p177
      $region30: #{encoder_forward.5} parent=5 // pred_check_branch
        %180 = sbr.rel (%p178) target = $region32
      $region31: #{encoder_forward.5} parent=5 // pred_region
        // Predicated region
        $region33: #{encoder_forward.5} parent=31 // pred_check
          %p181 = pneg %p34
        $region34: #{encoder_forward.5} parent=31 // pred_check_branch
          %183 = sbr.rel (%p181) target = $region36
        $region35: #{encoder_forward.5} parent=31 // pred_region
          %p184 = scmp.lt.s32.totalorder %s14, 1
          %s185 = scalar_select %p184, %s14, 1
          %s186 = smul.addr %s185, 2
          %s187 = smul.addr %s186, 4
          %s188 = scalar_lea.vmem %s0, %s187
        $region36: #{encoder_forward.5} parent=31 // pred_fallthru
          _
      $region32: #{encoder_forward.5} parent=5 // pred_fallthru
        _
      %p189 = scmp.le.s32.totalorder 1, %s14
      %p190 = scmp.lt.s32.totalorder %s14, 3
      %p191 = pnand %p189, %p190
      %p192 = pneg %p191
      // Predicated region
      $region37: #{encoder_forward.5} parent=5 // pred_check
        _
      $region38: #{encoder_forward.5} parent=5 // pred_check_branch
        %194 = sbr.rel (%p191) target = $region40
      $region39: #{encoder_forward.5} parent=5 // pred_region
        %s195 = ssub.s32 %s14, 1
        %p196 = scmp.lt.s32.totalorder %s19, 1
        %s197 = scalar_select %p196, %s19, 1
        %s198 = smul.addr %s197, 2
        %s199 = smul.addr %s198, 4
        %s200 = scalar_lea.vmem %s0, %s199
        %p201 = pneg %p40
        %p202 = pneg %p37
        %p203 = pneg %p61
        %p204 = pneg %p58
        %p205 = pneg %p82
        %p206 = pneg %p79
        %p207 = pneg %p103
        %p208 = pneg %p100
        %p209 = pneg %p124
        %p210 = pneg %p121
        %p211 = pneg %p150
        %p212 = pneg %p147
        %s213 = sand.u32 %s137, 1
        %s214 = scalar_lea.sflag [#allocation3], %s213
        %s215 = sand.u32 %s137, 1
        %s216 = smul.addr %s215, 16
        %s217 = scalar_lea.vmem [#allocation2], %s216
        %p218 = scmp.lt.s32.totalorder %s19, 1
        %s219 = scalar_select %p218, %s19, 1
        %s220 = smul.addr %s219, 2
        %s221 = smul.addr %s220, 4
        %s222 = scalar_lea.vmem %s0, %s221
        %v224 = vld [vmem:[%s222] sm:$0xf]
        %v225 = vld [vmem:[%s222 + $0x4] sm:$0xf]
        %v226 = vunpack.c.l.bf16 %v224
        %v227 = vunpack.c.l.bf16 %v225
        %v228 = vlaneseq
        %v229 = vshrl.u32 %v228, 7
        %v230 = vadd.s32 %v229, 8
        %v231 = vshra.s32 %v229, 2
        %v232 = vshra.s32 %v230, 2
        %v233 = vand.u32 %v229, 3
        %v234 = vand.u32 %v230, 3
        %vm237 = vcmask 1044480
        %v238 = vrot.slane %v226, 3
        %v239 = vrot.slane %v227, 3
        %v240 = vsel %vm237, %v238, %v239
        %v243 = vsel %vm237, 0.0, %v238
        %v244 = vadd.s32 %v231, 4294967295
        %v245 = vadd.s32 %v232, 4294967295
        %v246 = vadd.s32 %v233, 4294967295
        %v247 = vadd.s32 %v234, 4294967295
        %vm248 = vcmp.ge.s32.totalorder %v244, 0
        %vm249 = vcmp.ge.s32.totalorder %v245, 0
        %vm250 = vcmp.lt.s32.totalorder %v244, 4
        %vm251 = vcmp.lt.s32.totalorder %v245, 4
        %vm252 = vmand %vm248, %vm250
        %vm253 = vmand %vm249, %vm251
        %vm254 = vcmp.ge.s32.totalorder %v246, 0
        %vm255 = vcmp.ge.s32.totalorder %v247, 0
        %vm256 = vmand %vm252, %vm254
        %vm257 = vmand %vm253, %vm255
        %vm258 = vcmp.lt.s32.totalorder %v246, 4
        %vm259 = vcmp.lt.s32.totalorder %v247, 4
        %vm260 = vmand %vm256, %vm258
        %vm261 = vmand %vm257, %vm259
        %vm262 = vcmp.lt.s32.totalorder %v229, 16
        %vm263 = vcmp.lt.s32.totalorder %v230, 16
        %vm264 = vmand %vm260, %vm262
        %vm265 = vmand %vm261, %vm263
        %v266 = vsel %vm264, %v243, 0.0
        %v267 = vsel %vm265, %v240, 0.0
        %v268 = vpack.c.bf16 %v267, %v266
        %v269 = vld [vmem:[%s2] sm:$0xf]
        %v270 = vld [vmem:[%s2 + $0x4] sm:$0xf]
        %v271 = vld [vmem:[%s2 + $0x8] sm:$0xf]
        %v272 = vld [vmem:[%s2 + $0xc] sm:$0xf]
        %v273 = vld [vmem:[%s2 + $0x10] sm:$0xf]
        %v274 = vld [vmem:[%s2 + $0x14] sm:$0xf]
        %v275 = vld [vmem:[%s2 + $0x18] sm:$0xf]
        %v276 = vld [vmem:[%s2 + $0x1c] sm:$0xf]
        %v277 = vld [vmem:[%s2 + $0x20] sm:$0xf]
        %v278 = vld [vmem:[%s2 + $0x24] sm:$0xf]
        %v279 = vld [vmem:[%s2 + $0x28] sm:$0xf]
        %v280 = vld [vmem:[%s2 + $0x2c] sm:$0xf]
        %v281 = vld [vmem:[%s2 + $0x30] sm:$0xf]
        %v282 = vld [vmem:[%s2 + $0x34] sm:$0xf]
        %v283 = vld [vmem:[%s2 + $0x38] sm:$0xf]
        %v284 = vld [vmem:[%s2 + $0x3c] sm:$0xf]
        %vm285 = vcmask 1043456
        %v286 = vrot.slane %v226, 4
        %v287 = vrot.slane %v227, 4
        %v288 = vsel %vm285, %v286, %v287
        %v291 = vsel %vm285, 0.0, %v286
        %vm292 = vcmp.ge.s32.totalorder %v233, 0
        %vm293 = vcmp.ge.s32.totalorder %v234, 0
        %vm294 = vmand %vm252, %vm292
        %vm295 = vmand %vm253, %vm293
        %vm296 = vcmp.lt.s32.totalorder %v233, 4
        %vm297 = vcmp.lt.s32.totalorder %v234, 4
        %vm298 = vmand %vm294, %vm296
        %vm299 = vmand %vm295, %vm297
        %vm300 = vmand %vm298, %vm262
        %vm301 = vmand %vm299, %vm263
        %v302 = vsel %vm300, %v291, 0.0
        %v303 = vsel %vm301, %v288, 0.0
        %v304 = vpack.c.bf16 %v303, %v302
        %s305 = scalar_lea.vmem %s2, 64
        %v306 = vld [vmem:[%s305] sm:$0xf]
        %v307 = vld [vmem:[%s305 + $0x4] sm:$0xf]
        %v308 = vld [vmem:[%s305 + $0x8] sm:$0xf]
        %v309 = vld [vmem:[%s305 + $0xc] sm:$0xf]
        %v310 = vld [vmem:[%s305 + $0x10] sm:$0xf]
        %v311 = vld [vmem:[%s305 + $0x14] sm:$0xf]
        %v312 = vld [vmem:[%s305 + $0x18] sm:$0xf]
        %v313 = vld [vmem:[%s305 + $0x1c] sm:$0xf]
        %v314 = vld [vmem:[%s305 + $0x20] sm:$0xf]
        %v315 = vld [vmem:[%s305 + $0x24] sm:$0xf]
        %v316 = vld [vmem:[%s305 + $0x28] sm:$0xf]
        %v317 = vld [vmem:[%s305 + $0x2c] sm:$0xf]
        %v318 = vld [vmem:[%s305 + $0x30] sm:$0xf]
        %v319 = vld [vmem:[%s305 + $0x34] sm:$0xf]
        %v320 = vld [vmem:[%s305 + $0x38] sm:$0xf]
        %v321 = vld [vmem:[%s305 + $0x3c] sm:$0xf]
        %v338 = vunpack.c.l.b16 %v306
        %v339 = vunpack.c.l.b16 %v307
        %v340 = vunpack.c.l.b16 %v308
        %v341 = vunpack.c.l.b16 %v309
        %v342 = vunpack.c.l.b16 %v310
        %v343 = vunpack.c.l.b16 %v311
        %v344 = vunpack.c.l.b16 %v312
        %v345 = vunpack.c.l.b16 %v313
        %v346 = vunpack.c.l.b16 %v314
        %v347 = vunpack.c.l.b16 %v315
        %v348 = vunpack.c.l.b16 %v316
        %v349 = vunpack.c.l.b16 %v317
        %v350 = vunpack.c.l.b16 %v318
        %v351 = vunpack.c.l.b16 %v319
        %v352 = vunpack.c.l.b16 %v320
        %v353 = vunpack.c.l.b16 %v321
        %v354 = vpack.c.b16 %v339, %v338
        %v355 = vpack.c.b16 %v341, %v340
        %v356 = vpack.c.b16 %v343, %v342
        %v357 = vpack.c.b16 %v345, %v344
        %v358 = vpack.c.b16 %v347, %v346
        %v359 = vpack.c.b16 %v349, %v348
        %v360 = vpack.c.b16 %v351, %v350
        %v361 = vpack.c.b16 %v353, %v352
        %370 = vmatprep.subr.bf16.mxu0 0
        %371 = vmatpush1.bf16.msra.mxu0 %v354
        %372 = vmatprep.subr.bf16.mxu0 0
        %373 = vmatpush1.bf16.msra.mxu0 %v355
        %374 = vmatprep.subr.bf16.mxu0 0
        %375 = vmatpush1.bf16.msra.mxu0 %v356
        %376 = vmatprep.subr.bf16.mxu0 0
        %377 = vmatpush1.bf16.msra.mxu0 %v357
        %378 = vmatprep.subr.bf16.mxu0 0
        %379 = vmatpush1.bf16.msra.mxu0 %v358
        %380 = vmatprep.subr.bf16.mxu0 0
        %381 = vmatpush1.bf16.msra.mxu0 %v359
        %382 = vmatprep.subr.bf16.mxu0 0
        %383 = vmatpush1.bf16.msra.mxu0 %v360
        %384 = vmatprep.subr.bf16.mxu0 0
        %385 = vmatpush1.bf16.msra.mxu0 %v361
        %386 = vmatprep.subr.bf16.mxu0 0
        %387 = vmatpush1.bf16.msra.mxu0 0
        %388 = vmatprep.subr.bf16.mxu0 0
        %389 = vmatpush1.bf16.msra.mxu0 0
        %390 = vmatprep.subr.bf16.mxu0 0
        %391 = vmatpush1.bf16.msra.mxu0 0
        %392 = vmatprep.subr.bf16.mxu0 0
        %393 = vmatpush1.bf16.msra.mxu0 0
        %394 = vmatprep.subr.bf16.mxu0 0
        %395 = vmatpush1.bf16.msra.mxu0 0
        %396 = vmatprep.subr.bf16.mxu0 0
        %397 = vmatpush1.bf16.msra.mxu0 0
        %398 = vmatprep.subr.bf16.mxu0 0
        %399 = vmatpush1.bf16.msra.mxu0 0
        %400 = vmatprep.subr.bf16.mxu0 0
        %401 = vmatpush1.bf16.msra.mxu0 0
        %402 = vmatprep.mubr.bf16.mxu0 0
        %403 = vmatmul.mubr.bf16.gmra.mrb[0].mxu0 %v304
        %v404 = vpop.f32.mrb[0].mxu0
        %v405 = vadd.f32 0.0, %v404
        %v406 = vpop.f32.mrb[0].mxu0
        %v407 = vpop.f32.mrb[0].mxu0
        %v408 = vadd.f32 0.0, %v407
        %v409 = vpop.f32.mrb[0].mxu0
        %410 = vdwg.mxu0
        %v427 = vunpack.c.l.b16 %v269
        %v428 = vunpack.c.l.b16 %v270
        %v429 = vunpack.c.l.b16 %v271
        %v430 = vunpack.c.l.b16 %v272
        %v431 = vunpack.c.l.b16 %v273
        %v432 = vunpack.c.l.b16 %v274
        %v433 = vunpack.c.l.b16 %v275
        %v434 = vunpack.c.l.b16 %v276
        %v435 = vunpack.c.l.b16 %v277
        %v436 = vunpack.c.l.b16 %v278
        %v437 = vunpack.c.l.b16 %v279
        %v438 = vunpack.c.l.b16 %v280
        %v439 = vunpack.c.l.b16 %v281
        %v440 = vunpack.c.l.b16 %v282
        %v441 = vunpack.c.l.b16 %v283
        %v442 = vunpack.c.l.b16 %v284
        %v443 = vpack.c.b16 %v428, %v427
        %v444 = vpack.c.b16 %v430, %v429
        %v445 = vpack.c.b16 %v432, %v431
        %v446 = vpack.c.b16 %v434, %v433
        %v447 = vpack.c.b16 %v436, %v435
        %v448 = vpack.c.b16 %v438, %v437
        %v449 = vpack.c.b16 %v440, %v439
        %v450 = vpack.c.b16 %v442, %v441
        %459 = vmatprep.subr.bf16.mxu0 0
        %460 = vmatpush1.bf16.msra.mxu0 %v443
        %461 = vmatprep.subr.bf16.mxu0 0
        %462 = vmatpush1.bf16.msra.mxu0 %v444
        %463 = vmatprep.subr.bf16.mxu0 0
        %464 = vmatpush1.bf16.msra.mxu0 %v445
        %465 = vmatprep.subr.bf16.mxu0 0
        %466 = vmatpush1.bf16.msra.mxu0 %v446
        %467 = vmatprep.subr.bf16.mxu0 0
        %468 = vmatpush1.bf16.msra.mxu0 %v447
        %469 = vmatprep.subr.bf16.mxu0 0
        %470 = vmatpush1.bf16.msra.mxu0 %v448
        %471 = vmatprep.subr.bf16.mxu0 0
        %472 = vmatpush1.bf16.msra.mxu0 %v449
        %473 = vmatprep.subr.bf16.mxu0 0
        %474 = vmatpush1.bf16.msra.mxu0 %v450
        %475 = vmatprep.subr.bf16.mxu0 0
        %476 = vmatpush1.bf16.msra.mxu0 0
        %477 = vmatprep.subr.bf16.mxu0 0
        %478 = vmatpush1.bf16.msra.mxu0 0
        %479 = vmatprep.subr.bf16.mxu0 0
        %480 = vmatpush1.bf16.msra.mxu0 0
        %481 = vmatprep.subr.bf16.mxu0 0
        %482 = vmatpush1.bf16.msra.mxu0 0
        %483 = vmatprep.subr.bf16.mxu0 0
        %484 = vmatpush1.bf16.msra.mxu0 0
        %485 = vmatprep.subr.bf16.mxu0 0
        %486 = vmatpush1.bf16.msra.mxu0 0
        %487 = vmatprep.subr.bf16.mxu0 0
        %488 = vmatpush1.bf16.msra.mxu0 0
        %489 = vmatprep.subr.bf16.mxu0 0
        %490 = vmatpush1.bf16.msra.mxu0 0
        %491 = vmatprep.mubr.bf16.mxu0 0
        %492 = vmatmul.mubr.bf16.gmra.mrb[0].mxu0 %v268
        %v493 = vpop.f32.mrb[0].mxu0
        %v494 = vadd.f32 %v405, %v493
        %v495 = vpop.f32.mrb[0].mxu0
        %v496 = vpop.f32.mrb[0].mxu0
        %v497 = vadd.f32 %v408, %v496
        %v498 = vpop.f32.mrb[0].mxu0
        %499 = vdwg.mxu0
        %vm500 = vcmask 1042432
        %v501 = vrot.slane %v226, 5
        %v502 = vrot.slane %v227, 5
        %v503 = vsel %vm500, %v501, %v502
        %v506 = vsel %vm500, 0.0, %v501
        %v507 = vadd.s32 %v233, 1
        %v508 = vadd.s32 %v234, 1
        %vm509 = vcmp.ge.s32.totalorder %v507, 0
        %vm510 = vcmp.ge.s32.totalorder %v508, 0
        %vm511 = vmand %vm252, %vm509
        %vm512 = vmand %vm253, %vm510
        %vm513 = vcmp.lt.s32.totalorder %v507, 4
        %vm514 = vcmp.lt.s32.totalorder %v508, 4
        %vm515 = vmand %vm511, %vm513
        %vm516 = vmand %vm512, %vm514
        %vm517 = vmand %vm515, %vm262
        %vm518 = vmand %vm516, %vm263
        %v519 = vsel %vm517, %v506, 0.0
        %v520 = vsel %vm518, %v503, 0.0
        %v521 = vpack.c.bf16 %v520, %v519
        %s522 = scalar_lea.vmem %s2, 128
        %v523 = vld [vmem:[%s522] sm:$0xf]
        %v524 = vld [vmem:[%s522 + $0x4] sm:$0xf]
        %v525 = vld [vmem:[%s522 + $0x8] sm:$0xf]
        %v526 = vld [vmem:[%s522 + $0xc] sm:$0xf]
        %v527 = vld [vmem:[%s522 + $0x10] sm:$0xf]
        %v528 = vld [vmem:[%s522 + $0x14] sm:$0xf]
        %v529 = vld [vmem:[%s522 + $0x18] sm:$0xf]
        %v530 = vld [vmem:[%s522 + $0x1c] sm:$0xf]
        %v531 = vld [vmem:[%s522 + $0x20] sm:$0xf]
        %v532 = vld [vmem:[%s522 + $0x24] sm:$0xf]
        %v533 = vld [vmem:[%s522 + $0x28] sm:$0xf]
        %v534 = vld [vmem:[%s522 + $0x2c] sm:$0xf]
        %v535 = vld [vmem:[%s522 + $0x30] sm:$0xf]
        %v536 = vld [vmem:[%s522 + $0x34] sm:$0xf]
        %v537 = vld [vmem:[%s522 + $0x38] sm:$0xf]
        %v538 = vld [vmem:[%s522 + $0x3c] sm:$0xf]
        %v555 = vunpack.c.l.b16 %v523
        %v556 = vunpack.c.l.b16 %v524
        %v557 = vunpack.c.l.b16 %v525
        %v558 = vunpack.c.l.b16 %v526
        %v559 = vunpack.c.l.b16 %v527
        %v560 = vunpack.c.l.b16 %v528
        %v561 = vunpack.c.l.b16 %v529
        %v562 = vunpack.c.l.b16 %v530
        %v563 = vunpack.c.l.b16 %v531
        %v564 = vunpack.c.l.b16 %v532
        %v565 = vunpack.c.l.b16 %v533
        %v566 = vunpack.c.l.b16 %v534
        %v567 = vunpack.c.l.b16 %v535
        %v568 = vunpack.c.l.b16 %v536
        %v569 = vunpack.c.l.b16 %v537
        %v570 = vunpack.c.l.b16 %v538
        %v571 = vpack.c.b16 %v556, %v555
        %v572 = vpack.c.b16 %v558, %v557
        %v573 = vpack.c.b16 %v560, %v559
        %v574 = vpack.c.b16 %v562, %v561
        %v575 = vpack.c.b16 %v564, %v563
        %v576 = vpack.c.b16 %v566, %v565
        %v577 = vpack.c.b16 %v568, %v567
        %v578 = vpack.c.b16 %v570, %v569
        %587 = vmatprep.subr.bf16.mxu0 0
        %588 = vmatpush1.bf16.msra.mxu0 %v571
        %589 = vmatprep.subr.bf16.mxu0 0
        %590 = vmatpush1.bf16.msra.mxu0 %v572
        %591 = vmatprep.subr.bf16.mxu0 0
        %592 = vmatpush1.bf16.msra.mxu0 %v573
        %593 = vmatprep.subr.bf16.mxu0 0
        %594 = vmatpush1.bf16.msra.mxu0 %v574
        %595 = vmatprep.subr.bf16.mxu0 0
        %596 = vmatpush1.bf16.msra.mxu0 %v575
        %597 = vmatprep.subr.bf16.mxu0 0
        %598 = vmatpush1.bf16.msra.mxu0 %v576
        %599 = vmatprep.subr.bf16.mxu0 0
        %600 = vmatpush1.bf16.msra.mxu0 %v577
        %601 = vmatprep.subr.bf16.mxu0 0
        %602 = vmatpush1.bf16.msra.mxu0 %v578
        %603 = vmatprep.subr.bf16.mxu0 0
        %604 = vmatpush1.bf16.msra.mxu0 0
        %605 = vmatprep.subr.bf16.mxu0 0
        %606 = vmatpush1.bf16.msra.mxu0 0
        %607 = vmatprep.subr.bf16.mxu0 0
        %608 = vmatpush1.bf16.msra.mxu0 0
        %609 = vmatprep.subr.bf16.mxu0 0
        %610 = vmatpush1.bf16.msra.mxu0 0
        %611 = vmatprep.subr.bf16.mxu0 0
        %612 = vmatpush1.bf16.msra.mxu0 0
        %613 = vmatprep.subr.bf16.mxu0 0
        %614 = vmatpush1.bf16.msra.mxu0 0
        %615 = vmatprep.subr.bf16.mxu0 0
        %616 = vmatpush1.bf16.msra.mxu0 0
        %617 = vmatprep.subr.bf16.mxu0 0
        %618 = vmatpush1.bf16.msra.mxu0 0
        %619 = vmatprep.mubr.bf16.mxu0 0
        %620 = vmatmul.mubr.bf16.gmra.mrb[0].mxu0 %v521
        %v621 = vpop.f32.mrb[0].mxu0
        %v622 = vadd.f32 0.0, %v621
        %v623 = vpop.f32.mrb[0].mxu0
        %v624 = vpop.f32.mrb[0].mxu0
        %v625 = vadd.f32 0.0, %v624
        %v626 = vpop.f32.mrb[0].mxu0
        %627 = vdwg.mxu0
        %v628 = vadd.f32 %v494, %v622
        %v629 = vadd.f32 %v497, %v625
        %vm630 = vcmask 1040384
        %v631 = vrot.slane %v226, 7
        %v632 = vrot.slane %v227, 7
        %v633 = vsel %vm630, %v631, %v632
        %v636 = vsel %vm630, 0.0, %v631
        %vm637 = vcmp.ge.s32.totalorder %v231, 0
        %vm638 = vcmp.ge.s32.totalorder %v232, 0
        %vm639 = vcmp.lt.s32.totalorder %v231, 4
        %vm640 = vcmp.lt.s32.totalorder %v232, 4
        %vm641 = vmand %vm637, %vm639
        %vm642 = vmand %vm638, %vm640
        %vm643 = vmand %vm641, %vm254
        %vm644 = vmand %vm642, %vm255
        %vm645 = vmand %vm643, %vm258
        %vm646 = vmand %vm644, %vm259
        %vm647 = vmand %vm645, %vm262
        %vm648 = vmand %vm646, %vm263
        %v649 = vsel %vm647, %v636, 0.0
        %v650 = vsel %vm648, %v633, 0.0
        %v651 = vpack.c.bf16 %v650, %v649
        %s652 = scalar_lea.vmem %s2, 192
        %v653 = vld [vmem:[%s652] sm:$0xf]
        %v654 = vld [vmem:[%s652 + $0x4] sm:$0xf]
        %v655 = vld [vmem:[%s652 + $0x8] sm:$0xf]
        %v656 = vld [vmem:[%s652 + $0xc] sm:$0xf]
        %v657 = vld [vmem:[%s652 + $0x10] sm:$0xf]
        %v658 = vld [vmem:[%s652 + $0x14] sm:$0xf]
        %v659 = vld [vmem:[%s652 + $0x18] sm:$0xf]
        %v660 = vld [vmem:[%s652 + $0x1c] sm:$0xf]
        %v661 = vld [vmem:[%s652 + $0x20] sm:$0xf]
        %v662 = vld [vmem:[%s652 + $0x24] sm:$0xf]
        %v663 = vld [vmem:[%s652 + $0x28] sm:$0xf]
        %v664 = vld [vmem:[%s652 + $0x2c] sm:$0xf]
        %v665 = vld [vmem:[%s652 + $0x30] sm:$0xf]
        %v666 = vld [vmem:[%s652 + $0x34] sm:$0xf]
        %v667 = vld [vmem:[%s652 + $0x38] sm:$0xf]
        %v668 = vld [vmem:[%s652 + $0x3c] sm:$0xf]
        %v685 = vunpack.c.l.b16 %v653
        %v686 = vunpack.c.l.b16 %v654
        %v687 = vunpack.c.l.b16 %v655
        %v688 = vunpack.c.l.b16 %v656
        %v689 = vunpack.c.l.b16 %v657
        %v690 = vunpack.c.l.b16 %v658
        %v691 = vunpack.c.l.b16 %v659
        %v692 = vunpack.c.l.b16 %v660
        %v693 = vunpack.c.l.b16 %v661
        %v694 = vunpack.c.l.b16 %v662
        %v695 = vunpack.c.l.b16 %v663
        %v696 = vunpack.c.l.b16 %v664
        %v697 = vunpack.c.l.b16 %v665
        %v698 = vunpack.c.l.b16 %v666
        %v699 = vunpack.c.l.b16 %v667
        %v700 = vunpack.c.l.b16 %v668
        %v701 = vpack.c.b16 %v686, %v685
        %v702 = vpack.c.b16 %v688, %v687
        %v703 = vpack.c.b16 %v690, %v689
        %v704 = vpack.c.b16 %v692, %v691
        %v705 = vpack.c.b16 %v694, %v693
        %v706 = vpack.c.b16 %v696, %v695
        %v707 = vpack.c.b16 %v698, %v697
        %v708 = vpack.c.b16 %v700, %v699
        %717 = vmatprep.subr.bf16.mxu0 0
        %718 = vmatpush1.bf16.msra.mxu0 %v701
        %719 = vmatprep.subr.bf16.mxu0 0
        %720 = vmatpush1.bf16.msra.mxu0 %v702
        %721 = vmatprep.subr.bf16.mxu0 0
        %722 = vmatpush1.bf16.msra.mxu0 %v703
        %723 = vmatprep.subr.bf16.mxu0 0
        %724 = vmatpush1.bf16.msra.mxu0 %v704
        %725 = vmatprep.subr.bf16.mxu0 0
        %726 = vmatpush1.bf16.msra.mxu0 %v705
        %727 = vmatprep.subr.bf16.mxu0 0
        %728 = vmatpush1.bf16.msra.mxu0 %v706
        %729 = vmatprep.subr.bf16.mxu0 0
        %730 = vmatpush1.bf16.msra.mxu0 %v707
        %731 = vmatprep.subr.bf16.mxu0 0
        %732 = vmatpush1.bf16.msra.mxu0 %v708
        %733 = vmatprep.subr.bf16.mxu0 0
        %734 = vmatpush1.bf16.msra.mxu0 0
        %735 = vmatprep.subr.bf16.mxu0 0
        %736 = vmatpush1.bf16.msra.mxu0 0
        %737 = vmatprep.subr.bf16.mxu0 0
        %738 = vmatpush1.bf16.msra.mxu0 0
        %739 = vmatprep.subr.bf16.mxu0 0
        %740 = vmatpush1.bf16.msra.mxu0 0
        %741 = vmatprep.subr.bf16.mxu0 0
        %742 = vmatpush1.bf16.msra.mxu0 0
        %743 = vmatprep.subr.bf16.mxu0 0
        %744 = vmatpush1.bf16.msra.mxu0 0
        %745 = vmatprep.subr.bf16.mxu0 0
        %746 = vmatpush1.bf16.msra.mxu0 0
        %747 = vmatprep.subr.bf16.mxu0 0
        %748 = vmatpush1.bf16.msra.mxu0 0
        %749 = vmatprep.mubr.bf16.mxu0 0
        %750 = vmatmul.mubr.bf16.gmra.mrb[0].mxu0 %v651
        %v751 = vpop.f32.mrb[0].mxu0
        %v752 = vadd.f32 0.0, %v751
        %v753 = vpop.f32.mrb[0].mxu0
        %v754 = vpop.f32.mrb[0].mxu0
        %v755 = vadd.f32 0.0, %v754
        %v756 = vpop.f32.mrb[0].mxu0
        %757 = vdwg.mxu0
        %v758 = vadd.f32 %v628, %v752
        %v759 = vadd.f32 %v629, %v755
        %vm760 = vmand %vm641, %vm292
        %vm761 = vmand %vm642, %vm293
        %vm762 = vmand %vm760, %vm296
        %vm763 = vmand %vm761, %vm297
        %vm764 = vmand %vm762, %vm262
        %vm765 = vmand %vm763, %vm263
        %v766 = vsel %vm764, %v226, 0.0
        %v767 = vsel %vm765, %v227, 0.0
        %v768 = vpack.c.bf16 %v767, %v766
        %s769 = scalar_lea.vmem %s2, 256
        %v770 = vld [vmem:[%s769] sm:$0xf]
        %v771 = vld [vmem:[%s769 + $0x4] sm:$0xf]
        %v772 = vld [vmem:[%s769 + $0x8] sm:$0xf]
        %v773 = vld [vmem:[%s769 + $0xc] sm:$0xf]
        %v774 = vld [vmem:[%s769 + $0x10] sm:$0xf]
        %v775 = vld [vmem:[%s769 + $0x14] sm:$0xf]
        %v776 = vld [vmem:[%s769 + $0x18] sm:$0xf]
        %v777 = vld [vmem:[%s769 + $0x1c] sm:$0xf]
        %v778 = vld [vmem:[%s769 + $0x20] sm:$0xf]
        %v779 = vld [vmem:[%s769 + $0x24] sm:$0xf]
        %v780 = vld [vmem:[%s769 + $0x28] sm:$0xf]
        %v781 = vld [vmem:[%s769 + $0x2c] sm:$0xf]
        %v782 = vld [vmem:[%s769 + $0x30] sm:$0xf]
        %v783 = vld [vmem:[%s769 + $0x34] sm:$0xf]
        %v784 = vld [vmem:[%s769 + $0x38] sm:$0xf]
        %v785 = vld [vmem:[%s769 + $0x3c] sm:$0xf]
        %v802 = vunpack.c.l.b16 %v770
        %v803 = vunpack.c.l.b16 %v771
        %v804 = vunpack.c.l.b16 %v772
        %v805 = vunpack.c.l.b16 %v773
        %v806 = vunpack.c.l.b16 %v774
        %v807 = vunpack.c.l.b16 %v775
        %v808 = vunpack.c.l.b16 %v776
        %v809 = vunpack.c.l.b16 %v777
        %v810 = vunpack.c.l.b16 %v778
        %v811 = vunpack.c.l.b16 %v779
        %v812 = vunpack.c.l.b16 %v780
        %v813 = vunpack.c.l.b16 %v781
        %v814 = vunpack.c.l.b16 %v782
        %v815 = vunpack.c.l.b16 %v783
        %v816 = vunpack.c.l.b16 %v784
        %v817 = vunpack.c.l.b16 %v785
        %v818 = vpack.c.b16 %v803, %v802
        %v819 = vpack.c.b16 %v805, %v804
        %v820 = vpack.c.b16 %v807, %v806
        %v821 = vpack.c.b16 %v809, %v808
        %v822 = vpack.c.b16 %v811, %v810
        %v823 = vpack.c.b16 %v813, %v812
        %v824 = vpack.c.b16 %v815, %v814
        %v825 = vpack.c.b16 %v817, %v816
        %834 = vmatprep.subr.bf16.mxu0 0
        %835 = vmatpush1.bf16.msra.mxu0 %v818
        %836 = vmatprep.subr.bf16.mxu0 0
        %837 = vmatpush1.bf16.msra.mxu0 %v819
        %838 = vmatprep.subr.bf16.mxu0 0
        %839 = vmatpush1.bf16.msra.mxu0 %v820
        %840 = vmatprep.subr.bf16.mxu0 0
        %841 = vmatpush1.bf16.msra.mxu0 %v821
        %842 = vmatprep.subr.bf16.mxu0 0
        %843 = vmatpush1.bf16.msra.mxu0 %v822
        %844 = vmatprep.subr.bf16.mxu0 0
        %845 = vmatpush1.bf16.msra.mxu0 %v823
        %846 = vmatprep.subr.bf16.mxu0 0
        %847 = vmatpush1.bf16.msra.mxu0 %v824
        %848 = vmatprep.subr.bf16.mxu0 0
        %849 = vmatpush1.bf16.msra.mxu0 %v825
        %850 = vmatprep.subr.bf16.mxu0 0
        %851 = vmatpush1.bf16.msra.mxu0 0
        %852 = vmatprep.subr.bf16.mxu0 0
        %853 = vmatpush1.bf16.msra.mxu0 0
        %854 = vmatprep.subr.bf16.mxu0 0
        %855 = vmatpush1.bf16.msra.mxu0 0
        %856 = vmatprep.subr.bf16.mxu0 0
        %857 = vmatpush1.bf16.msra.mxu0 0
        %858 = vmatprep.subr.bf16.mxu0 0
        %859 = vmatpush1.bf16.msra.mxu0 0
        %860 = vmatprep.subr.bf16.mxu0 0
        %861 = vmatpush1.bf16.msra.mxu0 0
        %862 = vmatprep.subr.bf16.mxu0 0
        %863 = vmatpush1.bf16.msra.mxu0 0
        %864 = vmatprep.subr.bf16.mxu0 0
        %865 = vmatpush1.bf16.msra.mxu0 0
        %866 = vmatprep.mubr.bf16.mxu0 0
        %867 = vmatmul.mubr.bf16.gmra.mrb[0].mxu0 %v768
        %v868 = vpop.f32.mrb[0].mxu0
        %v869 = vadd.f32 0.0, %v868
        %v870 = vpop.f32.mrb[0].mxu0
        %v871 = vpop.f32.mrb[0].mxu0
        %v872 = vadd.f32 0.0, %v871
        %v873 = vpop.f32.mrb[0].mxu0
        %874 = vdwg.mxu0
        %v875 = vadd.f32 %v758, %v869
        %v876 = vadd.f32 %v759, %v872
        %vm877 = vcmask 1046528
        %v878 = vrot.slane %v226, 1
        %v879 = vrot.slane %v227, 1
        %v880 = vsel %vm877, %v878, %v879
        %v883 = vsel %vm877, %v879, 0.0
        %vm884 = vmand %vm641, %vm509
        %vm885 = vmand %vm642, %vm510
        %vm886 = vmand %vm884, %vm513
        %vm887 = vmand %vm885, %vm514
        %vm888 = vmand %vm886, %vm262
        %vm889 = vmand %vm887, %vm263
        %v890 = vsel %vm888, %v880, 0.0
        %v891 = vsel %vm889, %v883, 0.0
        %v892 = vpack.c.bf16 %v891, %v890
        %s893 = scalar_lea.vmem %s2, 320
        %v894 = vld [vmem:[%s893] sm:$0xf]
        %v895 = vld [vmem:[%s893 + $0x4] sm:$0xf]
        %v896 = vld [vmem:[%s893 + $0x8] sm:$0xf]
        %v897 = vld [vmem:[%s893 + $0xc] sm:$0xf]
        %v898 = vld [vmem:[%s893 + $0x10] sm:$0xf]
        %v899 = vld [vmem:[%s893 + $0x14] sm:$0xf]
        %v900 = vld [vmem:[%s893 + $0x18] sm:$0xf]
        %v901 = vld [vmem:[%s893 + $0x1c] sm:$0xf]
        %v902 = vld [vmem:[%s893 + $0x20] sm:$0xf]
        %v903 = vld [vmem:[%s893 + $0x24] sm:$0xf]
        %v904 = vld [vmem:[%s893 + $0x28] sm:$0xf]
        %v905 = vld [vmem:[%s893 + $0x2c] sm:$0xf]
        %v906 = vld [vmem:[%s893 + $0x30] sm:$0xf]
        %v907 = vld [vmem:[%s893 + $0x34] sm:$0xf]
        %v908 = vld [vmem:[%s893 + $0x38] sm:$0xf]
        %v909 = vld [vmem:[%s893 + $0x3c] sm:$0xf]
        %v926 = vunpack.c.l.b16 %v894
        %v927 = vunpack.c.l.b16 %v895
        %v928 = vunpack.c.l.b16 %v896
        %v929 = vunpack.c.l.b16 %v897
        %v930 = vunpack.c.l.b16 %v898
        %v931 = vunpack.c.l.b16 %v899
        %v932 = vunpack.c.l.b16 %v900
        %v933 = vunpack.c.l.b16 %v901
        %v934 = vunpack.c.l.b16 %v902
        %v935 = vunpack.c.l.b16 %v903
        %v936 = vunpack.c.l.b16 %v904
        %v937 = vunpack.c.l.b16 %v905
        %v938 = vunpack.c.l.b16 %v906
        %v939 = vunpack.c.l.b16 %v907
        %v940 = vunpack.c.l.b16 %v908
        %v941 = vunpack.c.l.b16 %v909
        %v942 = vpack.c.b16 %v927, %v926
        %v943 = vpack.c.b16 %v929, %v928
        %v944 = vpack.c.b16 %v931, %v930
        %v945 = vpack.c.b16 %v933, %v932
        %v946 = vpack.c.b16 %v935, %v934
        %v947 = vpack.c.b16 %v937, %v936
        %v948 = vpack.c.b16 %v939, %v938
        %v949 = vpack.c.b16 %v941, %v940
        %958 = vmatprep.subr.bf16.mxu0 0
        %959 = vmatpush1.bf16.msra.mxu0 %v942
        %960 = vmatprep.subr.bf16.mxu0 0
        %961 = vmatpush1.bf16.msra.mxu0 %v943
        %962 = vmatprep.subr.bf16.mxu0 0
        %963 = vmatpush1.bf16.msra.mxu0 %v944
        %964 = vmatprep.subr.bf16.mxu0 0
        %965 = vmatpush1.bf16.msra.mxu0 %v945
        %966 = vmatprep.subr.bf16.mxu0 0
        %967 = vmatpush1.bf16.msra.mxu0 %v946
        %968 = vmatprep.subr.bf16.mxu0 0
        %969 = vmatpush1.bf16.msra.mxu0 %v947
        %970 = vmatprep.subr.bf16.mxu0 0
        %971 = vmatpush1.bf16.msra.mxu0 %v948
        %972 = vmatprep.subr.bf16.mxu0 0
        %973 = vmatpush1.bf16.msra.mxu0 %v949
        %974 = vmatprep.subr.bf16.mxu0 0
        %975 = vmatpush1.bf16.msra.mxu0 0
        %976 = vmatprep.subr.bf16.mxu0 0
        %977 = vmatpush1.bf16.msra.mxu0 0
        %978 = vmatprep.subr.bf16.mxu0 0
        %979 = vmatpush1.bf16.msra.mxu0 0
        %980 = vmatprep.subr.bf16.mxu0 0
        %981 = vmatpush1.bf16.msra.mxu0 0
        %982 = vmatprep.subr.bf16.mxu0 0
        %983 = vmatpush1.bf16.msra.mxu0 0
        %984 = vmatprep.subr.bf16.mxu0 0
        %985 = vmatpush1.bf16.msra.mxu0 0
        %986 = vmatprep.subr.bf16.mxu0 0
        %987 = vmatpush1.bf16.msra.mxu0 0
        %988 = vmatprep.subr.bf16.mxu0 0
        %989 = vmatpush1.bf16.msra.mxu0 0
        %990 = vmatprep.mubr.bf16.mxu0 0
        %991 = vmatmul.mubr.bf16.gmra.mrb[0].mxu0 %v892
        %v992 = vpop.f32.mrb[0].mxu0
        %v993 = vadd.f32 0.0, %v992
        %v994 = vpop.f32.mrb[0].mxu0
        %v995 = vpop.f32.mrb[0].mxu0
        %v996 = vadd.f32 0.0, %v995
        %v997 = vpop.f32.mrb[0].mxu0
        %998 = vdwg.mxu0
        %v999 = vadd.f32 %v875, %v993
        %v1000 = vadd.f32 %v876, %v996
        %v1002 = vsel %vm237, %v239, 0.0
        %v1003 = vadd.s32 %v231, 1
        %v1004 = vadd.s32 %v232, 1
        %vm1005 = vcmp.ge.s32.totalorder %v1003, 0
        %vm1006 = vcmp.ge.s32.totalorder %v1004, 0
        %vm1007 = vcmp.lt.s32.totalorder %v1003, 4
        %vm1008 = vcmp.lt.s32.totalorder %v1004, 4
        %vm1009 = vmand %vm1005, %vm1007
        %vm1010 = vmand %vm1006, %vm1008
        %vm1011 = vmand %vm1009, %vm254
        %vm1012 = vmand %vm1010, %vm255
        %vm1013 = vmand %vm1011, %vm258
        %vm1014 = vmand %vm1012, %vm259
        %vm1015 = vmand %vm1013, %vm262
        %vm1016 = vmand %vm1014, %vm263
        %v1017 = vsel %vm1015, %v240, 0.0
        %v1018 = vsel %vm1016, %v1002, 0.0
        %v1019 = vpack.c.bf16 %v1018, %v1017
        %s1020 = scalar_lea.vmem %s2, 384
        %v1021 = vld [vmem:[%s1020] sm:$0xf]
        %v1022 = vld [vmem:[%s1020 + $0x4] sm:$0xf]
        %v1023 = vld [vmem:[%s1020 + $0x8] sm:$0xf]
        %v1024 = vld [vmem:[%s1020 + $0xc] sm:$0xf]
        %v1025 = vld [vmem:[%s1020 + $0x10] sm:$0xf]
        %v1026 = vld [vmem:[%s1020 + $0x14] sm:$0xf]
        %v1027 = vld [vmem:[%s1020 + $0x18] sm:$0xf]
        %v1028 = vld [vmem:[%s1020 + $0x1c] sm:$0xf]
        %v1029 = vld [vmem:[%s1020 + $0x20] sm:$0xf]
        %v1030 = vld [vmem:[%s1020 + $0x24] sm:$0xf]
        %v1031 = vld [vmem:[%s1020 + $0x28] sm:$0xf]
        %v1032 = vld [vmem:[%s1020 + $0x2c] sm:$0xf]
        %v1033 = vld [vmem:[%s1020 + $0x30] sm:$0xf]
        %v1034 = vld [vmem:[%s1020 + $0x34] sm:$0xf]
        %v1035 = vld [vmem:[%s1020 + $0x38] sm:$0xf]
        %v1036 = vld [vmem:[%s1020 + $0x3c] sm:$0xf]
        %v1053 = vunpack.c.l.b16 %v1021
        %v1054 = vunpack.c.l.b16 %v1022
        %v1055 = vunpack.c.l.b16 %v1023
        %v1056 = vunpack.c.l.b16 %v1024
        %v1057 = vunpack.c.l.b16 %v1025
        %v1058 = vunpack.c.l.b16 %v1026
        %v1059 = vunpack.c.l.b16 %v1027
        %v1060 = vunpack.c.l.b16 %v1028
        %v1061 = vunpack.c.l.b16 %v1029
        %v1062 = vunpack.c.l.b16 %v1030
        %v1063 = vunpack.c.l.b16 %v1031
        %v1064 = vunpack.c.l.b16 %v1032
        %v1065 = vunpack.c.l.b16 %v1033
        %v1066 = vunpack.c.l.b16 %v1034
        %v1067 = vunpack.c.l.b16 %v1035
        %v1068 = vunpack.c.l.b16 %v1036
        %v1069 = vpack.c.b16 %v1054, %v1053
        %v1070 = vpack.c.b16 %v1056, %v1055
        %v1071 = vpack.c.b16 %v1058, %v1057
        %v1072 = vpack.c.b16 %v1060, %v1059
        %v1073 = vpack.c.b16 %v1062, %v1061
        %v1074 = vpack.c.b16 %v1064, %v1063
        %v1075 = vpack.c.b16 %v1066, %v1065
        %v1076 = vpack.c.b16 %v1068, %v1067
        %1085 = vmatprep.subr.bf16.mxu0 0
        %1086 = vmatpush1.bf16.msra.mxu0 %v1069
        %1087 = vmatprep.subr.bf16.mxu0 0
        %1088 = vmatpush1.bf16.msra.mxu0 %v1070
        %1089 = vmatprep.subr.bf16.mxu0 0
        %1090 = vmatpush1.bf16.msra.mxu0 %v1071
        %1091 = vmatprep.subr.bf16.mxu0 0
        %1092 = vmatpush1.bf16.msra.mxu0 %v1072
        %1093 = vmatprep.subr.bf16.mxu0 0
        %1094 = vmatpush1.bf16.msra.mxu0 %v1073
        %1095 = vmatprep.subr.bf16.mxu0 0
        %1096 = vmatpush1.bf16.msra.mxu0 %v1074
        %1097 = vmatprep.subr.bf16.mxu0 0
        %1098 = vmatpush1.bf16.msra.mxu0 %v1075
        %1099 = vmatprep.subr.bf16.mxu0 0
        %1100 = vmatpush1.bf16.msra.mxu0 %v1076
        %1101 = vmatprep.subr.bf16.mxu0 0
        %1102 = vmatpush1.bf16.msra.mxu0 0
        %1103 = vmatprep.subr.bf16.mxu0 0
        %1104 = vmatpush1.bf16.msra.mxu0 0
        %1105 = vmatprep.subr.bf16.mxu0 0
        %1106 = vmatpush1.bf16.msra.mxu0 0
        %1107 = vmatprep.subr.bf16.mxu0 0
        %1108 = vmatpush1.bf16.msra.mxu0 0
        %1109 = vmatprep.subr.bf16.mxu0 0
        %1110 = vmatpush1.bf16.msra.mxu0 0
        %1111 = vmatprep.subr.bf16.mxu0 0
        %1112 = vmatpush1.bf16.msra.mxu0 0
        %1113 = vmatprep.subr.bf16.mxu0 0
        %1114 = vmatpush1.bf16.msra.mxu0 0
        %1115 = vmatprep.subr.bf16.mxu0 0
        %1116 = vmatpush1.bf16.msra.mxu0 0
        %1117 = vmatprep.mubr.bf16.mxu0 0
        %1118 = vmatmul.mubr.bf16.gmra.mrb[0].mxu0 %v1019
        %v1119 = vpop.f32.mrb[0].mxu0
        %v1120 = vadd.f32 0.0, %v1119
        %v1121 = vpop.f32.mrb[0].mxu0
        %v1122 = vpop.f32.mrb[0].mxu0
        %v1123 = vadd.f32 0.0, %v1122
        %v1124 = vpop.f32.mrb[0].mxu0
        %1125 = vdwg.mxu0
        %v1126 = vadd.f32 %v999, %v1120
        %v1127 = vadd.f32 %v1000, %v1123
        %v1129 = vsel %vm285, %v287, 0.0
        %vm1130 = vmand %vm1009, %vm292
        %vm1131 = vmand %vm1010, %vm293
        %vm1132 = vmand %vm1130, %vm296
        %vm1133 = vmand %vm1131, %vm297
        %vm1134 = vmand %vm1132, %vm262
        %vm1135 = vmand %vm1133, %vm263
        %v1136 = vsel %vm1134, %v288, 0.0
        %v1137 = vsel %vm1135, %v1129, 0.0
        %v1138 = vpack.c.bf16 %v1137, %v1136
        %s1139 = scalar_lea.vmem %s2, 448
        %v1140 = vld [vmem:[%s1139] sm:$0xf]
        %v1141 = vld [vmem:[%s1139 + $0x4] sm:$0xf]
        %v1142 = vld [vmem:[%s1139 + $0x8] sm:$0xf]
        %v1143 = vld [vmem:[%s1139 + $0xc] sm:$0xf]
        %v1144 = vld [vmem:[%s1139 + $0x10] sm:$0xf]
        %v1145 = vld [vmem:[%s1139 + $0x14] sm:$0xf]
        %v1146 = vld [vmem:[%s1139 + $0x18] sm:$0xf]
        %v1147 = vld [vmem:[%s1139 + $0x1c] sm:$0xf]
        %v1148 = vld [vmem:[%s1139 + $0x20] sm:$0xf]
        %v1149 = vld [vmem:[%s1139 + $0x24] sm:$0xf]
        %v1150 = vld [vmem:[%s1139 + $0x28] sm:$0xf]
        %v1151 = vld [vmem:[%s1139 + $0x2c] sm:$0xf]
        %v1152 = vld [vmem:[%s1139 + $0x30] sm:$0xf]
        %v1153 = vld [vmem:[%s1139 + $0x34] sm:$0xf]
        %v1154 = vld [vmem:[%s1139 + $0x38] sm:$0xf]
        %v1155 = vld [vmem:[%s1139 + $0x3c] sm:$0xf]
        %v1172 = vunpack.c.l.b16 %v1140
        %v1173 = vunpack.c.l.b16 %v1141
        %v1174 = vunpack.c.l.b16 %v1142
        %v1175 = vunpack.c.l.b16 %v1143
        %v1176 = vunpack.c.l.b16 %v1144
        %v1177 = vunpack.c.l.b16 %v1145
        %v1178 = vunpack.c.l.b16 %v1146
        %v1179 = vunpack.c.l.b16 %v1147
        %v1180 = vunpack.c.l.b16 %v1148
        %v1181 = vunpack.c.l.b16 %v1149
        %v1182 = vunpack.c.l.b16 %v1150
        %v1183 = vunpack.c.l.b16 %v1151
        %v1184 = vunpack.c.l.b16 %v1152
        %v1185 = vunpack.c.l.b16 %v1153
        %v1186 = vunpack.c.l.b16 %v1154
        %v1187 = vunpack.c.l.b16 %v1155
        %v1188 = vpack.c.b16 %v1173, %v1172
        %v1189 = vpack.c.b16 %v1175, %v1174
        %v1190 = vpack.c.b16 %v1177, %v1176
        %v1191 = vpack.c.b16 %v1179, %v1178
        %v1192 = vpack.c.b16 %v1181, %v1180
        %v1193 = vpack.c.b16 %v1183, %v1182
        %v1194 = vpack.c.b16 %v1185, %v1184
        %v1195 = vpack.c.b16 %v1187, %v1186
        %1204 = vmatprep.subr.bf16.mxu0 0
        %1205 = vmatpush1.bf16.msra.mxu0 %v1188
        %1206 = vmatprep.subr.bf16.mxu0 0
        %1207 = vmatpush1.bf16.msra.mxu0 %v1189
        %1208 = vmatprep.subr.bf16.mxu0 0
        %1209 = vmatpush1.bf16.msra.mxu0 %v1190
        %1210 = vmatprep.subr.bf16.mxu0 0
        %1211 = vmatpush1.bf16.msra.mxu0 %v1191
        %1212 = vmatprep.subr.bf16.mxu0 0
        %1213 = vmatpush1.bf16.msra.mxu0 %v1192
        %1214 = vmatprep.subr.bf16.mxu0 0
        %1215 = vmatpush1.bf16.msra.mxu0 %v1193
        %1216 = vmatprep.subr.bf16.mxu0 0
        %1217 = vmatpush1.bf16.msra.mxu0 %v1194
        %1218 = vmatprep.subr.bf16.mxu0 0
        %1219 = vmatpush1.bf16.msra.mxu0 %v1195
        %1220 = vmatprep.subr.bf16.mxu0 0
        %1221 = vmatpush1.bf16.msra.mxu0 0
        %1222 = vmatprep.subr.bf16.mxu0 0
        %1223 = vmatpush1.bf16.msra.mxu0 0
        %1224 = vmatprep.subr.bf16.mxu0 0
        %1225 = vmatpush1.bf16.msra.mxu0 0
        %1226 = vmatprep.subr.bf16.mxu0 0
        %1227 = vmatpush1.bf16.msra.mxu0 0
        %1228 = vmatprep.subr.bf16.mxu0 0
        %1229 = vmatpush1.bf16.msra.mxu0 0
        %1230 = vmatprep.subr.bf16.mxu0 0
        %1231 = vmatpush1.bf16.msra.mxu0 0
        %1232 = vmatprep.subr.bf16.mxu0 0
        %1233 = vmatpush1.bf16.msra.mxu0 0
        %1234 = vmatprep.subr.bf16.mxu0 0
        %1235 = vmatpush1.bf16.msra.mxu0 0
        %1236 = vmatprep.mubr.bf16.mxu0 0
        %1237 = vmatmul.mubr.bf16.gmra.mrb[0].mxu0 %v1138
        %v1238 = vpop.f32.mrb[0].mxu0
        %v1239 = vadd.f32 0.0, %v1238
        %v1240 = vpop.f32.mrb[0].mxu0
        %v1241 = vpop.f32.mrb[0].mxu0
        %v1242 = vadd.f32 0.0, %v1241
        %v1243 = vpop.f32.mrb[0].mxu0
        %1244 = vdwg.mxu0
        %v1245 = vadd.f32 %v1126, %v1239
        %v1246 = vadd.f32 %v1127, %v1242
        %v1248 = vsel %vm500, %v502, 0.0
        %vm1249 = vmand %vm1009, %vm509
        %vm1250 = vmand %vm1010, %vm510
        %vm1251 = vmand %vm1249, %vm513
        %vm1252 = vmand %vm1250, %vm514
        %vm1253 = vmand %vm1251, %vm262
        %vm1254 = vmand %vm1252, %vm263
        %v1255 = vsel %vm1253, %v503, 0.0
        %v1256 = vsel %vm1254, %v1248, 0.0
        %v1257 = vpack.c.bf16 %v1256, %v1255
        %s1258 = scalar_lea.vmem %s2, 512
        %v1259 = vld [vmem:[%s1258] sm:$0xf]
        %v1260 = vld [vmem:[%s1258 + $0x4] sm:$0xf]
        %v1261 = vld [vmem:[%s1258 + $0x8] sm:$0xf]
        %v1262 = vld [vmem:[%s1258 + $0xc] sm:$0xf]
        %v1263 = vld [vmem:[%s1258 + $0x10] sm:$0xf]
        %v1264 = vld [vmem:[%s1258 + $0x14] sm:$0xf]
        %v1265 = vld [vmem:[%s1258 + $0x18] sm:$0xf]
        %v1266 = vld [vmem:[%s1258 + $0x1c] sm:$0xf]
        %v1267 = vld [vmem:[%s1258 + $0x20] sm:$0xf]
        %v1268 = vld [vmem:[%s1258 + $0x24] sm:$0xf]
        %v1269 = vld [vmem:[%s1258 + $0x28] sm:$0xf]
        %v1270 = vld [vmem:[%s1258 + $0x2c] sm:$0xf]
        %v1271 = vld [vmem:[%s1258 + $0x30] sm:$0xf]
        %v1272 = vld [vmem:[%s1258 + $0x34] sm:$0xf]
        %v1273 = vld [vmem:[%s1258 + $0x38] sm:$0xf]
        %v1274 = vld [vmem:[%s1258 + $0x3c] sm:$0xf]
        %v1291 = vunpack.c.l.b16 %v1259
        %v1292 = vunpack.c.l.b16 %v1260
        %v1293 = vunpack.c.l.b16 %v1261
        %v1294 = vunpack.c.l.b16 %v1262
        %v1295 = vunpack.c.l.b16 %v1263
        %v1296 = vunpack.c.l.b16 %v1264
        %v1297 = vunpack.c.l.b16 %v1265
        %v1298 = vunpack.c.l.b16 %v1266
        %v1299 = vunpack.c.l.b16 %v1267
        %v1300 = vunpack.c.l.b16 %v1268
        %v1301 = vunpack.c.l.b16 %v1269
        %v1302 = vunpack.c.l.b16 %v1270
        %v1303 = vunpack.c.l.b16 %v1271
        %v1304 = vunpack.c.l.b16 %v1272
        %v1305 = vunpack.c.l.b16 %v1273
        %v1306 = vunpack.c.l.b16 %v1274
        %v1307 = vpack.c.b16 %v1292, %v1291
        %v1308 = vpack.c.b16 %v1294, %v1293
        %v1309 = vpack.c.b16 %v1296, %v1295
        %v1310 = vpack.c.b16 %v1298, %v1297
        %v1311 = vpack.c.b16 %v1300, %v1299
        %v1312 = vpack.c.b16 %v1302, %v1301
        %v1313 = vpack.c.b16 %v1304, %v1303
        %v1314 = vpack.c.b16 %v1306, %v1305
        %1323 = vmatprep.subr.bf16.mxu0 0
        %1324 = vmatpush1.bf16.msra.mxu0 %v1307
        %1325 = vmatprep.subr.bf16.mxu0 0
        %1326 = vmatpush1.bf16.msra.mxu0 %v1308
        %1327 = vmatprep.subr.bf16.mxu0 0
        %1328 = vmatpush1.bf16.msra.mxu0 %v1309
        %1329 = vmatprep.subr.bf16.mxu0 0
        %1330 = vmatpush1.bf16.msra.mxu0 %v1310
        %1331 = vmatprep.subr.bf16.mxu0 0
        %1332 = vmatpush1.bf16.msra.mxu0 %v1311
        %1333 = vmatprep.subr.bf16.mxu0 0
        %1334 = vmatpush1.bf16.msra.mxu0 %v1312
        %1335 = vmatprep.subr.bf16.mxu0 0
        %1336 = vmatpush1.bf16.msra.mxu0 %v1313
        %1337 = vmatprep.subr.bf16.mxu0 0
        %1338 = vmatpush1.bf16.msra.mxu0 %v1314
        %1339 = vmatprep.subr.bf16.mxu0 0
        %1340 = vmatpush1.bf16.msra.mxu0 0
        %1341 = vmatprep.subr.bf16.mxu0 0
        %1342 = vmatpush1.bf16.msra.mxu0 0
        %1343 = vmatprep.subr.bf16.mxu0 0
        %1344 = vmatpush1.bf16.msra.mxu0 0
        %1345 = vmatprep.subr.bf16.mxu0 0
        %1346 = vmatpush1.bf16.msra.mxu0 0
        %1347 = vmatprep.subr.bf16.mxu0 0
        %1348 = vmatpush1.bf16.msra.mxu0 0
        %1349 = vmatprep.subr.bf16.mxu0 0
        %1350 = vmatpush1.bf16.msra.mxu0 0
        %1351 = vmatprep.subr.bf16.mxu0 0
        %1352 = vmatpush1.bf16.msra.mxu0 0
        %1353 = vmatprep.subr.bf16.mxu0 0
        %1354 = vmatpush1.bf16.msra.mxu0 0
        %1355 = vmatprep.mubr.bf16.mxu0 0
        %1356 = vmatmul.mubr.bf16.gmra.mrb[0].mxu0 %v1257
        %v1357 = vpop.f32.mrb[0].mxu0
        %v1358 = vadd.f32 0.0, %v1357
        %v1359 = vpop.f32.mrb[0].mxu0
        %v1360 = vpop.f32.mrb[0].mxu0
        %v1361 = vadd.f32 0.0, %v1360
        %v1362 = vpop.f32.mrb[0].mxu0
        %1363 = vdwg.mxu0
        %v1364 = vadd.f32 %v1245, %v1358
        %v1365 = vadd.f32 %v1246, %v1361
        %v1366 = vld [vmem:[%s1] sm:$0x1]
        %v1368 = vlaneseq
        %v1369 = vshrl.u32 %v1368, 7
        %v1370 = vsub.s32 0, %v1369
        %v1371 = vrot.slane %v1366, %v1370
        %v1373 = vadd.f32 %v1364, %v1371
        %v1374 = vadd.f32 %v1365, %v1371
        %v1375 = vmax.f32 %v1373, 0.0
        %v1376 = vmax.f32 %v1374, 0.0
        %v1379 = vrot.slane %v1375, 3
        %v1380 = vrot.slane %v1376, 3
        %v1381 = vsel %vm237, %v1379, %v1380
        %v1384 = vsel %vm237, 0.0, %v1379
        %v1385 = vsel %vm264, %v1384, 0.0
        %v1386 = vsel %vm265, %v1381, 0.0
        %v1387 = vpack.c.bf16 %v1386, %v1385
        %v1388 = vld [vmem:[%s3] sm:$0xf]
        %v1389 = vld [vmem:[%s3 + $0x4] sm:$0xf]
        %v1390 = vld [vmem:[%s3 + $0x8] sm:$0xf]
        %v1391 = vld [vmem:[%s3 + $0xc] sm:$0xf]
        %v1392 = vld [vmem:[%s3 + $0x10] sm:$0xf]
        %v1393 = vld [vmem:[%s3 + $0x14] sm:$0xf]
        %v1394 = vld [vmem:[%s3 + $0x18] sm:$0xf]
        %v1395 = vld [vmem:[%s3 + $0x1c] sm:$0xf]
        %v1396 = vld [vmem:[%s3 + $0x20] sm:$0xf]
        %v1397 = vld [vmem:[%s3 + $0x24] sm:$0xf]
        %v1398 = vld [vmem:[%s3 + $0x28] sm:$0xf]
        %v1399 = vld [vmem:[%s3 + $0x2c] sm:$0xf]
        %v1400 = vld [vmem:[%s3 + $0x30] sm:$0xf]
        %v1401 = vld [vmem:[%s3 + $0x34] sm:$0xf]
        %v1402 = vld [vmem:[%s3 + $0x38] sm:$0xf]
        %v1403 = vld [vmem:[%s3 + $0x3c] sm:$0xf]
        %v1404 = vrot.slane %v1375, 4
        %v1405 = vrot.slane %v1376, 4
        %v1406 = vsel %vm285, %v1404, %v1405
        %v1409 = vsel %vm285, 0.0, %v1404
        %v1410 = vsel %vm300, %v1409, 0.0
        %v1411 = vsel %vm301, %v1406, 0.0
        %v1412 = vpack.c.bf16 %v1411, %v1410
        %s1413 = scalar_lea.vmem %s3, 64
        %v1414 = vld [vmem:[%s1413] sm:$0xf]
        %v1415 = vld [vmem:[%s1413 + $0x4] sm:$0xf]
        %v1416 = vld [vmem:[%s1413 + $0x8] sm:$0xf]
        %v1417 = vld [vmem:[%s1413 + $0xc] sm:$0xf]
        %v1418 = vld [vmem:[%s1413 + $0x10] sm:$0xf]
        %v1419 = vld [vmem:[%s1413 + $0x14] sm:$0xf]
        %v1420 = vld [vmem:[%s1413 + $0x18] sm:$0xf]
        %v1421 = vld [vmem:[%s1413 + $0x1c] sm:$0xf]
        %v1422 = vld [vmem:[%s1413 + $0x20] sm:$0xf]
        %v1423 = vld [vmem:[%s1413 + $0x24] sm:$0xf]
        %v1424 = vld [vmem:[%s1413 + $0x28] sm:$0xf]
        %v1425 = vld [vmem:[%s1413 + $0x2c] sm:$0xf]
        %v1426 = vld [vmem:[%s1413 + $0x30] sm:$0xf]
        %v1427 = vld [vmem:[%s1413 + $0x34] sm:$0xf]
        %v1428 = vld [vmem:[%s1413 + $0x38] sm:$0xf]
        %v1429 = vld [vmem:[%s1413 + $0x3c] sm:$0xf]
        %v1446 = vunpack.c.l.b16 %v1414
        %v1447 = vunpack.c.l.b16 %v1415
        %v1448 = vunpack.c.l.b16 %v1416
        %v1449 = vunpack.c.l.b16 %v1417
        %v1450 = vunpack.c.l.b16 %v1418
        %v1451 = vunpack.c.l.b16 %v1419
        %v1452 = vunpack.c.l.b16 %v1420
        %v1453 = vunpack.c.l.b16 %v1421
        %v1454 = vunpack.c.l.b16 %v1422
        %v1455 = vunpack.c.l.b16 %v1423
        %v1456 = vunpack.c.l.b16 %v1424
        %v1457 = vunpack.c.l.b16 %v1425
        %v1458 = vunpack.c.l.b16 %v1426
        %v1459 = vunpack.c.l.b16 %v1427
        %v1460 = vunpack.c.l.b16 %v1428
        %v1461 = vunpack.c.l.b16 %v1429
        %v1462 = vpack.c.b16 %v1447, %v1446
        %v1463 = vpack.c.b16 %v1449, %v1448
        %v1464 = vpack.c.b16 %v1451, %v1450
        %v1465 = vpack.c.b16 %v1453, %v1452
        %v1466 = vpack.c.b16 %v1455, %v1454
        %v1467 = vpack.c.b16 %v1457, %v1456
        %v1468 = vpack.c.b16 %v1459, %v1458
        %v1469 = vpack.c.b16 %v1461, %v1460
        %1478 = vmatprep.subr.bf16.mxu0 0
        %1479 = vmatpush1.bf16.msra.mxu0 %v1462
        %1480 = vmatprep.subr.bf16.mxu0 0
        %1481 = vmatpush1.bf16.msra.mxu0 %v1463
        %1482 = vmatprep.subr.bf16.mxu0 0
        %1483 = vmatpush1.bf16.msra.mxu0 %v1464
        %1484 = vmatprep.subr.bf16.mxu0 0
        %1485 = vmatpush1.bf16.msra.mxu0 %v1465
        %1486 = vmatprep.subr.bf16.mxu0 0
        %1487 = vmatpush1.bf16.msra.mxu0 %v1466
        %1488 = vmatprep.subr.bf16.mxu0 0
        %1489 = vmatpush1.bf16.msra.mxu0 %v1467
        %1490 = vmatprep.subr.bf16.mxu0 0
        %1491 = vmatpush1.bf16.msra.mxu0 %v1468
        %1492 = vmatprep.subr.bf16.mxu0 0
        %1493 = vmatpush1.bf16.msra.mxu0 %v1469
        %1494 = vmatprep.subr.bf16.mxu0 0
        %1495 = vmatpush1.bf16.msra.mxu0 0
        %1496 = vmatprep.subr.bf16.mxu0 0
        %1497 = vmatpush1.bf16.msra.mxu0 0
        %1498 = vmatprep.subr.bf16.mxu0 0
        %1499 = vmatpush1.bf16.msra.mxu0 0
        %1500 = vmatprep.subr.bf16.mxu0 0
        %1501 = vmatpush1.bf16.msra.mxu0 0
        %1502 = vmatprep.subr.bf16.mxu0 0
        %1503 = vmatpush1.bf16.msra.mxu0 0
        %1504 = vmatprep.subr.bf16.mxu0 0
        %1505 = vmatpush1.bf16.msra.mxu0 0
        %1506 = vmatprep.subr.bf16.mxu0 0
        %1507 = vmatpush1.bf16.msra.mxu0 0
        %1508 = vmatprep.subr.bf16.mxu0 0
        %1509 = vmatpush1.bf16.msra.mxu0 0
        %1510 = vmatprep.mubr.bf16.mxu0 0
        %1511 = vmatmul.mubr.bf16.gmra.mrb[0].mxu0 %v1412
        %v1512 = vpop.f32.mrb[0].mxu0
        %v1513 = vadd.f32 0.0, %v1512
        %v1514 = vpop.f32.mrb[0].mxu0
        %v1515 = vpop.f32.mrb[0].mxu0
        %v1516 = vadd.f32 0.0, %v1515
        %v1517 = vpop.f32.mrb[0].mxu0
        %1518 = vdwg.mxu0
        %v1535 = vunpack.c.l.b16 %v1388
        %v1536 = vunpack.c.l.b16 %v1389
        %v1537 = vunpack.c.l.b16 %v1390
        %v1538 = vunpack.c.l.b16 %v1391
        %v1539 = vunpack.c.l.b16 %v1392
        %v1540 = vunpack.c.l.b16 %v1393
        %v1541 = vunpack.c.l.b16 %v1394
        %v1542 = vunpack.c.l.b16 %v1395
        %v1543 = vunpack.c.l.b16 %v1396
        %v1544 = vunpack.c.l.b16 %v1397
        %v1545 = vunpack.c.l.b16 %v1398
        %v1546 = vunpack.c.l.b16 %v1399
        %v1547 = vunpack.c.l.b16 %v1400
        %v1548 = vunpack.c.l.b16 %v1401
        %v1549 = vunpack.c.l.b16 %v1402
        %v1550 = vunpack.c.l.b16 %v1403
        %v1551 = vpack.c.b16 %v1536, %v1535
        %v1552 = vpack.c.b16 %v1538, %v1537
        %v1553 = vpack.c.b16 %v1540, %v1539
        %v1554 = vpack.c.b16 %v1542, %v1541
        %v1555 = vpack.c.b16 %v1544, %v1543
        %v1556 = vpack.c.b16 %v1546, %v1545
        %v1557 = vpack.c.b16 %v1548, %v1547
        %v1558 = vpack.c.b16 %v1550, %v1549
        %1567 = vmatprep.subr.bf16.mxu0 0
        %1568 = vmatpush1.bf16.msra.mxu0 %v1551
        %1569 = vmatprep.subr.bf16.mxu0 0
        %1570 = vmatpush1.bf16.msra.mxu0 %v1552
        %1571 = vmatprep.subr.bf16.mxu0 0
        %1572 = vmatpush1.bf16.msra.mxu0 %v1553
        %1573 = vmatprep.subr.bf16.mxu0 0
        %1574 = vmatpush1.bf16.msra.mxu0 %v1554
        %1575 = vmatprep.subr.bf16.mxu0 0
        %1576 = vmatpush1.bf16.msra.mxu0 %v1555
        %1577 = vmatprep.subr.bf16.mxu0 0
        %1578 = vmatpush1.bf16.msra.mxu0 %v1556
        %1579 = vmatprep.subr.bf16.mxu0 0
        %1580 = vmatpush1.bf16.msra.mxu0 %v1557
        %1581 = vmatprep.subr.bf16.mxu0 0
        %1582 = vmatpush1.bf16.msra.mxu0 %v1558
        %1583 = vmatprep.subr.bf16.mxu0 0
        %1584 = vmatpush1.bf16.msra.mxu0 0
        %1585 = vmatprep.subr.bf16.mxu0 0
        %1586 = vmatpush1.bf16.msra.mxu0 0
        %1587 = vmatprep.subr.bf16.mxu0 0
        %1588 = vmatpush1.bf16.msra.mxu0 0
        %1589 = vmatprep.subr.bf16.mxu0 0
        %1590 = vmatpush1.bf16.msra.mxu0 0
        %1591 = vmatprep.subr.bf16.mxu0 0
        %1592 = vmatpush1.bf16.msra.mxu0 0
        %1593 = vmatprep.subr.bf16.mxu0 0
        %1594 = vmatpush1.bf16.msra.mxu0 0
        %1595 = vmatprep.subr.bf16.mxu0 0
        %1596 = vmatpush1.bf16.msra.mxu0 0
        %1597 = vmatprep.subr.bf16.mxu0 0
        %1598 = vmatpush1.bf16.msra.mxu0 0
        %1599 = vmatprep.mubr.bf16.mxu0 0
        %1600 = vmatmul.mubr.bf16.gmra.mrb[0].mxu0 %v1387
        %v1601 = vpop.f32.mrb[0].mxu0
        %v1602 = vadd.f32 %v1513, %v1601
        %v1603 = vpop.f32.mrb[0].mxu0
        %v1604 = vpop.f32.mrb[0].mxu0
        %v1605 = vadd.f32 %v1516, %v1604
        %v1606 = vpop.f32.mrb[0].mxu0
        %1607 = vdwg.mxu0
        %v1608 = vrot.slane %v1375, 5
        %v1609 = vrot.slane %v1376, 5
        %v1610 = vsel %vm500, %v1608, %v1609
        %v1613 = vsel %vm500, 0.0, %v1608
        %v1614 = vsel %vm517, %v1613, 0.0
        %v1615 = vsel %vm518, %v1610, 0.0
        %v1616 = vpack.c.bf16 %v1615, %v1614
        %s1617 = scalar_lea.vmem %s3, 128
        %v1618 = vld [vmem:[%s1617] sm:$0xf]
        %v1619 = vld [vmem:[%s1617 + $0x4] sm:$0xf]
        %v1620 = vld [vmem:[%s1617 + $0x8] sm:$0xf]
        %v1621 = vld [vmem:[%s1617 + $0xc] sm:$0xf]
        %v1622 = vld [vmem:[%s1617 + $0x10] sm:$0xf]
        %v1623 = vld [vmem:[%s1617 + $0x14] sm:$0xf]
        %v1624 = vld [vmem:[%s1617 + $0x18] sm:$0xf]
        %v1625 = vld [vmem:[%s1617 + $0x1c] sm:$0xf]
        %v1626 = vld [vmem:[%s1617 + $0x20] sm:$0xf]
        %v1627 = vld [vmem:[%s1617 + $0x24] sm:$0xf]
        %v1628 = vld [vmem:[%s1617 + $0x28] sm:$0xf]
        %v1629 = vld [vmem:[%s1617 + $0x2c] sm:$0xf]
        %v1630 = vld [vmem:[%s1617 + $0x30] sm:$0xf]
        %v1631 = vld [vmem:[%s1617 + $0x34] sm:$0xf]
        %v1632 = vld [vmem:[%s1617 + $0x38] sm:$0xf]
        %v1633 = vld [vmem:[%s1617 + $0x3c] sm:$0xf]
        %v1650 = vunpack.c.l.b16 %v1618
        %v1651 = vunpack.c.l.b16 %v1619
        %v1652 = vunpack.c.l.b16 %v1620
        %v1653 = vunpack.c.l.b16 %v1621
        %v1654 = vunpack.c.l.b16 %v1622
        %v1655 = vunpack.c.l.b16 %v1623
        %v1656 = vunpack.c.l.b16 %v1624
        %v1657 = vunpack.c.l.b16 %v1625
        %v1658 = vunpack.c.l.b16 %v1626
        %v1659 = vunpack.c.l.b16 %v1627
        %v1660 = vunpack.c.l.b16 %v1628
        %v1661 = vunpack.c.l.b16 %v1629
        %v1662 = vunpack.c.l.b16 %v1630
        %v1663 = vunpack.c.l.b16 %v1631
        %v1664 = vunpack.c.l.b16 %v1632
        %v1665 = vunpack.c.l.b16 %v1633
        %v1666 = vpack.c.b16 %v1651, %v1650
        %v1667 = vpack.c.b16 %v1653, %v1652
        %v1668 = vpack.c.b16 %v1655, %v1654
        %v1669 = vpack.c.b16 %v1657, %v1656
        %v1670 = vpack.c.b16 %v1659, %v1658
        %v1671 = vpack.c.b16 %v1661, %v1660
        %v1672 = vpack.c.b16 %v1663, %v1662
        %v1673 = vpack.c.b16 %v1665, %v1664
        %1682 = vmatprep.subr.bf16.mxu0 0
        %1683 = vmatpush1.bf16.msra.mxu0 %v1666
        %1684 = vmatprep.subr.bf16.mxu0 0
        %1685 = vmatpush1.bf16.msra.mxu0 %v1667
        %1686 = vmatprep.subr.bf16.mxu0 0
        %1687 = vmatpush1.bf16.msra.mxu0 %v1668
        %1688 = vmatprep.subr.bf16.mxu0 0
        %1689 = vmatpush1.bf16.msra.mxu0 %v1669
        %1690 = vmatprep.subr.bf16.mxu0 0
        %1691 = vmatpush1.bf16.msra.mxu0 %v1670
        %1692 = vmatprep.subr.bf16.mxu0 0
        %1693 = vmatpush1.bf16.msra.mxu0 %v1671
        %1694 = vmatprep.subr.bf16.mxu0 0
        %1695 = vmatpush1.bf16.msra.mxu0 %v1672
        %1696 = vmatprep.subr.bf16.mxu0 0
        %1697 = vmatpush1.bf16.msra.mxu0 %v1673
        %1698 = vmatprep.subr.bf16.mxu0 0
        %1699 = vmatpush1.bf16.msra.mxu0 0
        %1700 = vmatprep.subr.bf16.mxu0 0
        %1701 = vmatpush1.bf16.msra.mxu0 0
        %1702 = vmatprep.subr.bf16.mxu0 0
        %1703 = vmatpush1.bf16.msra.mxu0 0
        %1704 = vmatprep.subr.bf16.mxu0 0
        %1705 = vmatpush1.bf16.msra.mxu0 0
        %1706 = vmatprep.subr.bf16.mxu0 0
        %1707 = vmatpush1.bf16.msra.mxu0 0
        %1708 = vmatprep.subr.bf16.mxu0 0
        %1709 = vmatpush1.bf16.msra.mxu0 0
        %1710 = vmatprep.subr.bf16.mxu0 0
        %1711 = vmatpush1.bf16.msra.mxu0 0
        %1712 = vmatprep.subr.bf16.mxu0 0
        %1713 = vmatpush1.bf16.msra.mxu0 0
        %1714 = vmatprep.mubr.bf16.mxu0 0
        %1715 = vmatmul.mubr.bf16.gmra.mrb[0].mxu0 %v1616
        %v1716 = vpop.f32.mrb[0].mxu0
        %v1717 = vadd.f32 0.0, %v1716
        %v1718 = vpop.f32.mrb[0].mxu0
        %v1719 = vpop.f32.mrb[0].mxu0
        %v1720 = vadd.f32 0.0, %v1719
        %v1721 = vpop.f32.mrb[0].mxu0
        %1722 = vdwg.mxu0
        %v1723 = vadd.f32 %v1602, %v1717
        %v1724 = vadd.f32 %v1605, %v1720
        %v1725 = vrot.slane %v1375, 7
        %v1726 = vrot.slane %v1376, 7
        %v1727 = vsel %vm630, %v1725, %v1726
        %v1730 = vsel %vm630, 0.0, %v1725
        %v1731 = vsel %vm647, %v1730, 0.0
        %v1732 = vsel %vm648, %v1727, 0.0
        %v1733 = vpack.c.bf16 %v1732, %v1731
        %s1734 = scalar_lea.vmem %s3, 192
        %v1735 = vld [vmem:[%s1734] sm:$0xf]
        %v1736 = vld [vmem:[%s1734 + $0x4] sm:$0xf]
        %v1737 = vld [vmem:[%s1734 + $0x8] sm:$0xf]
        %v1738 = vld [vmem:[%s1734 + $0xc] sm:$0xf]
        %v1739 = vld [vmem:[%s1734 + $0x10] sm:$0xf]
        %v1740 = vld [vmem:[%s1734 + $0x14] sm:$0xf]
        %v1741 = vld [vmem:[%s1734 + $0x18] sm:$0xf]
        %v1742 = vld [vmem:[%s1734 + $0x1c] sm:$0xf]
        %v1743 = vld [vmem:[%s1734 + $0x20] sm:$0xf]
        %v1744 = vld [vmem:[%s1734 + $0x24] sm:$0xf]
        %v1745 = vld [vmem:[%s1734 + $0x28] sm:$0xf]
        %v1746 = vld [vmem:[%s1734 + $0x2c] sm:$0xf]
        %v1747 = vld [vmem:[%s1734 + $0x30] sm:$0xf]
        %v1748 = vld [vmem:[%s1734 + $0x34] sm:$0xf]
        %v1749 = vld [vmem:[%s1734 + $0x38] sm:$0xf]
        %v1750 = vld [vmem:[%s1734 + $0x3c] sm:$0xf]
        %v1767 = vunpack.c.l.b16 %v1735
        %v1768 = vunpack.c.l.b16 %v1736
        %v1769 = vunpack.c.l.b16 %v1737
        %v1770 = vunpack.c.l.b16 %v1738
        %v1771 = vunpack.c.l.b16 %v1739
        %v1772 = vunpack.c.l.b16 %v1740
        %v1773 = vunpack.c.l.b16 %v1741
        %v1774 = vunpack.c.l.b16 %v1742
        %v1775 = vunpack.c.l.b16 %v1743
        %v1776 = vunpack.c.l.b16 %v1744
        %v1777 = vunpack.c.l.b16 %v1745
        %v1778 = vunpack.c.l.b16 %v1746
        %v1779 = vunpack.c.l.b16 %v1747
        %v1780 = vunpack.c.l.b16 %v1748
        %v1781 = vunpack.c.l.b16 %v1749
        %v1782 = vunpack.c.l.b16 %v1750
        %v1783 = vpack.c.b16 %v1768, %v1767
        %v1784 = vpack.c.b16 %v1770, %v1769
        %v1785 = vpack.c.b16 %v1772, %v1771
        %v1786 = vpack.c.b16 %v1774, %v1773
        %v1787 = vpack.c.b16 %v1776, %v1775
        %v1788 = vpack.c.b16 %v1778, %v1777
        %v1789 = vpack.c.b16 %v1780, %v1779
        %v1790 = vpack.c.b16 %v1782, %v1781
        %1799 = vmatprep.subr.bf16.mxu0 0
        %1800 = vmatpush1.bf16.msra.mxu0 %v1783
        %1801 = vmatprep.subr.bf16.mxu0 0
        %1802 = vmatpush1.bf16.msra.mxu0 %v1784
        %1803 = vmatprep.subr.bf16.mxu0 0
        %1804 = vmatpush1.bf16.msra.mxu0 %v1785
        %1805 = vmatprep.subr.bf16.mxu0 0
        %1806 = vmatpush1.bf16.msra.mxu0 %v1786
        %1807 = vmatprep.subr.bf16.mxu0 0
        %1808 = vmatpush1.bf16.msra.mxu0 %v1787
        %1809 = vmatprep.subr.bf16.mxu0 0
        %1810 = vmatpush1.bf16.msra.mxu0 %v1788
        %1811 = vmatprep.subr.bf16.mxu0 0
        %1812 = vmatpush1.bf16.msra.mxu0 %v1789
        %1813 = vmatprep.subr.bf16.mxu0 0
        %1814 = vmatpush1.bf16.msra.mxu0 %v1790
        %1815 = vmatprep.subr.bf16.mxu0 0
        %1816 = vmatpush1.bf16.msra.mxu0 0
        %1817 = vmatprep.subr.bf16.mxu0 0
        %1818 = vmatpush1.bf16.msra.mxu0 0
        %1819 = vmatprep.subr.bf16.mxu0 0
        %1820 = vmatpush1.bf16.msra.mxu0 0
        %1821 = vmatprep.subr.bf16.mxu0 0
        %1822 = vmatpush1.bf16.msra.mxu0 0
        %1823 = vmatprep.subr.bf16.mxu0 0
        %1824 = vmatpush1.bf16.msra.mxu0 0
        %1825 = vmatprep.subr.bf16.mxu0 0
        %1826 = vmatpush1.bf16.msra.mxu0 0
        %1827 = vmatprep.subr.bf16.mxu0 0
        %1828 = vmatpush1.bf16.msra.mxu0 0
        %1829 = vmatprep.subr.bf16.mxu0 0
        %1830 = vmatpush1.bf16.msra.mxu0 0
        %1831 = vmatprep.mubr.bf16.mxu0 0
        %1832 = vmatmul.mubr.bf16.gmra.mrb[0].mxu0 %v1733
        %v1833 = vpop.f32.mrb[0].mxu0
        %v1834 = vadd.f32 0.0, %v1833
        %v1835 = vpop.f32.mrb[0].mxu0
        %v1836 = vpop.f32.mrb[0].mxu0
        %v1837 = vadd.f32 0.0, %v1836
        %v1838 = vpop.f32.mrb[0].mxu0
        %1839 = vdwg.mxu0
        %v1840 = vadd.f32 %v1723, %v1834
        %v1841 = vadd.f32 %v1724, %v1837
        %v1842 = vsel %vm764, %v1375, 0.0
        %v1843 = vsel %vm765, %v1376, 0.0
        %v1844 = vpack.c.bf16 %v1843, %v1842
        %s1845 = scalar_lea.vmem %s3, 256
        %v1846 = vld [vmem:[%s1845] sm:$0xf]
        %v1847 = vld [vmem:[%s1845 + $0x4] sm:$0xf]
        %v1848 = vld [vmem:[%s1845 + $0x8] sm:$0xf]
        %v1849 = vld [vmem:[%s1845 + $0xc] sm:$0xf]
        %v1850 = vld [vmem:[%s1845 + $0x10] sm:$0xf]
        %v1851 = vld [vmem:[%s1845 + $0x14] sm:$0xf]
        %v1852 = vld [vmem:[%s1845 + $0x18] sm:$0xf]
        %v1853 = vld [vmem:[%s1845 + $0x1c] sm:$0xf]
        %v1854 = vld [vmem:[%s1845 + $0x20] sm:$0xf]
        %v1855 = vld [vmem:[%s1845 + $0x24] sm:$0xf]
        %v1856 = vld [vmem:[%s1845 + $0x28] sm:$0xf]
        %v1857 = vld [vmem:[%s1845 + $0x2c] sm:$0xf]
        %v1858 = vld [vmem:[%s1845 + $0x30] sm:$0xf]
        %v1859 = vld [vmem:[%s1845 + $0x34] sm:$0xf]
        %v1860 = vld [vmem:[%s1845 + $0x38] sm:$0xf]
        %v1861 = vld [vmem:[%s1845 + $0x3c] sm:$0xf]
        %v1878 = vunpack.c.l.b16 %v1846
        %v1879 = vunpack.c.l.b16 %v1847
        %v1880 = vunpack.c.l.b16 %v1848
        %v1881 = vunpack.c.l.b16 %v1849
        %v1882 = vunpack.c.l.b16 %v1850
        %v1883 = vunpack.c.l.b16 %v1851
        %v1884 = vunpack.c.l.b16 %v1852
        %v1885 = vunpack.c.l.b16 %v1853
        %v1886 = vunpack.c.l.b16 %v1854
        %v1887 = vunpack.c.l.b16 %v1855
        %v1888 = vunpack.c.l.b16 %v1856
        %v1889 = vunpack.c.l.b16 %v1857
        %v1890 = vunpack.c.l.b16 %v1858
        %v1891 = vunpack.c.l.b16 %v1859
        %v1892 = vunpack.c.l.b16 %v1860
        %v1893 = vunpack.c.l.b16 %v1861
        %v1894 = vpack.c.b16 %v1879, %v1878
        %v1895 = vpack.c.b16 %v1881, %v1880
        %v1896 = vpack.c.b16 %v1883, %v1882
        %v1897 = vpack.c.b16 %v1885, %v1884
        %v1898 = vpack.c.b16 %v1887, %v1886
        %v1899 = vpack.c.b16 %v1889, %v1888
        %v1900 = vpack.c.b16 %v1891, %v1890
        %v1901 = vpack.c.b16 %v1893, %v1892
        %1910 = vmatprep.subr.bf16.mxu0 0
        %1911 = vmatpush1.bf16.msra.mxu0 %v1894
        %1912 = vmatprep.subr.bf16.mxu0 0
        %1913 = vmatpush1.bf16.msra.mxu0 %v1895
        %1914 = vmatprep.subr.bf16.mxu0 0
        %1915 = vmatpush1.bf16.msra.mxu0 %v1896
        %1916 = vmatprep.subr.bf16.mxu0 0
        %1917 = vmatpush1.bf16.msra.mxu0 %v1897
        %1918 = vmatprep.subr.bf16.mxu0 0
        %1919 = vmatpush1.bf16.msra.mxu0 %v1898
        %1920 = vmatprep.subr.bf16.mxu0 0
        %1921 = vmatpush1.bf16.msra.mxu0 %v1899
        %1922 = vmatprep.subr.bf16.mxu0 0
        %1923 = vmatpush1.bf16.msra.mxu0 %v1900
        %1924 = vmatprep.subr.bf16.mxu0 0
        %1925 = vmatpush1.bf16.msra.mxu0 %v1901
        %1926 = vmatprep.subr.bf16.mxu0 0
        %1927 = vmatpush1.bf16.msra.mxu0 0
        %1928 = vmatprep.subr.bf16.mxu0 0
        %1929 = vmatpush1.bf16.msra.mxu0 0
        %1930 = vmatprep.subr.bf16.mxu0 0
        %1931 = vmatpush1.bf16.msra.mxu0 0
        %1932 = vmatprep.subr.bf16.mxu0 0
        %1933 = vmatpush1.bf16.msra.mxu0 0
        %1934 = vmatprep.subr.bf16.mxu0 0
        %1935 = vmatpush1.bf16.msra.mxu0 0
        %1936 = vmatprep.subr.bf16.mxu0 0
        %1937 = vmatpush1.bf16.msra.mxu0 0
        %1938 = vmatprep.subr.bf16.mxu0 0
        %1939 = vmatpush1.bf16.msra.mxu0 0
        %1940 = vmatprep.subr.bf16.mxu0 0
        %1941 = vmatpush1.bf16.msra.mxu0 0
        %1942 = vmatprep.mubr.bf16.mxu0 0
        %1943 = vmatmul.mubr.bf16.gmra.mrb[0].mxu0 %v1844
        %v1944 = vpop.f32.mrb[0].mxu0
        %v1945 = vadd.f32 0.0, %v1944
        %v1946 = vpop.f32.mrb[0].mxu0
        %v1947 = vpop.f32.mrb[0].mxu0
        %v1948 = vadd.f32 0.0, %v1947
        %v1949 = vpop.f32.mrb[0].mxu0
        %1950 = vdwg.mxu0
        %v1951 = vadd.f32 %v1840, %v1945
        %v1952 = vadd.f32 %v1841, %v1948
        %v1953 = vrot.slane %v1375, 1
        %v1954 = vrot.slane %v1376, 1
        %v1955 = vsel %vm877, %v1953, %v1954
        %v1958 = vsel %vm877, %v1954, 0.0
        %v1959 = vsel %vm888, %v1955, 0.0
        %v1960 = vsel %vm889, %v1958, 0.0
        %v1961 = vpack.c.bf16 %v1960, %v1959
        %s1962 = scalar_lea.vmem %s3, 320
        %v1963 = vld [vmem:[%s1962] sm:$0xf]
        %v1964 = vld [vmem:[%s1962 + $0x4] sm:$0xf]
        %v1965 = vld [vmem:[%s1962 + $0x8] sm:$0xf]
        %v1966 = vld [vmem:[%s1962 + $0xc] sm:$0xf]
        %v1967 = vld [vmem:[%s1962 + $0x10] sm:$0xf]
        %v1968 = vld [vmem:[%s1962 + $0x14] sm:$0xf]
        %v1969 = vld [vmem:[%s1962 + $0x18] sm:$0xf]
        %v1970 = vld [vmem:[%s1962 + $0x1c] sm:$0xf]
        %v1971 = vld [vmem:[%s1962 + $0x20] sm:$0xf]
        %v1972 = vld [vmem:[%s1962 + $0x24] sm:$0xf]
        %v1973 = vld [vmem:[%s1962 + $0x28] sm:$0xf]
        %v1974 = vld [vmem:[%s1962 + $0x2c] sm:$0xf]
        %v1975 = vld [vmem:[%s1962 + $0x30] sm:$0xf]
        %v1976 = vld [vmem:[%s1962 + $0x34] sm:$0xf]
        %v1977 = vld [vmem:[%s1962 + $0x38] sm:$0xf]
        %v1978 = vld [vmem:[%s1962 + $0x3c] sm:$0xf]
        %v1995 = vunpack.c.l.b16 %v1963
        %v1996 = vunpack.c.l.b16 %v1964
        %v1997 = vunpack.c.l.b16 %v1965
        %v1998 = vunpack.c.l.b16 %v1966
        %v1999 = vunpack.c.l.b16 %v1967
        %v2000 = vunpack.c.l.b16 %v1968
        %v2001 = vunpack.c.l.b16 %v1969
        %v2002 = vunpack.c.l.b16 %v1970
        %v2003 = vunpack.c.l.b16 %v1971
        %v2004 = vunpack.c.l.b16 %v1972
        %v2005 = vunpack.c.l.b16 %v1973
        %v2006 = vunpack.c.l.b16 %v1974
        %v2007 = vunpack.c.l.b16 %v1975
        %v2008 = vunpack.c.l.b16 %v1976
        %v2009 = vunpack.c.l.b16 %v1977
        %v2010 = vunpack.c.l.b16 %v1978
        %v2011 = vpack.c.b16 %v1996, %v1995
        %v2012 = vpack.c.b16 %v1998, %v1997
        %v2013 = vpack.c.b16 %v2000, %v1999
        %v2014 = vpack.c.b16 %v2002, %v2001
        %v2015 = vpack.c.b16 %v2004, %v2003
        %v2016 = vpack.c.b16 %v2006, %v2005
        %v2017 = vpack.c.b16 %v2008, %v2007
        %v2018 = vpack.c.b16 %v2010, %v2009
        %2027 = vmatprep.subr.bf16.mxu0 0
        %2028 = vmatpush1.bf16.msra.mxu0 %v2011
        %2029 = vmatprep.subr.bf16.mxu0 0
        %2030 = vmatpush1.bf16.msra.mxu0 %v2012
        %2031 = vmatprep.subr.bf16.mxu0 0
        %2032 = vmatpush1.bf16.msra.mxu0 %v2013
        %2033 = vmatprep.subr.bf16.mxu0 0
        %2034 = vmatpush1.bf16.msra.mxu0 %v2014
        %2035 = vmatprep.subr.bf16.mxu0 0
        %2036 = vmatpush1.bf16.msra.mxu0 %v2015
        %2037 = vmatprep.subr.bf16.mxu0 0
        %2038 = vmatpush1.bf16.msra.mxu0 %v2016
        %2039 = vmatprep.subr.bf16.mxu0 0
        %2040 = vmatpush1.bf16.msra.mxu0 %v2017
        %2041 = vmatprep.subr.bf16.mxu0 0
        %2042 = vmatpush1.bf16.msra.mxu0 %v2018
        %2043 = vmatprep.subr.bf16.mxu0 0
        %2044 = vmatpush1.bf16.msra.mxu0 0
        %2045 = vmatprep.subr.bf16.mxu0 0
        %2046 = vmatpush1.bf16.msra.mxu0 0
        %2047 = vmatprep.subr.bf16.mxu0 0
        %2048 = vmatpush1.bf16.msra.mxu0 0
        %2049 = vmatprep.subr.bf16.mxu0 0
        %2050 = vmatpush1.bf16.msra.mxu0 0
        %2051 = vmatprep.subr.bf16.mxu0 0
        %2052 = vmatpush1.bf16.msra.mxu0 0
        %2053 = vmatprep.subr.bf16.mxu0 0
        %2054 = vmatpush1.bf16.msra.mxu0 0
        %2055 = vmatprep.subr.bf16.mxu0 0
        %2056 = vmatpush1.bf16.msra.mxu0 0
        %2057 = vmatprep.subr.bf16.mxu0 0
        %2058 = vmatpush1.bf16.msra.mxu0 0
        %2059 = vmatprep.mubr.bf16.mxu0 0
        %2060 = vmatmul.mubr.bf16.gmra.mrb[0].mxu0 %v1961
        %v2061 = vpop.f32.mrb[0].mxu0
        %v2062 = vadd.f32 0.0, %v2061
        %v2063 = vpop.f32.mrb[0].mxu0
        %v2064 = vpop.f32.mrb[0].mxu0
        %v2065 = vadd.f32 0.0, %v2064
        %v2066 = vpop.f32.mrb[0].mxu0
        %2067 = vdwg.mxu0
        %v2068 = vadd.f32 %v1951, %v2062
        %v2069 = vadd.f32 %v1952, %v2065
        %v2071 = vsel %vm237, %v1380, 0.0
        %v2072 = vsel %vm1015, %v1381, 0.0
        %v2073 = vsel %vm1016, %v2071, 0.0
        %v2074 = vpack.c.bf16 %v2073, %v2072
        %s2075 = scalar_lea.vmem %s3, 384
        %v2076 = vld [vmem:[%s2075] sm:$0xf]
        %v2077 = vld [vmem:[%s2075 + $0x4] sm:$0xf]
        %v2078 = vld [vmem:[%s2075 + $0x8] sm:$0xf]
        %v2079 = vld [vmem:[%s2075 + $0xc] sm:$0xf]
        %v2080 = vld [vmem:[%s2075 + $0x10] sm:$0xf]
        %v2081 = vld [vmem:[%s2075 + $0x14] sm:$0xf]
        %v2082 = vld [vmem:[%s2075 + $0x18] sm:$0xf]
        %v2083 = vld [vmem:[%s2075 + $0x1c] sm:$0xf]
        %v2084 = vld [vmem:[%s2075 + $0x20] sm:$0xf]
        %v2085 = vld [vmem:[%s2075 + $0x24] sm:$0xf]
        %v2086 = vld [vmem:[%s2075 + $0x28] sm:$0xf]
        %v2087 = vld [vmem:[%s2075 + $0x2c] sm:$0xf]
        %v2088 = vld [vmem:[%s2075 + $0x30] sm:$0xf]
        %v2089 = vld [vmem:[%s2075 + $0x34] sm:$0xf]
        %v2090 = vld [vmem:[%s2075 + $0x38] sm:$0xf]
        %v2091 = vld [vmem:[%s2075 + $0x3c] sm:$0xf]
        %v2108 = vunpack.c.l.b16 %v2076
        %v2109 = vunpack.c.l.b16 %v2077
        %v2110 = vunpack.c.l.b16 %v2078
        %v2111 = vunpack.c.l.b16 %v2079
        %v2112 = vunpack.c.l.b16 %v2080
        %v2113 = vunpack.c.l.b16 %v2081
        %v2114 = vunpack.c.l.b16 %v2082
        %v2115 = vunpack.c.l.b16 %v2083
        %v2116 = vunpack.c.l.b16 %v2084
        %v2117 = vunpack.c.l.b16 %v2085
        %v2118 = vunpack.c.l.b16 %v2086
        %v2119 = vunpack.c.l.b16 %v2087
        %v2120 = vunpack.c.l.b16 %v2088
        %v2121 = vunpack.c.l.b16 %v2089
        %v2122 = vunpack.c.l.b16 %v2090
        %v2123 = vunpack.c.l.b16 %v2091
        %v2124 = vpack.c.b16 %v2109, %v2108
        %v2125 = vpack.c.b16 %v2111, %v2110
        %v2126 = vpack.c.b16 %v2113, %v2112
        %v2127 = vpack.c.b16 %v2115, %v2114
        %v2128 = vpack.c.b16 %v2117, %v2116
        %v2129 = vpack.c.b16 %v2119, %v2118
        %v2130 = vpack.c.b16 %v2121, %v2120
        %v2131 = vpack.c.b16 %v2123, %v2122
        %2140 = vmatprep.subr.bf16.mxu0 0
        %2141 = vmatpush1.bf16.msra.mxu0 %v2124
        %2142 = vmatprep.subr.bf16.mxu0 0
        %2143 = vmatpush1.bf16.msra.mxu0 %v2125
        %2144 = vmatprep.subr.bf16.mxu0 0
        %2145 = vmatpush1.bf16.msra.mxu0 %v2126
        %2146 = vmatprep.subr.bf16.mxu0 0
        %2147 = vmatpush1.bf16.msra.mxu0 %v2127
        %2148 = vmatprep.subr.bf16.mxu0 0
        %2149 = vmatpush1.bf16.msra.mxu0 %v2128
        %2150 = vmatprep.subr.bf16.mxu0 0
        %2151 = vmatpush1.bf16.msra.mxu0 %v2129
        %2152 = vmatprep.subr.bf16.mxu0 0
        %2153 = vmatpush1.bf16.msra.mxu0 %v2130
        %2154 = vmatprep.subr.bf16.mxu0 0
        %2155 = vmatpush1.bf16.msra.mxu0 %v2131
        %2156 = vmatprep.subr.bf16.mxu0 0
        %2157 = vmatpush1.bf16.msra.mxu0 0
        %2158 = vmatprep.subr.bf16.mxu0 0
        %2159 = vmatpush1.bf16.msra.mxu0 0
        %2160 = vmatprep.subr.bf16.mxu0 0
        %2161 = vmatpush1.bf16.msra.mxu0 0
        %2162 = vmatprep.subr.bf16.mxu0 0
        %2163 = vmatpush1.bf16.msra.mxu0 0
        %2164 = vmatprep.subr.bf16.mxu0 0
        %2165 = vmatpush1.bf16.msra.mxu0 0
        %2166 = vmatprep.subr.bf16.mxu0 0
        %2167 = vmatpush1.bf16.msra.mxu0 0
        %2168 = vmatprep.subr.bf16.mxu0 0
        %2169 = vmatpush1.bf16.msra.mxu0 0
        %2170 = vmatprep.subr.bf16.mxu0 0
        %2171 = vmatpush1.bf16.msra.mxu0 0
        %2172 = vmatprep.mubr.bf16.mxu0 0
        %2173 = vmatmul.mubr.bf16.gmra.mrb[0].mxu0 %v2074
        %v2174 = vpop.f32.mrb[0].mxu0
        %v2175 = vadd.f32 0.0, %v2174
        %v2176 = vpop.f32.mrb[0].mxu0
        %v2177 = vpop.f32.mrb[0].mxu0
        %v2178 = vadd.f32 0.0, %v2177
        %v2179 = vpop.f32.mrb[0].mxu0
        %2180 = vdwg.mxu0
        %v2181 = vadd.f32 %v2068, %v2175
        %v2182 = vadd.f32 %v2069, %v2178
        %v2184 = vsel %vm285, %v1405, 0.0
        %v2185 = vsel %vm1134, %v1406, 0.0
        %v2186 = vsel %vm1135, %v2184, 0.0
        %v2187 = vpack.c.bf16 %v2186, %v2185
        %s2188 = scalar_lea.vmem %s3, 448
        %v2189 = vld [vmem:[%s2188] sm:$0xf]
        %v2190 = vld [vmem:[%s2188 + $0x4] sm:$0xf]
        %v2191 = vld [vmem:[%s2188 + $0x8] sm:$0xf]
        %v2192 = vld [vmem:[%s2188 + $0xc] sm:$0xf]
        %v2193 = vld [vmem:[%s2188 + $0x10] sm:$0xf]
        %v2194 = vld [vmem:[%s2188 + $0x14] sm:$0xf]
        %v2195 = vld [vmem:[%s2188 + $0x18] sm:$0xf]
        %v2196 = vld [vmem:[%s2188 + $0x1c] sm:$0xf]
        %v2197 = vld [vmem:[%s2188 + $0x20] sm:$0xf]
        %v2198 = vld [vmem:[%s2188 + $0x24] sm:$0xf]
        %v2199 = vld [vmem:[%s2188 + $0x28] sm:$0xf]
        %v2200 = vld [vmem:[%s2188 + $0x2c] sm:$0xf]
        %v2201 = vld [vmem:[%s2188 + $0x30] sm:$0xf]
        %v2202 = vld [vmem:[%s2188 + $0x34] sm:$0xf]
        %v2203 = vld [vmem:[%s2188 + $0x38] sm:$0xf]
        %v2204 = vld [vmem:[%s2188 + $0x3c] sm:$0xf]
        %v2221 = vunpack.c.l.b16 %v2189
        %v2222 = vunpack.c.l.b16 %v2190
        %v2223 = vunpack.c.l.b16 %v2191
        %v2224 = vunpack.c.l.b16 %v2192
        %v2225 = vunpack.c.l.b16 %v2193
        %v2226 = vunpack.c.l.b16 %v2194
        %v2227 = vunpack.c.l.b16 %v2195
        %v2228 = vunpack.c.l.b16 %v2196
        %v2229 = vunpack.c.l.b16 %v2197
        %v2230 = vunpack.c.l.b16 %v2198
        %v2231 = vunpack.c.l.b16 %v2199
        %v2232 = vunpack.c.l.b16 %v2200
        %v2233 = vunpack.c.l.b16 %v2201
        %v2234 = vunpack.c.l.b16 %v2202
        %v2235 = vunpack.c.l.b16 %v2203
        %v2236 = vunpack.c.l.b16 %v2204
        %v2237 = vpack.c.b16 %v2222, %v2221
        %v2238 = vpack.c.b16 %v2224, %v2223
        %v2239 = vpack.c.b16 %v2226, %v2225
        %v2240 = vpack.c.b16 %v2228, %v2227
        %v2241 = vpack.c.b16 %v2230, %v2229
        %v2242 = vpack.c.b16 %v2232, %v2231
        %v2243 = vpack.c.b16 %v2234, %v2233
        %v2244 = vpack.c.b16 %v2236, %v2235
        %2253 = vmatprep.subr.bf16.mxu0 0
        %2254 = vmatpush1.bf16.msra.mxu0 %v2237
        %2255 = vmatprep.subr.bf16.mxu0 0
        %2256 = vmatpush1.bf16.msra.mxu0 %v2238
        %2257 = vmatprep.subr.bf16.mxu0 0
        %2258 = vmatpush1.bf16.msra.mxu0 %v2239
        %2259 = vmatprep.subr.bf16.mxu0 0
        %2260 = vmatpush1.bf16.msra.mxu0 %v2240
        %2261 = vmatprep.subr.bf16.mxu0 0
        %2262 = vmatpush1.bf16.msra.mxu0 %v2241
        %2263 = vmatprep.subr.bf16.mxu0 0
        %2264 = vmatpush1.bf16.msra.mxu0 %v2242
        %2265 = vmatprep.subr.bf16.mxu0 0
        %2266 = vmatpush1.bf16.msra.mxu0 %v2243
        %2267 = vmatprep.subr.bf16.mxu0 0
        %2268 = vmatpush1.bf16.msra.mxu0 %v2244
        %2269 = vmatprep.subr.bf16.mxu0 0
        %2270 = vmatpush1.bf16.msra.mxu0 0
        %2271 = vmatprep.subr.bf16.mxu0 0
        %2272 = vmatpush1.bf16.msra.mxu0 0
        %2273 = vmatprep.subr.bf16.mxu0 0
        %2274 = vmatpush1.bf16.msra.mxu0 0
        %2275 = vmatprep.subr.bf16.mxu0 0
        %2276 = vmatpush1.bf16.msra.mxu0 0
        %2277 = vmatprep.subr.bf16.mxu0 0
        %2278 = vmatpush1.bf16.msra.mxu0 0
        %2279 = vmatprep.subr.bf16.mxu0 0
        %2280 = vmatpush1.bf16.msra.mxu0 0
        %2281 = vmatprep.subr.bf16.mxu0 0
        %2282 = vmatpush1.bf16.msra.mxu0 0
        %2283 = vmatprep.subr.bf16.mxu0 0
        %2284 = vmatpush1.bf16.msra.mxu0 0
        %2285 = vmatprep.mubr.bf16.mxu0 0
        %2286 = vmatmul.mubr.bf16.gmra.mrb[0].mxu0 %v2187
        %v2287 = vpop.f32.mrb[0].mxu0
        %v2288 = vadd.f32 0.0, %v2287
        %v2289 = vpop.f32.mrb[0].mxu0
        %v2290 = vpop.f32.mrb[0].mxu0
        %v2291 = vadd.f32 0.0, %v2290
        %v2292 = vpop.f32.mrb[0].mxu0
        %2293 = vdwg.mxu0
        %v2294 = vadd.f32 %v2181, %v2288
        %v2295 = vadd.f32 %v2182, %v2291
        %v2297 = vsel %vm500, %v1609, 0.0
        %v2298 = vsel %vm1253, %v1610, 0.0
        %v2299 = vsel %vm1254, %v2297, 0.0
        %v2300 = vpack.c.bf16 %v2299, %v2298
        %s2301 = scalar_lea.vmem %s3, 512
        %v2302 = vld [vmem:[%s2301] sm:$0xf]
        %v2303 = vld [vmem:[%s2301 + $0x4] sm:$0xf]
        %v2304 = vld [vmem:[%s2301 + $0x8] sm:$0xf]
        %v2305 = vld [vmem:[%s2301 + $0xc] sm:$0xf]
        %v2306 = vld [vmem:[%s2301 + $0x10] sm:$0xf]
        %v2307 = vld [vmem:[%s2301 + $0x14] sm:$0xf]
        %v2308 = vld [vmem:[%s2301 + $0x18] sm:$0xf]
        %v2309 = vld [vmem:[%s2301 + $0x1c] sm:$0xf]
        %v2310 = vld [vmem:[%s2301 + $0x20] sm:$0xf]
        %v2311 = vld [vmem:[%s2301 + $0x24] sm:$0xf]
        %v2312 = vld [vmem:[%s2301 + $0x28] sm:$0xf]
        %v2313 = vld [vmem:[%s2301 + $0x2c] sm:$0xf]
        %v2314 = vld [vmem:[%s2301 + $0x30] sm:$0xf]
        %v2315 = vld [vmem:[%s2301 + $0x34] sm:$0xf]
        %v2316 = vld [vmem:[%s2301 + $0x38] sm:$0xf]
        %v2317 = vld [vmem:[%s2301 + $0x3c] sm:$0xf]
        %v2334 = vunpack.c.l.b16 %v2302
        %v2335 = vunpack.c.l.b16 %v2303
        %v2336 = vunpack.c.l.b16 %v2304
        %v2337 = vunpack.c.l.b16 %v2305
        %v2338 = vunpack.c.l.b16 %v2306
        %v2339 = vunpack.c.l.b16 %v2307
        %v2340 = vunpack.c.l.b16 %v2308
        %v2341 = vunpack.c.l.b16 %v2309
        %v2342 = vunpack.c.l.b16 %v2310
        %v2343 = vunpack.c.l.b16 %v2311
        %v2344 = vunpack.c.l.b16 %v2312
        %v2345 = vunpack.c.l.b16 %v2313
        %v2346 = vunpack.c.l.b16 %v2314
        %v2347 = vunpack.c.l.b16 %v2315
        %v2348 = vunpack.c.l.b16 %v2316
        %v2349 = vunpack.c.l.b16 %v2317
        %v2350 = vpack.c.b16 %v2335, %v2334
        %v2351 = vpack.c.b16 %v2337, %v2336
        %v2352 = vpack.c.b16 %v2339, %v2338
        %v2353 = vpack.c.b16 %v2341, %v2340
        %v2354 = vpack.c.b16 %v2343, %v2342
        %v2355 = vpack.c.b16 %v2345, %v2344
        %v2356 = vpack.c.b16 %v2347, %v2346
        %v2357 = vpack.c.b16 %v2349, %v2348
        %2366 = vmatprep.subr.bf16.mxu0 0
        %2367 = vmatpush1.bf16.msra.mxu0 %v2350
        %2368 = vmatprep.subr.bf16.mxu0 0
        %2369 = vmatpush1.bf16.msra.mxu0 %v2351
        %2370 = vmatprep.subr.bf16.mxu0 0
        %2371 = vmatpush1.bf16.msra.mxu0 %v2352
        %2372 = vmatprep.subr.bf16.mxu0 0
        %2373 = vmatpush1.bf16.msra.mxu0 %v2353
        %2374 = vmatprep.subr.bf16.mxu0 0
        %2375 = vmatpush1.bf16.msra.mxu0 %v2354
        %2376 = vmatprep.subr.bf16.mxu0 0
        %2377 = vmatpush1.bf16.msra.mxu0 %v2355
        %2378 = vmatprep.subr.bf16.mxu0 0
        %2379 = vmatpush1.bf16.msra.mxu0 %v2356
        %2380 = vmatprep.subr.bf16.mxu0 0
        %2381 = vmatpush1.bf16.msra.mxu0 %v2357
        %2382 = vmatprep.subr.bf16.mxu0 0
        %2383 = vmatpush1.bf16.msra.mxu0 0
        %2384 = vmatprep.subr.bf16.mxu0 0
        %2385 = vmatpush1.bf16.msra.mxu0 0
        %2386 = vmatprep.subr.bf16.mxu0 0
        %2387 = vmatpush1.bf16.msra.mxu0 0
        %2388 = vmatprep.subr.bf16.mxu0 0
        %2389 = vmatpush1.bf16.msra.mxu0 0
        %2390 = vmatprep.subr.bf16.mxu0 0
        %2391 = vmatpush1.bf16.msra.mxu0 0
        %2392 = vmatprep.subr.bf16.mxu0 0
        %2393 = vmatpush1.bf16.msra.mxu0 0
        %2394 = vmatprep.subr.bf16.mxu0 0
        %2395 = vmatpush1.bf16.msra.mxu0 0
        %2396 = vmatprep.subr.bf16.mxu0 0
        %2397 = vmatpush1.bf16.msra.mxu0 0
        %2398 = vmatprep.mubr.bf16.mxu0 0
        %2399 = vmatmul.mubr.bf16.gmra.mrb[0].mxu0 %v2300
        %v2400 = vpop.f32.mrb[0].mxu0
        %v2401 = vadd.f32 0.0, %v2400
        %v2402 = vpop.f32.mrb[0].mxu0
        %v2403 = vpop.f32.mrb[0].mxu0
        %v2404 = vadd.f32 0.0, %v2403
        %v2405 = vpop.f32.mrb[0].mxu0
        %2406 = vdwg.mxu0
        %v2407 = vadd.f32 %v2294, %v2401
        %v2408 = vadd.f32 %v2295, %v2404
        %v2409 = vmax.f32 %v2407, 0.0
        %v2410 = vmax.f32 %v2408, 0.0
        %v2411 = vpack.c.bf16 %v2410, %v2409
        %v2412 = vld [vmem:[%s4] sm:$0xf]
        %v2413 = vld [vmem:[%s4 + $0x4] sm:$0xf]
        %v2414 = vld [vmem:[%s4 + $0x8] sm:$0xf]
        %v2415 = vld [vmem:[%s4 + $0xc] sm:$0xf]
        %v2416 = vld [vmem:[%s4 + $0x10] sm:$0xf]
        %v2417 = vld [vmem:[%s4 + $0x14] sm:$0xf]
        %v2418 = vld [vmem:[%s4 + $0x18] sm:$0xf]
        %v2419 = vld [vmem:[%s4 + $0x1c] sm:$0xf]
        %v2420 = vld [vmem:[%s4 + $0x20] sm:$0xf]
        %v2421 = vld [vmem:[%s4 + $0x24] sm:$0xf]
        %v2422 = vld [vmem:[%s4 + $0x28] sm:$0xf]
        %v2423 = vld [vmem:[%s4 + $0x2c] sm:$0xf]
        %v2424 = vld [vmem:[%s4 + $0x30] sm:$0xf]
        %v2425 = vld [vmem:[%s4 + $0x34] sm:$0xf]
        %v2426 = vld [vmem:[%s4 + $0x38] sm:$0xf]
        %v2427 = vld [vmem:[%s4 + $0x3c] sm:$0xf]
        %v2444 = vunpack.c.l.b16 %v2412
        %v2445 = vunpack.c.l.b16 %v2413
        %v2446 = vunpack.c.l.b16 %v2414
        %v2447 = vunpack.c.l.b16 %v2415
        %v2448 = vunpack.c.l.b16 %v2416
        %v2449 = vunpack.c.l.b16 %v2417
        %v2450 = vunpack.c.l.b16 %v2418
        %v2451 = vunpack.c.l.b16 %v2419
        %v2452 = vunpack.c.l.b16 %v2420
        %v2453 = vunpack.c.l.b16 %v2421
        %v2454 = vunpack.c.l.b16 %v2422
        %v2455 = vunpack.c.l.b16 %v2423
        %v2456 = vunpack.c.l.b16 %v2424
        %v2457 = vunpack.c.l.b16 %v2425
        %v2458 = vunpack.c.l.b16 %v2426
        %v2459 = vunpack.c.l.b16 %v2427
        %v2460 = vpack.c.b16 %v2445, %v2444
        %v2461 = vpack.c.b16 %v2447, %v2446
        %v2462 = vpack.c.b16 %v2449, %v2448
        %v2463 = vpack.c.b16 %v2451, %v2450
        %v2464 = vpack.c.b16 %v2453, %v2452
        %v2465 = vpack.c.b16 %v2455, %v2454
        %v2466 = vpack.c.b16 %v2457, %v2456
        %v2467 = vpack.c.b16 %v2459, %v2458
        %2476 = vmatprep.subr.bf16.mxu0 0
        %2477 = vmatpush1.bf16.msra.mxu0 %v2460
        %2478 = vmatprep.subr.bf16.mxu0 0
        %2479 = vmatpush1.bf16.msra.mxu0 %v2461
        %2480 = vmatprep.subr.bf16.mxu0 0
        %2481 = vmatpush1.bf16.msra.mxu0 %v2462
        %2482 = vmatprep.subr.bf16.mxu0 0
        %2483 = vmatpush1.bf16.msra.mxu0 %v2463
        %2484 = vmatprep.subr.bf16.mxu0 0
        %2485 = vmatpush1.bf16.msra.mxu0 %v2464
        %2486 = vmatprep.subr.bf16.mxu0 0
        %2487 = vmatpush1.bf16.msra.mxu0 %v2465
        %2488 = vmatprep.subr.bf16.mxu0 0
        %2489 = vmatpush1.bf16.msra.mxu0 %v2466
        %2490 = vmatprep.subr.bf16.mxu0 0
        %2491 = vmatpush1.bf16.msra.mxu0 %v2467
        %2492 = vmatprep.subr.bf16.mxu0 0
        %2493 = vmatpush1.bf16.msra.mxu0 0
        %2494 = vmatprep.subr.bf16.mxu0 0
        %2495 = vmatpush1.bf16.msra.mxu0 0
        %2496 = vmatprep.subr.bf16.mxu0 0
        %2497 = vmatpush1.bf16.msra.mxu0 0
        %2498 = vmatprep.subr.bf16.mxu0 0
        %2499 = vmatpush1.bf16.msra.mxu0 0
        %2500 = vmatprep.subr.bf16.mxu0 0
        %2501 = vmatpush1.bf16.msra.mxu0 0
        %2502 = vmatprep.subr.bf16.mxu0 0
        %2503 = vmatpush1.bf16.msra.mxu0 0
        %2504 = vmatprep.subr.bf16.mxu0 0
        %2505 = vmatpush1.bf16.msra.mxu0 0
        %2506 = vmatprep.subr.bf16.mxu0 0
        %2507 = vmatpush1.bf16.msra.mxu0 0
        %2508 = vmatprep.mubr.bf16.mxu0 0
        %2509 = vmatmul.mubr.bf16.gmra.mrb[0].mxu0 %v2411
        %v2510 = vpop.f32.mrb[0].mxu0
        %v2511 = vadd.f32 0.0, %v2510
        %v2512 = vpop.f32.mrb[0].mxu0
        %v2513 = vpop.f32.mrb[0].mxu0
        %v2514 = vadd.f32 0.0, %v2513
        %v2515 = vpop.f32.mrb[0].mxu0
        %2516 = vdwg.mxu0
        %v2517 = vadd.f32 %v1373, %v2511
        %v2518 = vadd.f32 %v1374, %v2514
        %v2519 = vmax.f32 %v2517, 0.0
        %v2520 = vmax.f32 %v2518, 0.0
        %v2523 = vrot.slane %v2519, 3
        %v2524 = vrot.slane %v2520, 3
        %v2525 = vsel %vm237, %v2523, %v2524
        %v2528 = vsel %vm237, 0.0, %v2523
        %v2529 = vsel %vm264, %v2528, 0.0
        %v2530 = vsel %vm265, %v2525, 0.0
        %v2531 = vpack.c.bf16 %v2530, %v2529
        %s2532 = scalar_lea.vmem %s3, 576
        %v2533 = vld [vmem:[%s2532] sm:$0xf]
        %v2534 = vld [vmem:[%s2532 + $0x4] sm:$0xf]
        %v2535 = vld [vmem:[%s2532 + $0x8] sm:$0xf]
        %v2536 = vld [vmem:[%s2532 + $0xc] sm:$0xf]
        %v2537 = vld [vmem:[%s2532 + $0x10] sm:$0xf]
        %v2538 = vld [vmem:[%s2532 + $0x14] sm:$0xf]
        %v2539 = vld [vmem:[%s2532 + $0x18] sm:$0xf]
        %v2540 = vld [vmem:[%s2532 + $0x1c] sm:$0xf]
        %v2541 = vld [vmem:[%s2532 + $0x20] sm:$0xf]
        %v2542 = vld [vmem:[%s2532 + $0x24] sm:$0xf]
        %v2543 = vld [vmem:[%s2532 + $0x28] sm:$0xf]
        %v2544 = vld [vmem:[%s2532 + $0x2c] sm:$0xf]
        %v2545 = vld [vmem:[%s2532 + $0x30] sm:$0xf]
        %v2546 = vld [vmem:[%s2532 + $0x34] sm:$0xf]
        %v2547 = vld [vmem:[%s2532 + $0x38] sm:$0xf]
        %v2548 = vld [vmem:[%s2532 + $0x3c] sm:$0xf]
        %v2549 = vrot.slane %v2519, 4
        %v2550 = vrot.slane %v2520, 4
        %v2551 = vsel %vm285, %v2549, %v2550
        %v2554 = vsel %vm285, 0.0, %v2549
        %v2555 = vsel %vm300, %v2554, 0.0
        %v2556 = vsel %vm301, %v2551, 0.0
        %v2557 = vpack.c.bf16 %v2556, %v2555
        %s2558 = scalar_lea.vmem %s3, 640
        %v2559 = vld [vmem:[%s2558] sm:$0xf]
        %v2560 = vld [vmem:[%s2558 + $0x4] sm:$0xf]
        %v2561 = vld [vmem:[%s2558 + $0x8] sm:$0xf]
        %v2562 = vld [vmem:[%s2558 + $0xc] sm:$0xf]
        %v2563 = vld [vmem:[%s2558 + $0x10] sm:$0xf]
        %v2564 = vld [vmem:[%s2558 + $0x14] sm:$0xf]
        %v2565 = vld [vmem:[%s2558 + $0x18] sm:$0xf]
        %v2566 = vld [vmem:[%s2558 + $0x1c] sm:$0xf]
        %v2567 = vld [vmem:[%s2558 + $0x20] sm:$0xf]
        %v2568 = vld [vmem:[%s2558 + $0x24] sm:$0xf]
        %v2569 = vld [vmem:[%s2558 + $0x28] sm:$0xf]
        %v2570 = vld [vmem:[%s2558 + $0x2c] sm:$0xf]
        %v2571 = vld [vmem:[%s2558 + $0x30] sm:$0xf]
        %v2572 = vld [vmem:[%s2558 + $0x34] sm:$0xf]
        %v2573 = vld [vmem:[%s2558 + $0x38] sm:$0xf]
        %v2574 = vld [vmem:[%s2558 + $0x3c] sm:$0xf]
        %v2591 = vunpack.c.l.b16 %v2559
        %v2592 = vunpack.c.l.b16 %v2560
        %v2593 = vunpack.c.l.b16 %v2561
        %v2594 = vunpack.c.l.b16 %v2562
        %v2595 = vunpack.c.l.b16 %v2563
        %v2596 = vunpack.c.l.b16 %v2564
        %v2597 = vunpack.c.l.b16 %v2565
        %v2598 = vunpack.c.l.b16 %v2566
        %v2599 = vunpack.c.l.b16 %v2567
        %v2600 = vunpack.c.l.b16 %v2568
        %v2601 = vunpack.c.l.b16 %v2569
        %v2602 = vunpack.c.l.b16 %v2570
        %v2603 = vunpack.c.l.b16 %v2571
        %v2604 = vunpack.c.l.b16 %v2572
        %v2605 = vunpack.c.l.b16 %v2573
        %v2606 = vunpack.c.l.b16 %v2574
        %v2607 = vpack.c.b16 %v2592, %v2591
        %v2608 = vpack.c.b16 %v2594, %v2593
        %v2609 = vpack.c.b16 %v2596, %v2595
        %v2610 = vpack.c.b16 %v2598, %v2597
        %v2611 = vpack.c.b16 %v2600, %v2599
        %v2612 = vpack.c.b16 %v2602, %v2601
        %v2613 = vpack.c.b16 %v2604, %v2603
        %v2614 = vpack.c.b16 %v2606, %v2605
        %2623 = vmatprep.subr.bf16.mxu0 0
        %2624 = vmatpush1.bf16.msra.mxu0 %v2607
        %2625 = vmatprep.subr.bf16.mxu0 0
        %2626 = vmatpush1.bf16.msra.mxu0 %v2608
        %2627 = vmatprep.subr.bf16.mxu0 0
        %2628 = vmatpush1.bf16.msra.mxu0 %v2609
        %2629 = vmatprep.subr.bf16.mxu0 0
        %2630 = vmatpush1.bf16.msra.mxu0 %v2610
        %2631 = vmatprep.subr.bf16.mxu0 0
        %2632 = vmatpush1.bf16.msra.mxu0 %v2611
        %2633 = vmatprep.subr.bf16.mxu0 0
        %2634 = vmatpush1.bf16.msra.mxu0 %v2612
        %2635 = vmatprep.subr.bf16.mxu0 0
        %2636 = vmatpush1.bf16.msra.mxu0 %v2613
        %2637 = vmatprep.subr.bf16.mxu0 0
        %2638 = vmatpush1.bf16.msra.mxu0 %v2614
        %2639 = vmatprep.subr.bf16.mxu0 0
        %2640 = vmatpush1.bf16.msra.mxu0 0
        %2641 = vmatprep.subr.bf16.mxu0 0
        %2642 = vmatpush1.bf16.msra.mxu0 0
        %2643 = vmatprep.subr.bf16.mxu0 0
        %2644 = vmatpush1.bf16.msra.mxu0 0
        %2645 = vmatprep.subr.bf16.mxu0 0
        %2646 = vmatpush1.bf16.msra.mxu0 0
        %2647 = vmatprep.subr.bf16.mxu0 0
        %2648 = vmatpush1.bf16.msra.mxu0 0
        %2649 = vmatprep.subr.bf16.mxu0 0
        %2650 = vmatpush1.bf16.msra.mxu0 0
        %2651 = vmatprep.subr.bf16.mxu0 0
        %2652 = vmatpush1.bf16.msra.mxu0 0
        %2653 = vmatprep.subr.bf16.mxu0 0
        %2654 = vmatpush1.bf16.msra.mxu0 0
        %2655 = vmatprep.mubr.bf16.mxu0 0
        %2656 = vmatmul.mubr.bf16.gmra.mrb[0].mxu0 %v2557
        %v2657 = vpop.f32.mrb[0].mxu0
        %v2658 = vadd.f32 0.0, %v2657
        %v2659 = vpop.f32.mrb[0].mxu0
        %v2660 = vpop.f32.mrb[0].mxu0
        %v2661 = vadd.f32 0.0, %v2660
        %v2662 = vpop.f32.mrb[0].mxu0
        %2663 = vdwg.mxu0
        %v2680 = vunpack.c.l.b16 %v2533
        %v2681 = vunpack.c.l.b16 %v2534
        %v2682 = vunpack.c.l.b16 %v2535
        %v2683 = vunpack.c.l.b16 %v2536
        %v2684 = vunpack.c.l.b16 %v2537
        %v2685 = vunpack.c.l.b16 %v2538
        %v2686 = vunpack.c.l.b16 %v2539
        %v2687 = vunpack.c.l.b16 %v2540
        %v2688 = vunpack.c.l.b16 %v2541
        %v2689 = vunpack.c.l.b16 %v2542
        %v2690 = vunpack.c.l.b16 %v2543
        %v2691 = vunpack.c.l.b16 %v2544
        %v2692 = vunpack.c.l.b16 %v2545
        %v2693 = vunpack.c.l.b16 %v2546
        %v2694 = vunpack.c.l.b16 %v2547
        %v2695 = vunpack.c.l.b16 %v2548
        %v2696 = vpack.c.b16 %v2681, %v2680
        %v2697 = vpack.c.b16 %v2683, %v2682
        %v2698 = vpack.c.b16 %v2685, %v2684
        %v2699 = vpack.c.b16 %v2687, %v2686
        %v2700 = vpack.c.b16 %v2689, %v2688
        %v2701 = vpack.c.b16 %v2691, %v2690
        %v2702 = vpack.c.b16 %v2693, %v2692
        %v2703 = vpack.c.b16 %v2695, %v2694
        %2712 = vmatprep.subr.bf16.mxu0 0
        %2713 = vmatpush1.bf16.msra.mxu0 %v2696
        %2714 = vmatprep.subr.bf16.mxu0 0
        %2715 = vmatpush1.bf16.msra.mxu0 %v2697
        %2716 = vmatprep.subr.bf16.mxu0 0
        %2717 = vmatpush1.bf16.msra.mxu0 %v2698
        %2718 = vmatprep.subr.bf16.mxu0 0
        %2719 = vmatpush1.bf16.msra.mxu0 %v2699
        %2720 = vmatprep.subr.bf16.mxu0 0
        %2721 = vmatpush1.bf16.msra.mxu0 %v2700
        %2722 = vmatprep.subr.bf16.mxu0 0
        %2723 = vmatpush1.bf16.msra.mxu0 %v2701
        %2724 = vmatprep.subr.bf16.mxu0 0
        %2725 = vmatpush1.bf16.msra.mxu0 %v2702
        %2726 = vmatprep.subr.bf16.mxu0 0
        %2727 = vmatpush1.bf16.msra.mxu0 %v2703
        %2728 = vmatprep.subr.bf16.mxu0 0
        %2729 = vmatpush1.bf16.msra.mxu0 0
        %2730 = vmatprep.subr.bf16.mxu0 0
        %2731 = vmatpush1.bf16.msra.mxu0 0
        %2732 = vmatprep.subr.bf16.mxu0 0
        %2733 = vmatpush1.bf16.msra.mxu0 0
        %2734 = vmatprep.subr.bf16.mxu0 0
        %2735 = vmatpush1.bf16.msra.mxu0 0
        %2736 = vmatprep.subr.bf16.mxu0 0
        %2737 = vmatpush1.bf16.msra.mxu0 0
        %2738 = vmatprep.subr.bf16.mxu0 0
        %2739 = vmatpush1.bf16.msra.mxu0 0
        %2740 = vmatprep.subr.bf16.mxu0 0
        %2741 = vmatpush1.bf16.msra.mxu0 0
        %2742 = vmatprep.subr.bf16.mxu0 0
        %2743 = vmatpush1.bf16.msra.mxu0 0
        %2744 = vmatprep.mubr.bf16.mxu0 0
        %2745 = vmatmul.mubr.bf16.gmra.mrb[0].mxu0 %v2531
        %v2746 = vpop.f32.mrb[0].mxu0
        %v2747 = vadd.f32 %v2658, %v2746
        %v2748 = vpop.f32.mrb[0].mxu0
        %v2749 = vpop.f32.mrb[0].mxu0
        %v2750 = vadd.f32 %v2661, %v2749
        %v2751 = vpop.f32.mrb[0].mxu0
        %2752 = vdwg.mxu0
        %v2753 = vrot.slane %v2519, 5
        %v2754 = vrot.slane %v2520, 5
        %v2755 = vsel %vm500, %v2753, %v2754
        %v2758 = vsel %vm500, 0.0, %v2753
        %v2759 = vsel %vm517, %v2758, 0.0
        %v2760 = vsel %vm518, %v2755, 0.0
        %v2761 = vpack.c.bf16 %v2760, %v2759
        %s2762 = scalar_lea.vmem %s3, 704
        %v2763 = vld [vmem:[%s2762] sm:$0xf]
        %v2764 = vld [vmem:[%s2762 + $0x4] sm:$0xf]
        %v2765 = vld [vmem:[%s2762 + $0x8] sm:$0xf]
        %v2766 = vld [vmem:[%s2762 + $0xc] sm:$0xf]
        %v2767 = vld [vmem:[%s2762 + $0x10] sm:$0xf]
        %v2768 = vld [vmem:[%s2762 + $0x14] sm:$0xf]
        %v2769 = vld [vmem:[%s2762 + $0x18] sm:$0xf]
        %v2770 = vld [vmem:[%s2762 + $0x1c] sm:$0xf]
        %v2771 = vld [vmem:[%s2762 + $0x20] sm:$0xf]
        %v2772 = vld [vmem:[%s2762 + $0x24] sm:$0xf]
        %v2773 = vld [vmem:[%s2762 + $0x28] sm:$0xf]
        %v2774 = vld [vmem:[%s2762 + $0x2c] sm:$0xf]
        %v2775 = vld [vmem:[%s2762 + $0x30] sm:$0xf]
        %v2776 = vld [vmem:[%s2762 + $0x34] sm:$0xf]
        %v2777 = vld [vmem:[%s2762 + $0x38] sm:$0xf]
        %v2778 = vld [vmem:[%s2762 + $0x3c] sm:$0xf]
        %v2795 = vunpack.c.l.b16 %v2763
        %v2796 = vunpack.c.l.b16 %v2764
        %v2797 = vunpack.c.l.b16 %v2765
        %v2798 = vunpack.c.l.b16 %v2766
        %v2799 = vunpack.c.l.b16 %v2767
        %v2800 = vunpack.c.l.b16 %v2768
        %v2801 = vunpack.c.l.b16 %v2769
        %v2802 = vunpack.c.l.b16 %v2770
        %v2803 = vunpack.c.l.b16 %v2771
        %v2804 = vunpack.c.l.b16 %v2772
        %v2805 = vunpack.c.l.b16 %v2773
        %v2806 = vunpack.c.l.b16 %v2774
        %v2807 = vunpack.c.l.b16 %v2775
        %v2808 = vunpack.c.l.b16 %v2776
        %v2809 = vunpack.c.l.b16 %v2777
        %v2810 = vunpack.c.l.b16 %v2778
        %v2811 = vpack.c.b16 %v2796, %v2795
        %v2812 = vpack.c.b16 %v2798, %v2797
        %v2813 = vpack.c.b16 %v2800, %v2799
        %v2814 = vpack.c.b16 %v2802, %v2801
        %v2815 = vpack.c.b16 %v2804, %v2803
        %v2816 = vpack.c.b16 %v2806, %v2805
        %v2817 = vpack.c.b16 %v2808, %v2807
        %v2818 = vpack.c.b16 %v2810, %v2809
        %2827 = vmatprep.subr.bf16.mxu0 0
        %2828 = vmatpush1.bf16.msra.mxu0 %v2811
        %2829 = vmatprep.subr.bf16.mxu0 0
        %2830 = vmatpush1.bf16.msra.mxu0 %v2812
        %2831 = vmatprep.subr.bf16.mxu0 0
        %2832 = vmatpush1.bf16.msra.mxu0 %v2813
        %2833 = vmatprep.subr.bf16.mxu0 0
        %2834 = vmatpush1.bf16.msra.mxu0 %v2814
        %2835 = vmatprep.subr.bf16.mxu0 0
        %2836 = vmatpush1.bf16.msra.mxu0 %v2815
        %2837 = vmatprep.subr.bf16.mxu0 0
        %2838 = vmatpush1.bf16.msra.mxu0 %v2816
        %2839 = vmatprep.subr.bf16.mxu0 0
        %2840 = vmatpush1.bf16.msra.mxu0 %v2817
        %2841 = vmatprep.subr.bf16.mxu0 0
        %2842 = vmatpush1.bf16.msra.mxu0 %v2818
        %2843 = vmatprep.subr.bf16.mxu0 0
        %2844 = vmatpush1.bf16.msra.mxu0 0
        %2845 = vmatprep.subr.bf16.mxu0 0
        %2846 = vmatpush1.bf16.msra.mxu0 0
        %2847 = vmatprep.subr.bf16.mxu0 0
        %2848 = vmatpush1.bf16.msra.mxu0 0
        %2849 = vmatprep.subr.bf16.mxu0 0
        %2850 = vmatpush1.bf16.msra.mxu0 0
        %2851 = vmatprep.subr.bf16.mxu0 0
        %2852 = vmatpush1.bf16.msra.mxu0 0
        %2853 = vmatprep.subr.bf16.mxu0 0
        %2854 = vmatpush1.bf16.msra.mxu0 0
        %2855 = vmatprep.subr.bf16.mxu0 0
        %2856 = vmatpush1.bf16.msra.mxu0 0
        %2857 = vmatprep.subr.bf16.mxu0 0
        %2858 = vmatpush1.bf16.msra.mxu0 0
        %2859 = vmatprep.mubr.bf16.mxu0 0
        %2860 = vmatmul.mubr.bf16.gmra.mrb[0].mxu0 %v2761
        %v2861 = vpop.f32.mrb[0].mxu0
        %v2862 = vadd.f32 0.0, %v2861
        %v2863 = vpop.f32.mrb[0].mxu0
        %v2864 = vpop.f32.mrb[0].mxu0
        %v2865 = vadd.f32 0.0, %v2864
        %v2866 = vpop.f32.mrb[0].mxu0
        %2867 = vdwg.mxu0
        %v2868 = vadd.f32 %v2747, %v2862
        %v2869 = vadd.f32 %v2750, %v2865
        %v2870 = vrot.slane %v2519, 7
        %v2871 = vrot.slane %v2520, 7
        %v2872 = vsel %vm630, %v2870, %v2871
        %v2875 = vsel %vm630, 0.0, %v2870
        %v2876 = vsel %vm647, %v2875, 0.0
        %v2877 = vsel %vm648, %v2872, 0.0
        %v2878 = vpack.c.bf16 %v2877, %v2876
        %s2879 = scalar_lea.vmem %s3, 768
        %v2880 = vld [vmem:[%s2879] sm:$0xf]
        %v2881 = vld [vmem:[%s2879 + $0x4] sm:$0xf]
        %v2882 = vld [vmem:[%s2879 + $0x8] sm:$0xf]
        %v2883 = vld [vmem:[%s2879 + $0xc] sm:$0xf]
        %v2884 = vld [vmem:[%s2879 + $0x10] sm:$0xf]
        %v2885 = vld [vmem:[%s2879 + $0x14] sm:$0xf]
        %v2886 = vld [vmem:[%s2879 + $0x18] sm:$0xf]
        %v2887 = vld [vmem:[%s2879 + $0x1c] sm:$0xf]
        %v2888 = vld [vmem:[%s2879 + $0x20] sm:$0xf]
        %v2889 = vld [vmem:[%s2879 + $0x24] sm:$0xf]
        %v2890 = vld [vmem:[%s2879 + $0x28] sm:$0xf]
        %v2891 = vld [vmem:[%s2879 + $0x2c] sm:$0xf]
        %v2892 = vld [vmem:[%s2879 + $0x30] sm:$0xf]
        %v2893 = vld [vmem:[%s2879 + $0x34] sm:$0xf]
        %v2894 = vld [vmem:[%s2879 + $0x38] sm:$0xf]
        %v2895 = vld [vmem:[%s2879 + $0x3c] sm:$0xf]
        %v2912 = vunpack.c.l.b16 %v2880
        %v2913 = vunpack.c.l.b16 %v2881
        %v2914 = vunpack.c.l.b16 %v2882
        %v2915 = vunpack.c.l.b16 %v2883
        %v2916 = vunpack.c.l.b16 %v2884
        %v2917 = vunpack.c.l.b16 %v2885
        %v2918 = vunpack.c.l.b16 %v2886
        %v2919 = vunpack.c.l.b16 %v2887
        %v2920 = vunpack.c.l.b16 %v2888
        %v2921 = vunpack.c.l.b16 %v2889
        %v2922 = vunpack.c.l.b16 %v2890
        %v2923 = vunpack.c.l.b16 %v2891
        %v2924 = vunpack.c.l.b16 %v2892
        %v2925 = vunpack.c.l.b16 %v2893
        %v2926 = vunpack.c.l.b16 %v2894
        %v2927 = vunpack.c.l.b16 %v2895
        %v2928 = vpack.c.b16 %v2913, %v2912
        %v2929 = vpack.c.b16 %v2915, %v2914
        %v2930 = vpack.c.b16 %v2917, %v2916
        %v2931 = vpack.c.b16 %v2919, %v2918
        %v2932 = vpack.c.b16 %v2921, %v2920
        %v2933 = vpack.c.b16 %v2923, %v2922
        %v2934 = vpack.c.b16 %v2925, %v2924
        %v2935 = vpack.c.b16 %v2927, %v2926
        %2944 = vmatprep.subr.bf16.mxu0 0
        %2945 = vmatpush1.bf16.msra.mxu0 %v2928
        %2946 = vmatprep.subr.bf16.mxu0 0
        %2947 = vmatpush1.bf16.msra.mxu0 %v2929
        %2948 = vmatprep.subr.bf16.mxu0 0
        %2949 = vmatpush1.bf16.msra.mxu0 %v2930
        %2950 = vmatprep.subr.bf16.mxu0 0
        %2951 = vmatpush1.bf16.msra.mxu0 %v2931
        %2952 = vmatprep.subr.bf16.mxu0 0
        %2953 = vmatpush1.bf16.msra.mxu0 %v2932
        %2954 = vmatprep.subr.bf16.mxu0 0
        %2955 = vmatpush1.bf16.msra.mxu0 %v2933
        %2956 = vmatprep.subr.bf16.mxu0 0
        %2957 = vmatpush1.bf16.msra.mxu0 %v2934
        %2958 = vmatprep.subr.bf16.mxu0 0
        %2959 = vmatpush1.bf16.msra.mxu0 %v2935
        %2960 = vmatprep.subr.bf16.mxu0 0
        %2961 = vmatpush1.bf16.msra.mxu0 0
        %2962 = vmatprep.subr.bf16.mxu0 0
        %2963 = vmatpush1.bf16.msra.mxu0 0
        %2964 = vmatprep.subr.bf16.mxu0 0
        %2965 = vmatpush1.bf16.msra.mxu0 0
        %2966 = vmatprep.subr.bf16.mxu0 0
        %2967 = vmatpush1.bf16.msra.mxu0 0
        %2968 = vmatprep.subr.bf16.mxu0 0
        %2969 = vmatpush1.bf16.msra.mxu0 0
        %2970 = vmatprep.subr.bf16.mxu0 0
        %2971 = vmatpush1.bf16.msra.mxu0 0
        %2972 = vmatprep.subr.bf16.mxu0 0
        %2973 = vmatpush1.bf16.msra.mxu0 0
        %2974 = vmatprep.subr.bf16.mxu0 0
        %2975 = vmatpush1.bf16.msra.mxu0 0
        %2976 = vmatprep.mubr.bf16.mxu0 0
        %2977 = vmatmul.mubr.bf16.gmra.mrb[0].mxu0 %v2878
        %v2978 = vpop.f32.mrb[0].mxu0
        %v2979 = vadd.f32 0.0, %v2978
        %v2980 = vpop.f32.mrb[0].mxu0
        %v2981 = vpop.f32.mrb[0].mxu0
        %v2982 = vadd.f32 0.0, %v2981
        %v2983 = vpop.f32.mrb[0].mxu0
        %2984 = vdwg.mxu0
        %v2985 = vadd.f32 %v2868, %v2979
        %v2986 = vadd.f32 %v2869, %v2982
        %v2987 = vsel %vm764, %v2519, 0.0
        %v2988 = vsel %vm765, %v2520, 0.0
        %v2989 = vpack.c.bf16 %v2988, %v2987
        %s2990 = scalar_lea.vmem %s3, 832
        %v2991 = vld [vmem:[%s2990] sm:$0xf]
        %v2992 = vld [vmem:[%s2990 + $0x4] sm:$0xf]
        %v2993 = vld [vmem:[%s2990 + $0x8] sm:$0xf]
        %v2994 = vld [vmem:[%s2990 + $0xc] sm:$0xf]
        %v2995 = vld [vmem:[%s2990 + $0x10] sm:$0xf]
        %v2996 = vld [vmem:[%s2990 + $0x14] sm:$0xf]
        %v2997 = vld [vmem:[%s2990 + $0x18] sm:$0xf]
        %v2998 = vld [vmem:[%s2990 + $0x1c] sm:$0xf]
        %v2999 = vld [vmem:[%s2990 + $0x20] sm:$0xf]
        %v3000 = vld [vmem:[%s2990 + $0x24] sm:$0xf]
        %v3001 = vld [vmem:[%s2990 + $0x28] sm:$0xf]
        %v3002 = vld [vmem:[%s2990 + $0x2c] sm:$0xf]
        %v3003 = vld [vmem:[%s2990 + $0x30] sm:$0xf]
        %v3004 = vld [vmem:[%s2990 + $0x34] sm:$0xf]
        %v3005 = vld [vmem:[%s2990 + $0x38] sm:$0xf]
        %v3006 = vld [vmem:[%s2990 + $0x3c] sm:$0xf]
        %v3023 = vunpack.c.l.b16 %v2991
        %v3024 = vunpack.c.l.b16 %v2992
        %v3025 = vunpack.c.l.b16 %v2993
        %v3026 = vunpack.c.l.b16 %v2994
        %v3027 = vunpack.c.l.b16 %v2995
        %v3028 = vunpack.c.l.b16 %v2996
        %v3029 = vunpack.c.l.b16 %v2997
        %v3030 = vunpack.c.l.b16 %v2998
        %v3031 = vunpack.c.l.b16 %v2999
        %v3032 = vunpack.c.l.b16 %v3000
        %v3033 = vunpack.c.l.b16 %v3001
        %v3034 = vunpack.c.l.b16 %v3002
        %v3035 = vunpack.c.l.b16 %v3003
        %v3036 = vunpack.c.l.b16 %v3004
        %v3037 = vunpack.c.l.b16 %v3005
        %v3038 = vunpack.c.l.b16 %v3006
        %v3039 = vpack.c.b16 %v3024, %v3023
        %v3040 = vpack.c.b16 %v3026, %v3025
        %v3041 = vpack.c.b16 %v3028, %v3027
        %v3042 = vpack.c.b16 %v3030, %v3029
        %v3043 = vpack.c.b16 %v3032, %v3031
        %v3044 = vpack.c.b16 %v3034, %v3033
        %v3045 = vpack.c.b16 %v3036, %v3035
        %v3046 = vpack.c.b16 %v3038, %v3037
        %3055 = vmatprep.subr.bf16.mxu0 0
        %3056 = vmatpush1.bf16.msra.mxu0 %v3039
        %3057 = vmatprep.subr.bf16.mxu0 0
        %3058 = vmatpush1.bf16.msra.mxu0 %v3040
        %3059 = vmatprep.subr.bf16.mxu0 0
        %3060 = vmatpush1.bf16.msra.mxu0 %v3041
        %3061 = vmatprep.subr.bf16.mxu0 0
        %3062 = vmatpush1.bf16.msra.mxu0 %v3042
        %3063 = vmatprep.subr.bf16.mxu0 0
        %3064 = vmatpush1.bf16.msra.mxu0 %v3043
        %3065 = vmatprep.subr.bf16.mxu0 0
        %3066 = vmatpush1.bf16.msra.mxu0 %v3044
        %3067 = vmatprep.subr.bf16.mxu0 0
        %3068 = vmatpush1.bf16.msra.mxu0 %v3045
        %3069 = vmatprep.subr.bf16.mxu0 0
        %3070 = vmatpush1.bf16.msra.mxu0 %v3046
        %3071 = vmatprep.subr.bf16.mxu0 0
        %3072 = vmatpush1.bf16.msra.mxu0 0
        %3073 = vmatprep.subr.bf16.mxu0 0
        %3074 = vmatpush1.bf16.msra.mxu0 0
        %3075 = vmatprep.subr.bf16.mxu0 0
        %3076 = vmatpush1.bf16.msra.mxu0 0
        %3077 = vmatprep.subr.bf16.mxu0 0
        %3078 = vmatpush1.bf16.msra.mxu0 0
        %3079 = vmatprep.subr.bf16.mxu0 0
        %3080 = vmatpush1.bf16.msra.mxu0 0
        %3081 = vmatprep.subr.bf16.mxu0 0
        %3082 = vmatpush1.bf16.msra.mxu0 0
        %3083 = vmatprep.subr.bf16.mxu0 0
        %3084 = vmatpush1.bf16.msra.mxu0 0
        %3085 = vmatprep.subr.bf16.mxu0 0
        %3086 = vmatpush1.bf16.msra.mxu0 0
        %3087 = vmatprep.mubr.bf16.mxu0 0
        %3088 = vmatmul.mubr.bf16.gmra.mrb[0].mxu0 %v2989
        %v3089 = vpop.f32.mrb[0].mxu0
        %v3090 = vadd.f32 0.0, %v3089
        %v3091 = vpop.f32.mrb[0].mxu0
        %v3092 = vpop.f32.mrb[0].mxu0
        %v3093 = vadd.f32 0.0, %v3092
        %v3094 = vpop.f32.mrb[0].mxu0
        %3095 = vdwg.mxu0
        %v3096 = vadd.f32 %v2985, %v3090
        %v3097 = vadd.f32 %v2986, %v3093
        %v3098 = vrot.slane %v2519, 1
        %v3099 = vrot.slane %v2520, 1
        %v3100 = vsel %vm877, %v3098, %v3099
        %v3103 = vsel %vm877, %v3099, 0.0
        %v3104 = vsel %vm888, %v3100, 0.0
        %v3105 = vsel %vm889, %v3103, 0.0
        %v3106 = vpack.c.bf16 %v3105, %v3104
        %s3107 = scalar_lea.vmem %s3, 896
        %v3108 = vld [vmem:[%s3107] sm:$0xf]
        %v3109 = vld [vmem:[%s3107 + $0x4] sm:$0xf]
        %v3110 = vld [vmem:[%s3107 + $0x8] sm:$0xf]
        %v3111 = vld [vmem:[%s3107 + $0xc] sm:$0xf]
        %v3112 = vld [vmem:[%s3107 + $0x10] sm:$0xf]
        %v3113 = vld [vmem:[%s3107 + $0x14] sm:$0xf]
        %v3114 = vld [vmem:[%s3107 + $0x18] sm:$0xf]
        %v3115 = vld [vmem:[%s3107 + $0x1c] sm:$0xf]
        %v3116 = vld [vmem:[%s3107 + $0x20] sm:$0xf]
        %v3117 = vld [vmem:[%s3107 + $0x24] sm:$0xf]
        %v3118 = vld [vmem:[%s3107 + $0x28] sm:$0xf]
        %v3119 = vld [vmem:[%s3107 + $0x2c] sm:$0xf]
        %v3120 = vld [vmem:[%s3107 + $0x30] sm:$0xf]
        %v3121 = vld [vmem:[%s3107 + $0x34] sm:$0xf]
        %v3122 = vld [vmem:[%s3107 + $0x38] sm:$0xf]
        %v3123 = vld [vmem:[%s3107 + $0x3c] sm:$0xf]
        %v3140 = vunpack.c.l.b16 %v3108
        %v3141 = vunpack.c.l.b16 %v3109
        %v3142 = vunpack.c.l.b16 %v3110
        %v3143 = vunpack.c.l.b16 %v3111
        %v3144 = vunpack.c.l.b16 %v3112
        %v3145 = vunpack.c.l.b16 %v3113
        %v3146 = vunpack.c.l.b16 %v3114
        %v3147 = vunpack.c.l.b16 %v3115
        %v3148 = vunpack.c.l.b16 %v3116
        %v3149 = vunpack.c.l.b16 %v3117
        %v3150 = vunpack.c.l.b16 %v3118
        %v3151 = vunpack.c.l.b16 %v3119
        %v3152 = vunpack.c.l.b16 %v3120
        %v3153 = vunpack.c.l.b16 %v3121
        %v3154 = vunpack.c.l.b16 %v3122
        %v3155 = vunpack.c.l.b16 %v3123
        %v3156 = vpack.c.b16 %v3141, %v3140
        %v3157 = vpack.c.b16 %v3143, %v3142
        %v3158 = vpack.c.b16 %v3145, %v3144
        %v3159 = vpack.c.b16 %v3147, %v3146
        %v3160 = vpack.c.b16 %v3149, %v3148
        %v3161 = vpack.c.b16 %v3151, %v3150
        %v3162 = vpack.c.b16 %v3153, %v3152
        %v3163 = vpack.c.b16 %v3155, %v3154
        %3172 = vmatprep.subr.bf16.mxu0 0
        %3173 = vmatpush1.bf16.msra.mxu0 %v3156
        %3174 = vmatprep.subr.bf16.mxu0 0
        %3175 = vmatpush1.bf16.msra.mxu0 %v3157
        %3176 = vmatprep.subr.bf16.mxu0 0
        %3177 = vmatpush1.bf16.msra.mxu0 %v3158
        %3178 = vmatprep.subr.bf16.mxu0 0
        %3179 = vmatpush1.bf16.msra.mxu0 %v3159
        %3180 = vmatprep.subr.bf16.mxu0 0
        %3181 = vmatpush1.bf16.msra.mxu0 %v3160
        %3182 = vmatprep.subr.bf16.mxu0 0
        %3183 = vmatpush1.bf16.msra.mxu0 %v3161
        %3184 = vmatprep.subr.bf16.mxu0 0
        %3185 = vmatpush1.bf16.msra.mxu0 %v3162
        %3186 = vmatprep.subr.bf16.mxu0 0
        %3187 = vmatpush1.bf16.msra.mxu0 %v3163
        %3188 = vmatprep.subr.bf16.mxu0 0
        %3189 = vmatpush1.bf16.msra.mxu0 0
        %3190 = vmatprep.subr.bf16.mxu0 0
        %3191 = vmatpush1.bf16.msra.mxu0 0
        %3192 = vmatprep.subr.bf16.mxu0 0
        %3193 = vmatpush1.bf16.msra.mxu0 0
        %3194 = vmatprep.subr.bf16.mxu0 0
        %3195 = vmatpush1.bf16.msra.mxu0 0
        %3196 = vmatprep.subr.bf16.mxu0 0
        %3197 = vmatpush1.bf16.msra.mxu0 0
        %3198 = vmatprep.subr.bf16.mxu0 0
        %3199 = vmatpush1.bf16.msra.mxu0 0
        %3200 = vmatprep.subr.bf16.mxu0 0
        %3201 = vmatpush1.bf16.msra.mxu0 0
        %3202 = vmatprep.subr.bf16.mxu0 0
        %3203 = vmatpush1.bf16.msra.mxu0 0
        %3204 = vmatprep.mubr.bf16.mxu0 0
        %3205 = vmatmul.mubr.bf16.gmra.mrb[0].mxu0 %v3106
        %v3206 = vpop.f32.mrb[0].mxu0
        %v3207 = vadd.f32 0.0, %v3206
        %v3208 = vpop.f32.mrb[0].mxu0
        %v3209 = vpop.f32.mrb[0].mxu0
        %v3210 = vadd.f32 0.0, %v3209
        %v3211 = vpop.f32.mrb[0].mxu0
        %3212 = vdwg.mxu0
        %v3213 = vadd.f32 %v3096, %v3207
        %v3214 = vadd.f32 %v3097, %v3210
        %v3216 = vsel %vm237, %v2524, 0.0
        %v3217 = vsel %vm1015, %v2525, 0.0
        %v3218 = vsel %vm1016, %v3216, 0.0
        %v3219 = vpack.c.bf16 %v3218, %v3217
        %s3220 = scalar_lea.vmem %s3, 960
        %v3221 = vld [vmem:[%s3220] sm:$0xf]
        %v3222 = vld [vmem:[%s3220 + $0x4] sm:$0xf]
        %v3223 = vld [vmem:[%s3220 + $0x8] sm:$0xf]
        %v3224 = vld [vmem:[%s3220 + $0xc] sm:$0xf]
        %v3225 = vld [vmem:[%s3220 + $0x10] sm:$0xf]
        %v3226 = vld [vmem:[%s3220 + $0x14] sm:$0xf]
        %v3227 = vld [vmem:[%s3220 + $0x18] sm:$0xf]
        %v3228 = vld [vmem:[%s3220 + $0x1c] sm:$0xf]
        %v3229 = vld [vmem:[%s3220 + $0x20] sm:$0xf]
        %v3230 = vld [vmem:[%s3220 + $0x24] sm:$0xf]
        %v3231 = vld [vmem:[%s3220 + $0x28] sm:$0xf]
        %v3232 = vld [vmem:[%s3220 + $0x2c] sm:$0xf]
        %v3233 = vld [vmem:[%s3220 + $0x30] sm:$0xf]
        %v3234 = vld [vmem:[%s3220 + $0x34] sm:$0xf]
        %v3235 = vld [vmem:[%s3220 + $0x38] sm:$0xf]
        %v3236 = vld [vmem:[%s3220 + $0x3c] sm:$0xf]
        %v3253 = vunpack.c.l.b16 %v3221
        %v3254 = vunpack.c.l.b16 %v3222
        %v3255 = vunpack.c.l.b16 %v3223
        %v3256 = vunpack.c.l.b16 %v3224
        %v3257 = vunpack.c.l.b16 %v3225
        %v3258 = vunpack.c.l.b16 %v3226
        %v3259 = vunpack.c.l.b16 %v3227
        %v3260 = vunpack.c.l.b16 %v3228
        %v3261 = vunpack.c.l.b16 %v3229
        %v3262 = vunpack.c.l.b16 %v3230
        %v3263 = vunpack.c.l.b16 %v3231
        %v3264 = vunpack.c.l.b16 %v3232
        %v3265 = vunpack.c.l.b16 %v3233
        %v3266 = vunpack.c.l.b16 %v3234
        %v3267 = vunpack.c.l.b16 %v3235
        %v3268 = vunpack.c.l.b16 %v3236
        %v3269 = vpack.c.b16 %v3254, %v3253
        %v3270 = vpack.c.b16 %v3256, %v3255
        %v3271 = vpack.c.b16 %v3258, %v3257
        %v3272 = vpack.c.b16 %v3260, %v3259
        %v3273 = vpack.c.b16 %v3262, %v3261
        %v3274 = vpack.c.b16 %v3264, %v3263
        %v3275 = vpack.c.b16 %v3266, %v3265
        %v3276 = vpack.c.b16 %v3268, %v3267
        %3285 = vmatprep.subr.bf16.mxu0 0
        %3286 = vmatpush1.bf16.msra.mxu0 %v3269
        %3287 = vmatprep.subr.bf16.mxu0 0
        %3288 = vmatpush1.bf16.msra.mxu0 %v3270
        %3289 = vmatprep.subr.bf16.mxu0 0
        %3290 = vmatpush1.bf16.msra.mxu0 %v3271
        %3291 = vmatprep.subr.bf16.mxu0 0
        %3292 = vmatpush1.bf16.msra.mxu0 %v3272
        %3293 = vmatprep.subr.bf16.mxu0 0
        %3294 = vmatpush1.bf16.msra.mxu0 %v3273
        %3295 = vmatprep.subr.bf16.mxu0 0
        %3296 = vmatpush1.bf16.msra.mxu0 %v3274
        %3297 = vmatprep.subr.bf16.mxu0 0
        %3298 = vmatpush1.bf16.msra.mxu0 %v3275
        %3299 = vmatprep.subr.bf16.mxu0 0
        %3300 = vmatpush1.bf16.msra.mxu0 %v3276
        %3301 = vmatprep.subr.bf16.mxu0 0
        %3302 = vmatpush1.bf16.msra.mxu0 0
        %3303 = vmatprep.subr.bf16.mxu0 0
        %3304 = vmatpush1.bf16.msra.mxu0 0
        %3305 = vmatprep.subr.bf16.mxu0 0
        %3306 = vmatpush1.bf16.msra.mxu0 0
        %3307 = vmatprep.subr.bf16.mxu0 0
        %3308 = vmatpush1.bf16.msra.mxu0 0
        %3309 = vmatprep.subr.bf16.mxu0 0
        %3310 = vmatpush1.bf16.msra.mxu0 0
        %3311 = vmatprep.subr.bf16.mxu0 0
        %3312 = vmatpush1.bf16.msra.mxu0 0
        %3313 = vmatprep.subr.bf16.mxu0 0
        %3314 = vmatpush1.bf16.msra.mxu0 0
        %3315 = vmatprep.subr.bf16.mxu0 0
        %3316 = vmatpush1.bf16.msra.mxu0 0
        %3317 = vmatprep.mubr.bf16.mxu0 0
        %3318 = vmatmul.mubr.bf16.gmra.mrb[0].mxu0 %v3219
        %v3319 = vpop.f32.mrb[0].mxu0
        %v3320 = vadd.f32 0.0, %v3319
        %v3321 = vpop.f32.mrb[0].mxu0
        %v3322 = vpop.f32.mrb[0].mxu0
        %v3323 = vadd.f32 0.0, %v3322
        %v3324 = vpop.f32.mrb[0].mxu0
        %3325 = vdwg.mxu0
        %v3326 = vadd.f32 %v3213, %v3320
        %v3327 = vadd.f32 %v3214, %v3323
        %v3329 = vsel %vm285, %v2550, 0.0
        %v3330 = vsel %vm1134, %v2551, 0.0
        %v3331 = vsel %vm1135, %v3329, 0.0
        %v3332 = vpack.c.bf16 %v3331, %v3330
        %s3333 = scalar_lea.vmem %s3, 1024
        %v3334 = vld [vmem:[%s3333] sm:$0xf]
        %v3335 = vld [vmem:[%s3333 + $0x4] sm:$0xf]
        %v3336 = vld [vmem:[%s3333 + $0x8] sm:$0xf]
        %v3337 = vld [vmem:[%s3333 + $0xc] sm:$0xf]
        %v3338 = vld [vmem:[%s3333 + $0x10] sm:$0xf]
        %v3339 = vld [vmem:[%s3333 + $0x14] sm:$0xf]
        %v3340 = vld [vmem:[%s3333 + $0x18] sm:$0xf]
        %v3341 = vld [vmem:[%s3333 + $0x1c] sm:$0xf]
        %v3342 = vld [vmem:[%s3333 + $0x20] sm:$0xf]
        %v3343 = vld [vmem:[%s3333 + $0x24] sm:$0xf]
        %v3344 = vld [vmem:[%s3333 + $0x28] sm:$0xf]
        %v3345 = vld [vmem:[%s3333 + $0x2c] sm:$0xf]
        %v3346 = vld [vmem:[%s3333 + $0x30] sm:$0xf]
        %v3347 = vld [vmem:[%s3333 + $0x34] sm:$0xf]
        %v3348 = vld [vmem:[%s3333 + $0x38] sm:$0xf]
        %v3349 = vld [vmem:[%s3333 + $0x3c] sm:$0xf]
        %v3366 = vunpack.c.l.b16 %v3334
        %v3367 = vunpack.c.l.b16 %v3335
        %v3368 = vunpack.c.l.b16 %v3336
        %v3369 = vunpack.c.l.b16 %v3337
        %v3370 = vunpack.c.l.b16 %v3338
        %v3371 = vunpack.c.l.b16 %v3339
        %v3372 = vunpack.c.l.b16 %v3340
        %v3373 = vunpack.c.l.b16 %v3341
        %v3374 = vunpack.c.l.b16 %v3342
        %v3375 = vunpack.c.l.b16 %v3343
        %v3376 = vunpack.c.l.b16 %v3344
        %v3377 = vunpack.c.l.b16 %v3345
        %v3378 = vunpack.c.l.b16 %v3346
        %v3379 = vunpack.c.l.b16 %v3347
        %v3380 = vunpack.c.l.b16 %v3348
        %v3381 = vunpack.c.l.b16 %v3349
        %v3382 = vpack.c.b16 %v3367, %v3366
        %v3383 = vpack.c.b16 %v3369, %v3368
        %v3384 = vpack.c.b16 %v3371, %v3370
        %v3385 = vpack.c.b16 %v3373, %v3372
        %v3386 = vpack.c.b16 %v3375, %v3374
        %v3387 = vpack.c.b16 %v3377, %v3376
        %v3388 = vpack.c.b16 %v3379, %v3378
        %v3389 = vpack.c.b16 %v3381, %v3380
        %3398 = vmatprep.subr.bf16.mxu0 0
        %3399 = vmatpush1.bf16.msra.mxu0 %v3382
        %3400 = vmatprep.subr.bf16.mxu0 0
        %3401 = vmatpush1.bf16.msra.mxu0 %v3383
        %3402 = vmatprep.subr.bf16.mxu0 0
        %3403 = vmatpush1.bf16.msra.mxu0 %v3384
        %3404 = vmatprep.subr.bf16.mxu0 0
        %3405 = vmatpush1.bf16.msra.mxu0 %v3385
        %3406 = vmatprep.subr.bf16.mxu0 0
        %3407 = vmatpush1.bf16.msra.mxu0 %v3386
        %3408 = vmatprep.subr.bf16.mxu0 0
        %3409 = vmatpush1.bf16.msra.mxu0 %v3387
        %3410 = vmatprep.subr.bf16.mxu0 0
        %3411 = vmatpush1.bf16.msra.mxu0 %v3388
        %3412 = vmatprep.subr.bf16.mxu0 0
        %3413 = vmatpush1.bf16.msra.mxu0 %v3389
        %3414 = vmatprep.subr.bf16.mxu0 0
        %3415 = vmatpush1.bf16.msra.mxu0 0
        %3416 = vmatprep.subr.bf16.mxu0 0
        %3417 = vmatpush1.bf16.msra.mxu0 0
        %3418 = vmatprep.subr.bf16.mxu0 0
        %3419 = vmatpush1.bf16.msra.mxu0 0
        %3420 = vmatprep.subr.bf16.mxu0 0
        %3421 = vmatpush1.bf16.msra.mxu0 0
        %3422 = vmatprep.subr.bf16.mxu0 0
        %3423 = vmatpush1.bf16.msra.mxu0 0
        %3424 = vmatprep.subr.bf16.mxu0 0
        %3425 = vmatpush1.bf16.msra.mxu0 0
        %3426 = vmatprep.subr.bf16.mxu0 0
        %3427 = vmatpush1.bf16.msra.mxu0 0
        %3428 = vmatprep.subr.bf16.mxu0 0
        %3429 = vmatpush1.bf16.msra.mxu0 0
        %3430 = vmatprep.mubr.bf16.mxu0 0
        %3431 = vmatmul.mubr.bf16.gmra.mrb[0].mxu0 %v3332
        %v3432 = vpop.f32.mrb[0].mxu0
        %v3433 = vadd.f32 0.0, %v3432
        %v3434 = vpop.f32.mrb[0].mxu0
        %v3435 = vpop.f32.mrb[0].mxu0
        %v3436 = vadd.f32 0.0, %v3435
        %v3437 = vpop.f32.mrb[0].mxu0
        %3438 = vdwg.mxu0
        %v3439 = vadd.f32 %v3326, %v3433
        %v3440 = vadd.f32 %v3327, %v3436
        %v3442 = vsel %vm500, %v2754, 0.0
        %v3443 = vsel %vm1253, %v2755, 0.0
        %v3444 = vsel %vm1254, %v3442, 0.0
        %v3445 = vpack.c.bf16 %v3444, %v3443
        %s3446 = scalar_lea.vmem %s3, 1088
        %v3447 = vld [vmem:[%s3446] sm:$0xf]
        %v3448 = vld [vmem:[%s3446 + $0x4] sm:$0xf]
        %v3449 = vld [vmem:[%s3446 + $0x8] sm:$0xf]
        %v3450 = vld [vmem:[%s3446 + $0xc] sm:$0xf]
        %v3451 = vld [vmem:[%s3446 + $0x10] sm:$0xf]
        %v3452 = vld [vmem:[%s3446 + $0x14] sm:$0xf]
        %v3453 = vld [vmem:[%s3446 + $0x18] sm:$0xf]
        %v3454 = vld [vmem:[%s3446 + $0x1c] sm:$0xf]
        %v3455 = vld [vmem:[%s3446 + $0x20] sm:$0xf]
        %v3456 = vld [vmem:[%s3446 + $0x24] sm:$0xf]
        %v3457 = vld [vmem:[%s3446 + $0x28] sm:$0xf]
        %v3458 = vld [vmem:[%s3446 + $0x2c] sm:$0xf]
        %v3459 = vld [vmem:[%s3446 + $0x30] sm:$0xf]
        %v3460 = vld [vmem:[%s3446 + $0x34] sm:$0xf]
        %v3461 = vld [vmem:[%s3446 + $0x38] sm:$0xf]
        %v3462 = vld [vmem:[%s3446 + $0x3c] sm:$0xf]
        %v3479 = vunpack.c.l.b16 %v3447
        %v3480 = vunpack.c.l.b16 %v3448
        %v3481 = vunpack.c.l.b16 %v3449
        %v3482 = vunpack.c.l.b16 %v3450
        %v3483 = vunpack.c.l.b16 %v3451
        %v3484 = vunpack.c.l.b16 %v3452
        %v3485 = vunpack.c.l.b16 %v3453
        %v3486 = vunpack.c.l.b16 %v3454
        %v3487 = vunpack.c.l.b16 %v3455
        %v3488 = vunpack.c.l.b16 %v3456
        %v3489 = vunpack.c.l.b16 %v3457
        %v3490 = vunpack.c.l.b16 %v3458
        %v3491 = vunpack.c.l.b16 %v3459
        %v3492 = vunpack.c.l.b16 %v3460
        %v3493 = vunpack.c.l.b16 %v3461
        %v3494 = vunpack.c.l.b16 %v3462
        %v3495 = vpack.c.b16 %v3480, %v3479
        %v3496 = vpack.c.b16 %v3482, %v3481
        %v3497 = vpack.c.b16 %v3484, %v3483
        %v3498 = vpack.c.b16 %v3486, %v3485
        %v3499 = vpack.c.b16 %v3488, %v3487
        %v3500 = vpack.c.b16 %v3490, %v3489
        %v3501 = vpack.c.b16 %v3492, %v3491
        %v3502 = vpack.c.b16 %v3494, %v3493
        %3511 = vmatprep.subr.bf16.mxu0 0
        %3512 = vmatpush1.bf16.msra.mxu0 %v3495
        %3513 = vmatprep.subr.bf16.mxu0 0
        %3514 = vmatpush1.bf16.msra.mxu0 %v3496
        %3515 = vmatprep.subr.bf16.mxu0 0
        %3516 = vmatpush1.bf16.msra.mxu0 %v3497
        %3517 = vmatprep.subr.bf16.mxu0 0
        %3518 = vmatpush1.bf16.msra.mxu0 %v3498
        %3519 = vmatprep.subr.bf16.mxu0 0
        %3520 = vmatpush1.bf16.msra.mxu0 %v3499
        %3521 = vmatprep.subr.bf16.mxu0 0
        %3522 = vmatpush1.bf16.msra.mxu0 %v3500
        %3523 = vmatprep.subr.bf16.mxu0 0
        %3524 = vmatpush1.bf16.msra.mxu0 %v3501
        %3525 = vmatprep.subr.bf16.mxu0 0
        %3526 = vmatpush1.bf16.msra.mxu0 %v3502
        %3527 = vmatprep.subr.bf16.mxu0 0
        %3528 = vmatpush1.bf16.msra.mxu0 0
        %3529 = vmatprep.subr.bf16.mxu0 0
        %3530 = vmatpush1.bf16.msra.mxu0 0
        %3531 = vmatprep.subr.bf16.mxu0 0
        %3532 = vmatpush1.bf16.msra.mxu0 0
        %3533 = vmatprep.subr.bf16.mxu0 0
        %3534 = vmatpush1.bf16.msra.mxu0 0
        %3535 = vmatprep.subr.bf16.mxu0 0
        %3536 = vmatpush1.bf16.msra.mxu0 0
        %3537 = vmatprep.subr.bf16.mxu0 0
        %3538 = vmatpush1.bf16.msra.mxu0 0
        %3539 = vmatprep.subr.bf16.mxu0 0
        %3540 = vmatpush1.bf16.msra.mxu0 0
        %3541 = vmatprep.subr.bf16.mxu0 0
        %3542 = vmatpush1.bf16.msra.mxu0 0
        %3543 = vmatprep.mubr.bf16.mxu0 0
        %3544 = vmatmul.mubr.bf16.gmra.mrb[0].mxu0 %v3445
        %v3545 = vpop.f32.mrb[0].mxu0
        %v3546 = vadd.f32 0.0, %v3545
        %v3547 = vpop.f32.mrb[0].mxu0
        %v3548 = vpop.f32.mrb[0].mxu0
        %v3549 = vadd.f32 0.0, %v3548
        %v3550 = vpop.f32.mrb[0].mxu0
        %3551 = vdwg.mxu0
        %v3552 = vadd.f32 %v3439, %v3546
        %v3553 = vadd.f32 %v3440, %v3549
        %v3554 = vmax.f32 %v3552, 0.0
        %v3555 = vmax.f32 %v3553, 0.0
        %v3556 = vpack.c.bf16 %v3555, %v3554
        %s3557 = scalar_lea.vmem %s4, 64
        %v3558 = vld [vmem:[%s3557] sm:$0xf]
        %v3559 = vld [vmem:[%s3557 + $0x4] sm:$0xf]
        %v3560 = vld [vmem:[%s3557 + $0x8] sm:$0xf]
        %v3561 = vld [vmem:[%s3557 + $0xc] sm:$0xf]
        %v3562 = vld [vmem:[%s3557 + $0x10] sm:$0xf]
        %v3563 = vld [vmem:[%s3557 + $0x14] sm:$0xf]
        %v3564 = vld [vmem:[%s3557 + $0x18] sm:$0xf]
        %v3565 = vld [vmem:[%s3557 + $0x1c] sm:$0xf]
        %v3566 = vld [vmem:[%s3557 + $0x20] sm:$0xf]
        %v3567 = vld [vmem:[%s3557 + $0x24] sm:$0xf]
        %v3568 = vld [vmem:[%s3557 + $0x28] sm:$0xf]
        %v3569 = vld [vmem:[%s3557 + $0x2c] sm:$0xf]
        %v3570 = vld [vmem:[%s3557 + $0x30] sm:$0xf]
        %v3571 = vld [vmem:[%s3557 + $0x34] sm:$0xf]
        %v3572 = vld [vmem:[%s3557 + $0x38] sm:$0xf]
        %v3573 = vld [vmem:[%s3557 + $0x3c] sm:$0xf]
        %v3590 = vunpack.c.l.b16 %v3558
        %v3591 = vunpack.c.l.b16 %v3559
        %v3592 = vunpack.c.l.b16 %v3560
        %v3593 = vunpack.c.l.b16 %v3561
        %v3594 = vunpack.c.l.b16 %v3562
        %v3595 = vunpack.c.l.b16 %v3563
        %v3596 = vunpack.c.l.b16 %v3564
        %v3597 = vunpack.c.l.b16 %v3565
        %v3598 = vunpack.c.l.b16 %v3566
        %v3599 = vunpack.c.l.b16 %v3567
        %v3600 = vunpack.c.l.b16 %v3568
        %v3601 = vunpack.c.l.b16 %v3569
        %v3602 = vunpack.c.l.b16 %v3570
        %v3603 = vunpack.c.l.b16 %v3571
        %v3604 = vunpack.c.l.b16 %v3572
        %v3605 = vunpack.c.l.b16 %v3573
        %v3606 = vpack.c.b16 %v3591, %v3590
        %v3607 = vpack.c.b16 %v3593, %v3592
        %v3608 = vpack.c.b16 %v3595, %v3594
        %v3609 = vpack.c.b16 %v3597, %v3596
        %v3610 = vpack.c.b16 %v3599, %v3598
        %v3611 = vpack.c.b16 %v3601, %v3600
        %v3612 = vpack.c.b16 %v3603, %v3602
        %v3613 = vpack.c.b16 %v3605, %v3604
        %3622 = vmatprep.subr.bf16.mxu0 0
        %3623 = vmatpush1.bf16.msra.mxu0 %v3606
        %3624 = vmatprep.subr.bf16.mxu0 0
        %3625 = vmatpush1.bf16.msra.mxu0 %v3607
        %3626 = vmatprep.subr.bf16.mxu0 0
        %3627 = vmatpush1.bf16.msra.mxu0 %v3608
        %3628 = vmatprep.subr.bf16.mxu0 0
        %3629 = vmatpush1.bf16.msra.mxu0 %v3609
        %3630 = vmatprep.subr.bf16.mxu0 0
        %3631 = vmatpush1.bf16.msra.mxu0 %v3610
        %3632 = vmatprep.subr.bf16.mxu0 0
        %3633 = vmatpush1.bf16.msra.mxu0 %v3611
        %3634 = vmatprep.subr.bf16.mxu0 0
        %3635 = vmatpush1.bf16.msra.mxu0 %v3612
        %3636 = vmatprep.subr.bf16.mxu0 0
        %3637 = vmatpush1.bf16.msra.mxu0 %v3613
        %3638 = vmatprep.subr.bf16.mxu0 0
        %3639 = vmatpush1.bf16.msra.mxu0 0
        %3640 = vmatprep.subr.bf16.mxu0 0
        %3641 = vmatpush1.bf16.msra.mxu0 0
        %3642 = vmatprep.subr.bf16.mxu0 0
        %3643 = vmatpush1.bf16.msra.mxu0 0
        %3644 = vmatprep.subr.bf16.mxu0 0
        %3645 = vmatpush1.bf16.msra.mxu0 0
        %3646 = vmatprep.subr.bf16.mxu0 0
        %3647 = vmatpush1.bf16.msra.mxu0 0
        %3648 = vmatprep.subr.bf16.mxu0 0
        %3649 = vmatpush1.bf16.msra.mxu0 0
        %3650 = vmatprep.subr.bf16.mxu0 0
        %3651 = vmatpush1.bf16.msra.mxu0 0
        %3652 = vmatprep.subr.bf16.mxu0 0
        %3653 = vmatpush1.bf16.msra.mxu0 0
        %3654 = vmatprep.mubr.bf16.mxu0 0
        %3655 = vmatmul.mubr.bf16.gmra.mrb[0].mxu0 %v3556
        %v3656 = vpop.f32.mrb[0].mxu0
        %v3657 = vadd.f32 0.0, %v3656
        %v3658 = vpop.f32.mrb[0].mxu0
        %v3659 = vpop.f32.mrb[0].mxu0
        %v3660 = vadd.f32 0.0, %v3659
        %v3661 = vpop.f32.mrb[0].mxu0
        %3662 = vdwg.mxu0
        %v3663 = vadd.f32 %v2517, %v3657
        %v3664 = vadd.f32 %v2518, %v3660
        %v3665 = vmax.f32 %v3663, 0.0
        %v3666 = vmax.f32 %v3664, 0.0
        %3667 = vst [vmem:[%s217] sm:$0xff] %v3665
        %3668 = vst [vmem:[%s217 + $0x8] sm:$0xff] %v3666
        %s3669 = sand.u32 %s137, 1
        %s3670 = scalar_lea.sflag [#allocation3], %s3669
        %s3671 = sand.u32 %s137, 1
        %s3672 = smul.addr %s3671, 16
        %s3673 = scalar_lea.vmem [#allocation2], %s3672
        // Predicated region
        $region41: #{encoder_forward.5} parent=39 // pred_check
          %p3674 = pneg %p147
        $region42: #{encoder_forward.5} parent=39 // pred_check_branch
          %3676 = sbr.rel (%p3674) target = $region44
        $region43: #{encoder_forward.5} parent=39 // pred_region
          %s3678 = ssub.s32 256, 256
          %3679 = vsyncadd %s3670, %s3678
          %s3680 = smul.addr %s19, 2
          %s3681 = smul.addr %s3680, 128
          %s3682 = scalar_lea.hbm %s5, %s3681
          %s3683 = sshll.u32 %s3673, 4
          %s3684 = int_to_ptr.vmem [resolvable:$true] %s3683
          %3689 = dma.vmem_to_hbm [thread:$0]  %s3684, 256, %s3682, %s3670, 128, 128, 8
        $region44: #{encoder_forward.5} parent=39 // pred_fallthru
          _
      $region40: #{encoder_forward.5} parent=5 // pred_fallthru
        _
      %p3690 = scmp.le.s32.totalorder 2, %s14
      // Predicated region
      $region45: #{encoder_forward.5} parent=5 // pred_check
        %p3691 = pneg %p3690
      $region46: #{encoder_forward.5} parent=5 // pred_check_branch
        %3693 = sbr.rel (%p3691) target = $region48
      $region47: #{encoder_forward.5} parent=5 // pred_region
        %s3694 = ssub.s32 %s14, 2
        // Predicated region
        $region49: #{encoder_forward.5} parent=47 // pred_check
          %p3695 = pneg %p153
        $region50: #{encoder_forward.5} parent=47 // pred_check_branch
          %3697 = sbr.rel (%p3695) target = $region52
        $region51: #{encoder_forward.5} parent=47 // pred_region
          %s3698 = sand.u32 %s138, 1
          %s3699 = scalar_lea.sflag [#allocation3], %s3698
          %s3700 = sand.u32 %s138, 1
          %s3701 = smul.addr %s3700, 16
          %s3702 = scalar_lea.vmem [#allocation2], %s3701
          %3703 = dma.done %s3699, 256
        $region52: #{encoder_forward.5} parent=47 // pred_fallthru
          _
      $region48: #{encoder_forward.5} parent=5 // pred_fallthru
        _
    $region6: #{encoder_forward.5} parent=1 // loop_footer
      %s18 = sadd.s32 1, %s14
    $region7: #{encoder_forward.5} parent=1 // loop_footer_branch
      %13 = sbr.rel target = $region3
    $region8: #{encoder_forward.5} parent=1 // loop_exit
      _
    %3704 = vsyncpa [#allocation3], 1
    %s3705 = scalar_lea.sflag [#allocation3], 1
    %3706 = vsyncpa %s3705, 1

</llo_original>
